<compile_context>
chip_gen: v5e
topology: v5e:2x2
jax: 0.10.0
libtpu: 0.0.40
codegen_flags: <defaults>
</compile_context>

<pallas_src>
import functools

import jax
import jax.numpy as jnp
from jax.experimental import pallas as pl
from jax.experimental.pallas import tpu as pltpu

EXPANSION = 4
_BN_EPS = 1e-5
# Well under v7x's 64 MiB physical VMEM; tiles used here are far smaller.
_VMEM_LIMIT = 32 << 20


def _round_up(x, m):
    return (x + m - 1) // m * m


def _mosaic_params(sem):
    return pltpu.CompilerParams(dimension_semantics=sem,
                                vmem_limit_bytes=_VMEM_LIMIT)


def _row_tile(ho):
    """Output-row tile for the 3x3 conv: >=2 tiles when possible, divides ho."""
    for cand in (32, 16, 8):
        if cand * 2 <= ho and ho % cand == 0:
            return cand
    return ho


# ---------------------------------------------------------------------------
# Pallas kernels
# ---------------------------------------------------------------------------
def _matmul_bn_kernel(a_ref, w_ref, c_ref, o_ref, *, relu):
    """out = maybe_relu(a @ w + shift); bf16 inputs, f32 accumulate/epilogue."""
    acc = jnp.dot(a_ref[...], w_ref[...], preferred_element_type=jnp.float32)
    out = acc + c_ref[...]
    if relu:
        out = jnp.maximum(out, 0.0)
    o_ref[...] = out.astype(o_ref.dtype)


def _matmul_bn_res_kernel(a_ref, w_ref, c_ref, r_ref, o_ref, *, relu):
    """out = maybe_relu(a @ w + shift + residual); residual read as bf16."""
    acc = jnp.dot(a_ref[...], w_ref[...], preferred_element_type=jnp.float32)
    out = acc + c_ref[...] + r_ref[...].astype(jnp.float32)
    if relu:
        out = jnp.maximum(out, 0.0)
    o_ref[...] = out.astype(o_ref.dtype)


def _conv3x3_kernel(x_ref, w_ref, c_ref, o_ref, *, th, wo, cin, stride, relu):
    """3x3 conv as 9 accumulated per-tap matmuls over one output-row tile.

    x_ref: (1, Hk, Wk, Ck) bf16 space-to-depth input (Ck = stride^2 * cin)
    w_ref: (9, cin, Np)    bf16 folded weights, tap index t = di*3 + dj
    c_ref: (1, Np)         f32 BN shift
    o_ref: (1, th*wo, Np)  bf16/f32 output rows for this tile
    """
    r0 = pl.program_id(1) * th
    acc = None
    for di in range(3):
        for dj in range(3):
            t = di * 3 + dj
            ph = (di % stride) * stride + (dj % stride)
            a = x_ref[0,
                      pl.ds(r0 + di // stride, th),
                      pl.ds(dj // stride, wo),
                      pl.ds(ph * cin, cin)]              # (th, wo, cin) bf16
            a = a.reshape(th * wo, cin)
            part = jnp.dot(a, w_ref[t], preferred_element_type=jnp.float32)
            acc = part if acc is None else acc + part
    out = acc + c_ref[...]
    if relu:
        out = jnp.maximum(out, 0.0)
    o_ref[0] = out.astype(o_ref.dtype)


# ---------------------------------------------------------------------------
# Pallas wrappers (activations are NHWC, channel-padded, bf16)
# ---------------------------------------------------------------------------
def conv1x1_bn(x_nhwc, w_p, shift_p, *, relu, residual=None,
               out_dtype=jnp.bfloat16):
    """1x1 conv + folded-BN shift (+ residual) (+ ReLU) as one fused matmul."""
    N, H, W, Cp = x_nhwc.shape
    Kp, Np = w_p.shape
    assert Cp == Kp
    M = N * H * W
    a = x_nhwc.reshape(M, Cp)                    # free reshape, already bf16

    # Row tile: up to 512 rows, 8-row granularity, >=2 tiles when possible.
    tm = min(512, max(8, _round_up((M + 1) // 2, 8)))
    Mp = _round_up(M, tm)
    # Lane-dense N tiles; keep the whole weight resident when it is small.
    if Np <= 512:
        tn = Np
    elif Np % 256 == 0:
        tn = 256
    else:
        tn = 128

    if Mp != M:
        a = jnp.pad(a, ((0, Mp - M), (0, 0)))

    in_specs = [
        pl.BlockSpec((tm, Kp), lambda i, j: (i, 0)),
        pl.BlockSpec((Kp, tn), lambda i, j: (0, j)),
        pl.BlockSpec((1, tn), lambda i, j: (0, j)),
    ]
    args = [a, w_p, shift_p]
    if residual is not None:
        r = residual.reshape(M, Np)              # padded bf16 layout, no cast
        if Mp != M:
            r = jnp.pad(r, ((0, Mp - M), (0, 0)))
        in_specs.append(pl.BlockSpec((tm, tn), lambda i, j: (i, j)))
        args.append(r)
        kernel = functools.partial(_matmul_bn_res_kernel, relu=relu)
    else:
        kernel = functools.partial(_matmul_bn_kernel, relu=relu)

    out = pl.pallas_call(
        kernel,
        out_shape=jax.ShapeDtypeStruct((Mp, Np), out_dtype),
        grid=(Mp // tm, Np // tn),
        in_specs=in_specs,
        out_specs=pl.BlockSpec((tm, tn), lambda i, j: (i, j)),
        compiler_params=_mosaic_params(("parallel", "parallel")),
    )(*args)
    if Mp != M:
        out = out[:M]
    return out.reshape(N, H, W, Np)


def conv3x3_bn(x_nhwc, w_taps, shift_p, *, stride, relu,
               out_dtype=jnp.bfloat16):
    """3x3 conv (pad 1, stride s) + folded-BN shift (+ ReLU), stride in-kernel."""
    N, H, W, Cp = x_nhwc.shape
    nt, Kp, Np = w_taps.shape
    assert nt == 9 and Kp == Cp
    s = stride
    Ho = (H - 1) // s + 1
    Wo = (W - 1) // s + 1
    ext = 2 // s                                  # halo rows after space-to-depth
    H2 = max(s * (Ho + ext), _round_up(H + 2, s))
    W2 = max(s * (Wo + ext), _round_up(W + 2, s))
    xp = jnp.pad(x_nhwc, ((0, 0), (1, H2 - H - 1), (1, W2 - W - 1), (0, 0)))
    if s > 1:
        # Space-to-depth so every in-kernel tap read is a contiguous slice
        # with a lane-aligned (multiple-of-Cp) channel offset.
        xk = xp.reshape(N, H2 // s, s, W2 // s, s, Cp)
        xk = xk.transpose(0, 1, 3, 2, 4, 5).reshape(N, H2 // s, W2 // s, s * s * Cp)
    else:
        xk = xp
    _, Hk, Wk, Ck = xk.shape
    th = _row_tile(Ho)

    kernel = functools.partial(_conv3x3_kernel, th=th, wo=Wo, cin=Cp,
                               stride=s, relu=relu)
    out = pl.pallas_call(
        kernel,
        out_shape=jax.ShapeDtypeStruct((N, Ho * Wo, Np), out_dtype),
        grid=(N, Ho // th),
        in_specs=[
            pl.BlockSpec((1, Hk, Wk, Ck), lambda n, r: (n, 0, 0, 0)),
            pl.BlockSpec((9, Kp, Np), lambda n, r: (0, 0, 0)),
            pl.BlockSpec((1, Np), lambda n, r: (0, 0)),
        ],
        out_specs=pl.BlockSpec((1, th * Wo, Np), lambda n, r: (n, r, 0)),
        compiler_params=_mosaic_params(("parallel", "parallel")),
    )(xk, w_taps, shift_p)
    return out.reshape(N, Ho, Wo, Np)


# ---------------------------------------------------------------------------
# One-time parameter preparation (fold BN scale, pad K and N to 128, cast bf16)
# ---------------------------------------------------------------------------
def _fold_bn(bn):
    scale = bn["gamma"] / jnp.sqrt(bn["var"] + _BN_EPS)
    shift = bn["beta"] - bn["mean"] * scale
    return scale, shift


def _prep_1x1(w_oihw, bn, kp, np_):
    scale, shift = _fold_bn(bn)
    cout, cin = w_oihw.shape[:2]
    wm = w_oihw[:, :, 0, 0].T * scale[None, :]                  # (cin, cout)
    w_p = jnp.pad(wm, ((0, kp - cin), (0, np_ - cout))).astype(jnp.bfloat16)
    c_p = jnp.pad(shift[None, :], ((0, 0), (0, np_ - cout))).astype(jnp.float32)
    return w_p, c_p


def _prep_3x3(w_oihw, bn, kp, np_):
    scale, shift = _fold_bn(bn)
    cout, cin, kh, kw = w_oihw.shape
    wt = jnp.transpose(w_oihw, (2, 3, 1, 0)).reshape(kh * kw, cin, cout)
    wt = wt * scale[None, None, :]                               # tap t = di*3+dj
    w_p = jnp.pad(wt, ((0, 0), (0, kp - cin), (0, np_ - cout))).astype(jnp.bfloat16)
    c_p = jnp.pad(shift[None, :], ((0, 0), (0, np_ - cout))).astype(jnp.float32)
    return w_p, c_p


def prepare_bottleneck(params, in_planes, planes):
    """Hoisted per-parameter-set prep (done once, not per forward call)."""
    cin_p = _round_up(in_planes, 128)
    p_p = _round_up(planes, 128)
    c3_p = _round_up(EXPANSION * planes, 128)
    prep = {}
    prep["w1"], prep["c1"] = _prep_1x1(params["conv1_w"], params["bn1"], cin_p, p_p)
    prep["w2"], prep["c2"] = _prep_3x3(params["conv2_w"], params["bn2"], p_p, p_p)
    prep["w3"], prep["c3"] = _prep_1x1(params["conv3_w"], params["bn3"], p_p, c3_p)
    if "sc_w" in params:
        prep["wsc"], prep["csc"] = _prep_1x1(params["sc_w"], params["sc_bn"], cin_p, c3_p)
    return prep


# ---------------------------------------------------------------------------
# Bottleneck forward (NCHW in, NCHW out — matches the PyTorch module)
# ---------------------------------------------------------------------------
@functools.partial(jax.jit, static_argnames=("planes", "stride"))
def bottleneck_forward(x_nchw, prep, planes, stride):
    # TODO(synk): for a stacked ResNet the NCHW<->NHWC transposes should be
    #             hoisted to the model boundary; kept here so a single block
    #             matches the PyTorch module interface.
    N, Cin, H, W = x_nchw.shape
    cin_p = prep["w1"].shape[0]
    c3 = EXPANSION * planes
    x = jnp.transpose(x_nchw, (0, 2, 3, 1))
    x_p = jnp.pad(x, ((0, 0), (0, 0), (0, 0), (0, cin_p - Cin))).astype(jnp.bfloat16)

    out = conv1x1_bn(x_p, prep["w1"], prep["c1"], relu=True)              # bf16
    out = conv3x3_bn(out, prep["w2"], prep["c2"], stride=stride, relu=True)

    if "wsc" in prep:
        xs = x_p[:, ::stride, ::stride, :] if stride > 1 else x_p
        sc = conv1x1_bn(xs, prep["wsc"], prep["csc"], relu=False)         # bf16
    else:
        sc = x_p                                   # identity: cin_p == c3_p here

    # conv3 + bn3 + residual add + final ReLU fused in one kernel; f32 output.
    out = conv1x1_bn(out, prep["w3"], prep["c3"], relu=True, residual=sc,
                     out_dtype=jnp.float32)
    out = out[..., :c3]
    return jnp.transpose(out, (0, 3, 1, 2))


# ---------------------------------------------------------------------------
# Pure-JAX reference (exact Bottleneck semantics) + parameter construction
# ---------------------------------------------------------------------------
def _conv_ref(x, w_oihw, stride, pad):
    return jax.lax.conv_general_dilated(
        x, jnp.transpose(w_oihw, (2, 3, 1, 0)),
        window_strides=(stride, stride), padding=[(pad, pad), (pad, pad)],
        dimension_numbers=("NHWC", "HWIO", "NHWC"),
        precision=jax.lax.Precision.HIGHEST)


def _bn_ref(x, bn):
    scale = bn["gamma"] / jnp.sqrt(bn["var"] + _BN_EPS)
    return x * scale + (bn["beta"] - bn["mean"] * scale)


def bottleneck_ref(x_nchw, params, stride):
    x = jnp.transpose(x_nchw, (0, 2, 3, 1)).astype(jnp.float32)
    out = jax.nn.relu(_bn_ref(_conv_ref(x, params["conv1_w"], 1, 0), params["bn1"]))
    out = jax.nn.relu(_bn_ref(_conv_ref(out, params["conv2_w"], stride, 1), params["bn2"]))
    out = _bn_ref(_conv_ref(out, params["conv3_w"], 1, 0), params["bn3"])
    if "sc_w" in params:
        sc = _bn_ref(_conv_ref(x, params["sc_w"], stride, 0), params["sc_bn"])
    else:
        sc = x
    return jnp.transpose(jax.nn.relu(out + sc), (0, 3, 1, 2))


def init_bottleneck_params(key, in_planes, planes, stride):
    keys = iter(jax.random.split(key, 32))

    def conv_w(cout, cin, k):
        return 0.05 * jax.random.normal(next(keys), (cout, cin, k, k), jnp.float32)

    def bn_p(c):
        return dict(
            gamma=1.0 + 0.1 * jax.random.normal(next(keys), (c,), jnp.float32),
            beta=0.1 * jax.random.normal(next(keys), (c,), jnp.float32),
            mean=0.1 * jax.random.normal(next(keys), (c,), jnp.float32),
            var=1.0 + 0.1 * jnp.abs(jax.random.normal(next(keys), (c,), jnp.float32)),
        )

    p = dict(
        conv1_w=conv_w(planes, in_planes, 1), bn1=bn_p(planes),
        conv2_w=conv_w(planes, planes, 3), bn2=bn_p(planes),
        conv3_w=conv_w(EXPANSION * planes, planes, 1), bn3=bn_p(EXPANSION * planes),
    )
    if stride != 1 or in_planes != EXPANSION * planes:
        p["sc_w"] = conv_w(EXPANSION * planes, in_planes, 1)
        p["sc_bn"] = bn_p(EXPANSION * planes)
    return p


if __name__ == "__main__":
    key = jax.random.PRNGKey(0)
    kp, kx = jax.random.split(key)
    configs = [
        (16, 8, 1),   # conv shortcut, stride 1
        (16, 8, 2),   # conv shortcut, stride 2 (strided 3x3 in-kernel)
        (32, 8, 1),   # identity shortcut
    ]
    for in_planes, planes, stride in configs:
        x = jax.random.normal(kx, (2, in_planes, 16, 16), jnp.float32)   # NCHW
        params = init_bottleneck_params(kp, in_planes, planes, stride)
        prep = prepare_bottleneck(params, in_planes, planes)
        out = jax.block_until_ready(
            bottleneck_forward(x, prep, planes=planes, stride=stride))
        ref = jax.block_until_ready(bottleneck_ref(x, params, stride))
        ho = (16 - 1) // stride + 1
        expect = (2, EXPANSION * planes, ho, ho)
        assert out.shape == ref.shape == expect and out.dtype == jnp.float32
        err = float(jnp.max(jnp.abs(out - ref)))
        assert bool(jnp.allclose(out, ref, atol=4e-2, rtol=4e-2)), (
            f"in_planes={in_planes} planes={planes} stride={stride}: max err {err}")
    print("KERNEL_OK")
</pallas_src>

<mosaic_0001>
module attributes {stable_mosaic.version = 11 : i64} {
  func.func @_matmul_bn_kernel(%arg0: i32, %arg1: i32, %arg2: memref<256x128xbf16, #tpu.memory_space<vmem>>, %arg3: memref<128x128xbf16, #tpu.memory_space<vmem>>, %arg4: memref<1x128xf32, #tpu.memory_space<vmem>>, %arg5: memref<256x128xbf16, #tpu.memory_space<vmem>>) attributes {dimension_semantics = [#tpu.dimension_semantics<parallel>, #tpu.dimension_semantics<parallel>], iteration_bounds = array<i64: 2, 1>, scalar_prefetch = 0 : i64, scratch_operands = 0 : i64, tpu.core_type = #tpu.core_type<tc>, window_params = [{transform_indices = @transform_0, window_bounds = array<i64: 256, 128>}, {transform_indices = @transform_1, window_bounds = array<i64: 128, 128>}, {transform_indices = @transform_2, window_bounds = array<i64: 1, 128>}, {transform_indices = @transform_3, window_bounds = array<i64: 256, 128>}]} {
    %c0 = arith.constant 0 : index
    %c0_0 = arith.constant 0 : index
    %0 = vector.load %arg2[%c0, %c0_0] : memref<256x128xbf16, #tpu.memory_space<vmem>>, vector<256x128xbf16>
    %c0_1 = arith.constant 0 : index
    %c0_2 = arith.constant 0 : index
    %1 = vector.load %arg3[%c0_1, %c0_2] : memref<128x128xbf16, #tpu.memory_space<vmem>>, vector<128x128xbf16>
    %cst = arith.constant dense<0.000000e+00> : vector<256x128xf32>
    %2 = tpu.matmul %0, %1, %cst {dimension_numbers = #tpu.dot_dimension_numbers<[1], [0], [0], [1], [0, 0, 1, 1], [], []>} : vector<256x128xbf16>, vector<128x128xbf16>, vector<256x128xf32> -> vector<256x128xf32>
    %c0_3 = arith.constant 0 : index
    %c0_4 = arith.constant 0 : index
    %3 = vector.load %arg4[%c0_3, %c0_4] : memref<1x128xf32, #tpu.memory_space<vmem>>, vector<1x128xf32>
    %4 = vector.broadcast %3 : vector<1x128xf32> to vector<256x128xf32>
    %5 = arith.addf %2, %4 : vector<256x128xf32>
    %6 = arith.truncf %5 : vector<256x128xf32> to vector<256x128xbf16>
    %c0_5 = arith.constant 0 : index
    %c0_6 = arith.constant 0 : index
    %7 = vector.load %arg5[%c0_5, %c0_6] : memref<256x128xbf16, #tpu.memory_space<vmem>>, vector<256x128xbf16>
    tpu.vector_store %arg5[%c0_5, %c0_6], %6 {strides = array<i32>} : memref<256x128xbf16, #tpu.memory_space<vmem>>, vector<256x128xbf16>,
    return
  }
  func.func @transform_0(%arg0: i32, %arg1: i32) -> (i32, i32) {
    %c0_i32 = arith.constant 0 : i32
    %c0_i32_0 = arith.constant 0 : i32
    return %arg0, %c0_i32 : i32, i32
  }
  func.func @transform_1(%arg0: i32, %arg1: i32) -> (i32, i32) {
    %c0_i32 = arith.constant 0 : i32
    %c0_i32_0 = arith.constant 0 : i32
    return %c0_i32, %arg1 : i32, i32
  }
  func.func @transform_2(%arg0: i32, %arg1: i32) -> (i32, i32) {
    %c0_i32 = arith.constant 0 : i32
    %c0_i32_0 = arith.constant 0 : i32
    return %c0_i32, %arg1 : i32, i32
  }
  func.func @transform_3(%arg0: i32, %arg1: i32) -> (i32, i32) {
    %c0_i32 = arith.constant 0 : i32
    return %arg0, %arg1 : i32, i32
  }
}

module attributes {stable_mosaic.version = 11 : i64} {
  func.func @_matmul_bn_kernel(%arg0: i32, %arg1: i32, %arg2: memref<256x128xbf16, #tpu.memory_space<vmem>>, %arg3: memref<128x128xbf16, #tpu.memory_space<vmem>>, %arg4: memref<1x128xf32, #tpu.memory_space<vmem>>, %arg5: memref<256x128xbf16, #tpu.memory_space<vmem>>) attributes {dimension_semantics = [#tpu.dimension_semantics<parallel>, #tpu.dimension_semantics<parallel>], iteration_bounds = array<i64: 2, 1>, scalar_prefetch = 0 : i64, scratch_operands = 0 : i64, tpu.core_type = #tpu.core_type<tc>, window_params = [{transform_indices = @transform_0, window_bounds = array<i64: 256, 128>}, {transform_indices = @transform_1, window_bounds = array<i64: 128, 128>}, {transform_indices = @transform_2, window_bounds = array<i64: 1, 128>}, {transform_indices = @transform_3, window_bounds = array<i64: 256, 128>}]} {
    %c0 = arith.constant 0 : index
    %c0_0 = arith.constant 0 : index
    %0 = vector.load %arg2[%c0, %c0_0] : memref<256x128xbf16, #tpu.memory_space<vmem>>, vector<256x128xbf16>
    %c0_1 = arith.constant 0 : index
    %c0_2 = arith.constant 0 : index
    %1 = vector.load %arg3[%c0_1, %c0_2] : memref<128x128xbf16, #tpu.memory_space<vmem>>, vector<128x128xbf16>
    %cst = arith.constant dense<0.000000e+00> : vector<256x128xf32>
    %2 = tpu.matmul %0, %1, %cst {dimension_numbers = #tpu.dot_dimension_numbers<[1], [0], [0], [1], [0, 0, 1, 1], [], []>} : vector<256x128xbf16>, vector<128x128xbf16>, vector<256x128xf32> -> vector<256x128xf32>
    %c0_3 = arith.constant 0 : index
    %c0_4 = arith.constant 0 : index
    %3 = vector.load %arg4[%c0_3, %c0_4] : memref<1x128xf32, #tpu.memory_space<vmem>>, vector<1x128xf32>
    %4 = vector.broadcast %3 : vector<1x128xf32> to vector<256x128xf32>
    %5 = arith.addf %2, %4 : vector<256x128xf32>
    %cst_5 = arith.constant 0.000000e+00 : f32
    %6 = vector.broadcast %cst_5 : f32 to vector<256x128xf32>
    %7 = arith.maximumf %5, %6 : vector<256x128xf32>
    %8 = arith.truncf %7 : vector<256x128xf32> to vector<256x128xbf16>
    %c0_6 = arith.constant 0 : index
    %c0_7 = arith.constant 0 : index
    %9 = vector.load %arg5[%c0_6, %c0_7] : memref<256x128xbf16, #tpu.memory_space<vmem>>, vector<256x128xbf16>
    tpu.vector_store %arg5[%c0_6, %c0_7], %8 {strides = array<i32>} : memref<256x128xbf16, #tpu.memory_space<vmem>>, vector<256x128xbf16>,
    return
  }
  func.func @transform_0(%arg0: i32, %arg1: i32) -> (i32, i32) {
    %c0_i32 = arith.constant 0 : i32
    %c0_i32_0 = arith.constant 0 : i32
    return %arg0, %c0_i32 : i32, i32
  }
  func.func @transform_1(%arg0: i32, %arg1: i32) -> (i32, i32) {
    %c0_i32 = arith.constant 0 : i32
    %c0_i32_0 = arith.constant 0 : i32
    return %c0_i32, %arg1 : i32, i32
  }
  func.func @transform_2(%arg0: i32, %arg1: i32) -> (i32, i32) {
    %c0_i32 = arith.constant 0 : i32
    %c0_i32_0 = arith.constant 0 : i32
    return %c0_i32, %arg1 : i32, i32
  }
  func.func @transform_3(%arg0: i32, %arg1: i32) -> (i32, i32) {
    %c0_i32 = arith.constant 0 : i32
    return %arg0, %arg1 : i32, i32
  }
}

module attributes {stable_mosaic.version = 11 : i64} {
  func.func @_matmul_bn_res_kernel(%arg0: i32, %arg1: i32, %arg2: memref<256x128xbf16, #tpu.memory_space<vmem>>, %arg3: memref<128x128xbf16, #tpu.memory_space<vmem>>, %arg4: memref<1x128xf32, #tpu.memory_space<vmem>>, %arg5: memref<256x128xbf16, #tpu.memory_space<vmem>>, %arg6: memref<256x128xf32, #tpu.memory_space<vmem>>) attributes {dimension_semantics = [#tpu.dimension_semantics<parallel>, #tpu.dimension_semantics<parallel>], iteration_bounds = array<i64: 2, 1>, scalar_prefetch = 0 : i64, scratch_operands = 0 : i64, tpu.core_type = #tpu.core_type<tc>, window_params = [{transform_indices = @transform_0, window_bounds = array<i64: 256, 128>}, {transform_indices = @transform_1, window_bounds = array<i64: 128, 128>}, {transform_indices = @transform_2, window_bounds = array<i64: 1, 128>}, {transform_indices = @transform_3, window_bounds = array<i64: 256, 128>}, {transform_indices = @transform_4, window_bounds = array<i64: 256, 128>}]} {
    %c0 = arith.constant 0 : index
    %c0_0 = arith.constant 0 : index
    %0 = vector.load %arg2[%c0, %c0_0] : memref<256x128xbf16, #tpu.memory_space<vmem>>, vector<256x128xbf16>
    %c0_1 = arith.constant 0 : index
    %c0_2 = arith.constant 0 : index
    %1 = vector.load %arg3[%c0_1, %c0_2] : memref<128x128xbf16, #tpu.memory_space<vmem>>, vector<128x128xbf16>
    %cst = arith.constant dense<0.000000e+00> : vector<256x128xf32>
    %2 = tpu.matmul %0, %1, %cst {dimension_numbers = #tpu.dot_dimension_numbers<[1], [0], [0], [1], [0, 0, 1, 1], [], []>} : vector<256x128xbf16>, vector<128x128xbf16>, vector<256x128xf32> -> vector<256x128xf32>
    %c0_3 = arith.constant 0 : index
    %c0_4 = arith.constant 0 : index
    %3 = vector.load %arg4[%c0_3, %c0_4] : memref<1x128xf32, #tpu.memory_space<vmem>>, vector<1x128xf32>
    %4 = vector.broadcast %3 : vector<1x128xf32> to vector<256x128xf32>
    %5 = arith.addf %2, %4 : vector<256x128xf32>
    %c0_5 = arith.constant 0 : index
    %c0_6 = arith.constant 0 : index
    %6 = vector.load %arg5[%c0_5, %c0_6] : memref<256x128xbf16, #tpu.memory_space<vmem>>, vector<256x128xbf16>
    %7 = arith.extf %6 : vector<256x128xbf16> to vector<256x128xf32>
    %8 = arith.addf %5, %7 : vector<256x128xf32>
    %cst_7 = arith.constant 0.000000e+00 : f32
    %9 = vector.broadcast %cst_7 : f32 to vector<256x128xf32>
    %10 = arith.maximumf %8, %9 : vector<256x128xf32>
    %c0_8 = arith.constant 0 : index
    %c0_9 = arith.constant 0 : index
    %11 = vector.load %arg6[%c0_8, %c0_9] : memref<256x128xf32, #tpu.memory_space<vmem>>, vector<256x128xf32>
    tpu.vector_store %arg6[%c0_8, %c0_9], %10 {strides = array<i32>} : memref<256x128xf32, #tpu.memory_space<vmem>>, vector<256x128xf32>,
    return
  }
  func.func @transform_0(%arg0: i32, %arg1: i32) -> (i32, i32) {
    %c0_i32 = arith.constant 0 : i32
    %c0_i32_0 = arith.constant 0 : i32
    return %arg0, %c0_i32 : i32, i32
  }
  func.func @transform_1(%arg0: i32, %arg1: i32) -> (i32, i32) {
    %c0_i32 = arith.constant 0 : i32
    %c0_i32_0 = arith.constant 0 : i32
    return %c0_i32, %arg1 : i32, i32
  }
  func.func @transform_2(%arg0: i32, %arg1: i32) -> (i32, i32) {
    %c0_i32 = arith.constant 0 : i32
    %c0_i32_0 = arith.constant 0 : i32
    return %c0_i32, %arg1 : i32, i32
  }
  func.func @transform_3(%arg0: i32, %arg1: i32) -> (i32, i32) {
    %c0_i32 = arith.constant 0 : i32
    return %arg0, %arg1 : i32, i32
  }
  func.func @transform_4(%arg0: i32, %arg1: i32) -> (i32, i32) {
    %c0_i32 = arith.constant 0 : i32
    return %arg0, %arg1 : i32, i32
  }
}

module attributes {stable_mosaic.version = 11 : i64} {
  func.func @_conv3x3_kernel(%arg0: i32, %arg1: i32, %arg2: memref<1x18x18x128xbf16, #tpu.memory_space<vmem>>, %arg3: memref<9x128x128xbf16, #tpu.memory_space<vmem>>, %arg4: memref<1x128xf32, #tpu.memory_space<vmem>>, %arg5: memref<1x128x128xbf16, #tpu.memory_space<vmem>>) attributes {dimension_semantics = [#tpu.dimension_semantics<parallel>, #tpu.dimension_semantics<parallel>], iteration_bounds = array<i64: 2, 2>, scalar_prefetch = 0 : i64, scratch_operands = 0 : i64, tpu.core_type = #tpu.core_type<tc>, window_params = [{transform_indices = @transform_0, window_bounds = array<i64: 1, 18, 18, 128>}, {pipeline_mode = #tpu.pipeline_mode<synchronous>, transform_indices = @transform_1, window_bounds = array<i64: 9, 128, 128>}, {pipeline_mode = #tpu.pipeline_mode<synchronous>, transform_indices = @transform_2, window_bounds = array<i64: 1, 128>}, {transform_indices = @transform_3, window_bounds = array<i64: 1, 128, 128>}]} {
    %c8_i32 = arith.constant 8 : i32
    %0 = arith.muli %arg1, %c8_i32 : i32
    %c0_i32 = arith.constant 0 : i32
    %1 = arith.addi %0, %c0_i32 : i32
    %c0 = arith.constant 0 : index
    %2 = arith.index_cast %1 : i32 to index
    %c0_0 = arith.constant 0 : index
    %c0_1 = arith.constant 0 : index
    %3 = vector.load %arg2[%c0, %2, %c0_0, %c0_1] : memref<1x18x18x128xbf16, #tpu.memory_space<vmem>>, vector<1x8x16x128xbf16>
    %4 = vector.shape_cast %3 : vector<1x8x16x128xbf16> to vector<8x16x128xbf16>
    %5 = vector.shape_cast %4 : vector<8x16x128xbf16> to vector<128x128xbf16>
    %c0_2 = arith.constant 0 : index
    %c0_3 = arith.constant 0 : index
    %c0_4 = arith.constant 0 : index
    %6 = vector.load %arg3[%c0_2, %c0_3, %c0_4] : memref<9x128x128xbf16, #tpu.memory_space<vmem>>, vector<1x128x128xbf16>
    %7 = vector.shape_cast %6 : vector<1x128x128xbf16> to vector<128x128xbf16>
    %cst = arith.constant dense<0.000000e+00> : vector<128x128xf32>
    %8 = tpu.matmul %5, %7, %cst {dimension_numbers = #tpu.dot_dimension_numbers<[1], [0], [0], [1], [0, 0, 1, 1], [], []>} : vector<128x128xbf16>, vector<128x128xbf16>, vector<128x128xf32> -> vector<128x128xf32>
    %c0_i32_5 = arith.constant 0 : i32
    %9 = arith.addi %0, %c0_i32_5 : i32
    %c0_6 = arith.constant 0 : index
    %10 = arith.index_cast %9 : i32 to index
    %c1 = arith.constant 1 : index
    %c0_7 = arith.constant 0 : index
    %11 = vector.load %arg2[%c0_6, %10, %c1, %c0_7] : memref<1x18x18x128xbf16, #tpu.memory_space<vmem>>, vector<1x8x16x128xbf16>
    %12 = vector.shape_cast %11 : vector<1x8x16x128xbf16> to vector<8x16x128xbf16>
    %13 = vector.shape_cast %12 : vector<8x16x128xbf16> to vector<128x128xbf16>
    %c1_8 = arith.constant 1 : index
    %c0_9 = arith.constant 0 : index
    %c0_10 = arith.constant 0 : index
    %14 = vector.load %arg3[%c1_8, %c0_9, %c0_10] : memref<9x128x128xbf16, #tpu.memory_space<vmem>>, vector<1x128x128xbf16>
    %15 = vector.shape_cast %14 : vector<1x128x128xbf16> to vector<128x128xbf16>
    %cst_11 = arith.constant dense<0.000000e+00> : vector<128x128xf32>
    %16 = tpu.matmul %13, %15, %cst_11 {dimension_numbers = #tpu.dot_dimension_numbers<[1], [0], [0], [1], [0, 0, 1, 1], [], []>} : vector<128x128xbf16>, vector<128x128xbf16>, vector<128x128xf32> -> vector<128x128xf32>
    %17 = arith.addf %8, %16 : vector<128x128xf32>
    %c0_i32_12 = arith.constant 0 : i32
    %18 = arith.addi %0, %c0_i32_12 : i32
    %c0_13 = arith.constant 0 : index
    %19 = arith.index_cast %18 : i32 to index
    %c2 = arith.constant 2 : index
    %c0_14 = arith.constant 0 : index
    %20 = vector.load %arg2[%c0_13, %19, %c2, %c0_14] : memref<1x18x18x128xbf16, #tpu.memory_space<vmem>>, vector<1x8x16x128xbf16>
    %21 = vector.shape_cast %20 : vector<1x8x16x128xbf16> to vector<8x16x128xbf16>
    %22 = vector.shape_cast %21 : vector<8x16x128xbf16> to vector<128x128xbf16>
    %c2_15 = arith.constant 2 : index
    %c0_16 = arith.constant 0 : index
    %c0_17 = arith.constant 0 : index
    %23 = vector.load %arg3[%c2_15, %c0_16, %c0_17] : memref<9x128x128xbf16, #tpu.memory_space<vmem>>, vector<1x128x128xbf16>
    %24 = vector.shape_cast %23 : vector<1x128x128xbf16> to vector<128x128xbf16>
    %cst_18 = arith.constant dense<0.000000e+00> : vector<128x128xf32>
    %25 = tpu.matmul %22, %24, %cst_18 {dimension_numbers = #tpu.dot_dimension_numbers<[1], [0], [0], [1], [0, 0, 1, 1], [], []>} : vector<128x128xbf16>, vector<128x128xbf16>, vector<128x128xf32> -> vector<128x128xf32>
    %26 = arith.addf %17, %25 : vector<128x128xf32>
    %c1_i32 = arith.constant 1 : i32
    %27 = arith.addi %0, %c1_i32 : i32
    %c0_19 = arith.constant 0 : index
    %28 = arith.index_cast %27 : i32 to index
    %c0_20 = arith.constant 0 : index
    %c0_21 = arith.constant 0 : index
    %29 = vector.load %arg2[%c0_19, %28, %c0_20, %c0_21] : memref<1x18x18x128xbf16, #tpu.memory_space<vmem>>, vector<1x8x16x128xbf16>
    %30 = vector.shape_cast %29 : vector<1x8x16x128xbf16> to vector<8x16x128xbf16>
    %31 = vector.shape_cast %30 : vector<8x16x128xbf16> to vector<128x128xbf16>
    %c3 = arith.constant 3 : index
    %c0_22 = arith.constant 0 : index
    %c0_23 = arith.constant 0 : index
    %32 = vector.load %arg3[%c3, %c0_22, %c0_23] : memref<9x128x128xbf16, #tpu.memory_space<vmem>>, vector<1x128x128xbf16>
    %33 = vector.shape_cast %32 : vector<1x128x128xbf16> to vector<128x128xbf16>
    %cst_24 = arith.constant dense<0.000000e+00> : vector<128x128xf32>
    %34 = tpu.matmul %31, %33, %cst_24 {dimension_numbers = #tpu.dot_dimension_numbers<[1], [0], [0], [1], [0, 0, 1, 1], [], []>} : vector<128x128xbf16>, vector<128x128xbf16>, vector<128x128xf32> -> vector<128x128xf32>
    %35 = arith.addf %26, %34 : vector<128x128xf32>
    %c1_i32_25 = arith.constant 1 : i32
    %36 = arith.addi %0, %c1_i32_25 : i32
    %c0_26 = arith.constant 0 : index
    %37 = arith.index_cast %36 : i32 to index
    %c1_27 = arith.constant 1 : index
    %c0_28 = arith.constant 0 : index
    %38 = vector.load %arg2[%c0_26, %37, %c1_27, %c0_28] : memref<1x18x18x128xbf16, #tpu.memory_space<vmem>>, vector<1x8x16x128xbf16>
    %39 = vector.shape_cast %38 : vector<1x8x16x128xbf16> to vector<8x16x128xbf16>
    %40 = vector.shape_cast %39 : vector<8x16x128xbf16> to vector<128x128xbf16>
    %c4 = arith.constant 4 : index
    %c0_29 = arith.constant 0 : index
    %c0_30 = arith.constant 0 : index
    %41 = vector.load %arg3[%c4, %c0_29, %c0_30] : memref<9x128x128xbf16, #tpu.memory_space<vmem>>, vector<1x128x128xbf16>
    %42 = vector.shape_cast %41 : vector<1x128x128xbf16> to vector<128x128xbf16>
    %cst_31 = arith.constant dense<0.000000e+00> : vector<128x128xf32>
    %43 = tpu.matmul %40, %42, %cst_31 {dimension_numbers = #tpu.dot_dimension_numbers<[1], [0], [0], [1], [0, 0, 1, 1], [], []>} : vector<128x128xbf16>, vector<128x128xbf16>, vector<128x128xf32> -> vector<128x128xf32>
    %44 = arith.addf %35, %43 : vector<128x128xf32>
    %c1_i32_32 = arith.constant 1 : i32
    %45 = arith.addi %0, %c1_i32_32 : i32
    %c0_33 = arith.constant 0 : index
    %46 = arith.index_cast %45 : i32 to index
    %c2_34 = arith.constant 2 : index
    %c0_35 = arith.constant 0 : index
    %47 = vector.load %arg2[%c0_33, %46, %c2_34, %c0_35] : memref<1x18x18x128xbf16, #tpu.memory_space<vmem>>, vector<1x8x16x128xbf16>
    %48 = vector.shape_cast %47 : vector<1x8x16x128xbf16> to vector<8x16x128xbf16>
    %49 = vector.shape_cast %48 : vector<8x16x128xbf16> to vector<128x128xbf16>
    %c5 = arith.constant 5 : index
    %c0_36 = arith.constant 0 : index
    %c0_37 = arith.constant 0 : index
    %50 = vector.load %arg3[%c5, %c0_36, %c0_37] : memref<9x128x128xbf16, #tpu.memory_space<vmem>>, vector<1x128x128xbf16>
    %51 = vector.shape_cast %50 : vector<1x128x128xbf16> to vector<128x128xbf16>
    %cst_38 = arith.constant dense<0.000000e+00> : vector<128x128xf32>
    %52 = tpu.matmul %49, %51, %cst_38 {dimension_numbers = #tpu.dot_dimension_numbers<[1], [0], [0], [1], [0, 0, 1, 1], [], []>} : vector<128x128xbf16>, vector<128x128xbf16>, vector<128x128xf32> -> vector<128x128xf32>
    %53 = arith.addf %44, %52 : vector<128x128xf32>
    %c2_i32 = arith.constant 2 : i32
    %54 = arith.addi %0, %c2_i32 : i32
    %c0_39 = arith.constant 0 : index
    %55 = arith.index_cast %54 : i32 to index
    %c0_40 = arith.constant 0 : index
    %c0_41 = arith.constant 0 : index
    %56 = vector.load %arg2[%c0_39, %55, %c0_40, %c0_41] : memref<1x18x18x128xbf16, #tpu.memory_space<vmem>>, vector<1x8x16x128xbf16>
    %57 = vector.shape_cast %56 : vector<1x8x16x128xbf16> to vector<8x16x128xbf16>
    %58 = vector.shape_cast %57 : vector<8x16x128xbf16> to vector<128x128xbf16>
    %c6 = arith.constant 6 : index
    %c0_42 = arith.constant 0 : index
    %c0_43 = arith.constant 0 : index
    %59 = vector.load %arg3[%c6, %c0_42, %c0_43] : memref<9x128x128xbf16, #tpu.memory_space<vmem>>, vector<1x128x128xbf16>
    %60 = vector.shape_cast %59 : vector<1x128x128xbf16> to vector<128x128xbf16>
    %cst_44 = arith.constant dense<0.000000e+00> : vector<128x128xf32>
    %61 = tpu.matmul %58, %60, %cst_44 {dimension_numbers = #tpu.dot_dimension_numbers<[1], [0], [0], [1], [0, 0, 1, 1], [], []>} : vector<128x128xbf16>, vector<128x128xbf16>, vector<128x128xf32> -> vector<128x128xf32>
    %62 = arith.addf %53, %61 : vector<128x128xf32>
    %c2_i32_45 = arith.constant 2 : i32
    %63 = arith.addi %0, %c2_i32_45 : i32
    %c0_46 = arith.constant 0 : index
    %64 = arith.index_cast %63 : i32 to index
    %c1_47 = arith.constant 1 : index
    %c0_48 = arith.constant 0 : index
    %65 = vector.load %arg2[%c0_46, %64, %c1_47, %c0_48] : memref<1x18x18x128xbf16, #tpu.memory_space<vmem>>, vector<1x8x16x128xbf16>
    %66 = vector.shape_cast %65 : vector<1x8x16x128xbf16> to vector<8x16x128xbf16>
    %67 = vector.shape_cast %66 : vector<8x16x128xbf16> to vector<128x128xbf16>
    %c7 = arith.constant 7 : index
    %c0_49 = arith.constant 0 : index
    %c0_50 = arith.constant 0 : index
    %68 = vector.load %arg3[%c7, %c0_49, %c0_50] : memref<9x128x128xbf16, #tpu.memory_space<vmem>>, vector<1x128x128xbf16>
    %69 = vector.shape_cast %68 : vector<1x128x128xbf16> to vector<128x128xbf16>
    %cst_51 = arith.constant dense<0.000000e+00> : vector<128x128xf32>
    %70 = tpu.matmul %67, %69, %cst_51 {dimension_numbers = #tpu.dot_dimension_numbers<[1], [0], [0], [1], [0, 0, 1, 1], [], []>} : vector<128x128xbf16>, vector<128x128xbf16>, vector<128x128xf32> -> vector<128x128xf32>
    %71 = arith.addf %62, %70 : vector<128x128xf32>
    %c2_i32_52 = arith.constant 2 : i32
    %72 = arith.addi %0, %c2_i32_52 : i32
    %c0_53 = arith.constant 0 : index
    %73 = arith.index_cast %72 : i32 to index
    %c2_54 = arith.constant 2 : index
    %c0_55 = arith.constant 0 : index
    %74 = vector.load %arg2[%c0_53, %73, %c2_54, %c0_55] : memref<1x18x18x128xbf16, #tpu.memory_space<vmem>>, vector<1x8x16x128xbf16>
    %75 = vector.shape_cast %74 : vector<1x8x16x128xbf16> to vector<8x16x128xbf16>
    %76 = vector.shape_cast %75 : vector<8x16x128xbf16> to vector<128x128xbf16>
    %c8 = arith.constant 8 : index
    %c0_56 = arith.constant 0 : index
    %c0_57 = arith.constant 0 : index
    %77 = vector.load %arg3[%c8, %c0_56, %c0_57] : memref<9x128x128xbf16, #tpu.memory_space<vmem>>, vector<1x128x128xbf16>
    %78 = vector.shape_cast %77 : vector<1x128x128xbf16> to vector<128x128xbf16>
    %cst_58 = arith.constant dense<0.000000e+00> : vector<128x128xf32>
    %79 = tpu.matmul %76, %78, %cst_58 {dimension_numbers = #tpu.dot_dimension_numbers<[1], [0], [0], [1], [0, 0, 1, 1], [], []>} : vector<128x128xbf16>, vector<128x128xbf16>, vector<128x128xf32> -> vector<128x128xf32>
    %80 = arith.addf %71, %79 : vector<128x128xf32>
    %c0_59 = arith.constant 0 : index
    %c0_60 = arith.constant 0 : index
    %81 = vector.load %arg4[%c0_59, %c0_60] : memref<1x128xf32, #tpu.memory_space<vmem>>, vector<1x128xf32>
    %82 = vector.broadcast %81 : vector<1x128xf32> to vector<128x128xf32>
    %83 = arith.addf %80, %82 : vector<128x128xf32>
    %cst_61 = arith.constant 0.000000e+00 : f32
    %84 = vector.broadcast %cst_61 : f32 to vector<128x128xf32>
    %85 = arith.maximumf %83, %84 : vector<128x128xf32>
    %86 = arith.truncf %85 : vector<128x128xf32> to vector<128x128xbf16>
    %c0_62 = arith.constant 0 : index
    %c0_63 = arith.constant 0 : index
    %c0_64 = arith.constant 0 : index
    %87 = vector.load %arg5[%c0_62, %c0_63, %c0_64] : memref<1x128x128xbf16, #tpu.memory_space<vmem>>, vector<1x128x128xbf16>
    %88 = vector.shape_cast %87 : vector<1x128x128xbf16> to vector<128x128xbf16>
    %89 = vector.shape_cast %86 : vector<128x128xbf16> to vector<1x128x128xbf16>
    tpu.vector_store %arg5[%c0_62, %c0_63, %c0_64], %89 {strides = array<i32>} : memref<1x128x128xbf16, #tpu.memory_space<vmem>>, vector<1x128x128xbf16>,
    return
  }
  func.func @transform_0(%arg0: i32, %arg1: i32) -> (i32, i32, i32, i32) {
    %c0_i32 = arith.constant 0 : i32
    %c0_i32_0 = arith.constant 0 : i32
    %c0_i32_1 = arith.constant 0 : i32
    %c0_i32_2 = arith.constant 0 : i32
    return %arg0, %c0_i32, %c0_i32_0, %c0_i32_1 : i32, i32, i32, i32
  }
  func.func @transform_1(%arg0: i32, %arg1: i32) -> (i32, i32, i32) {
    %c0_i32 = arith.constant 0 : i32
    %c0_i32_0 = arith.constant 0 : i32
    %c0_i32_1 = arith.constant 0 : i32
    %c0_i32_2 = arith.constant 0 : i32
    return %c0_i32, %c0_i32_0, %c0_i32_1 : i32, i32, i32
  }
  func.func @transform_2(%arg0: i32, %arg1: i32) -> (i32, i32) {
    %c0_i32 = arith.constant 0 : i32
    %c0_i32_0 = arith.constant 0 : i32
    %c0_i32_1 = arith.constant 0 : i32
    return %c0_i32, %c0_i32_0 : i32, i32
  }
  func.func @transform_3(%arg0: i32, %arg1: i32) -> (i32, i32, i32) {
    %c0_i32 = arith.constant 0 : i32
    %c0_i32_0 = arith.constant 0 : i32
    return %arg0, %arg1, %c0_i32 : i32, i32, i32
  }
}

</mosaic_0001>

<llo_original>
// kernel: bottleneck_forward.4
$region0: #{bottleneck_forward.4}
  #allocation0 [shape = 'u32[]', space=smem, size = 0x4, offset = 0x4, fixed_abs, tag = 'smem constant byte address 0x4 - core index']
  #allocation1 [shape = 'u32[72,128]{1,0:T(1,128)}', space=vmem, size = 0x9000, scoped, tag = 'internal scratch']
  %s0 = inlined_call_operand.vmem [shape: bf16[512,128], index: 0, kind: input, shape index: {}]
  %s1 = inlined_call_operand.vmem [shape: bf16[128,128], index: 1, kind: input, shape index: {}]
  %s2 = inlined_call_operand.vmem [shape: f32[1,128], index: 2, kind: input, shape index: {}]
  %s3 = inlined_call_operand.vmem [shape: bf16[512,128], index: 3, kind: output, shape index: {}]
  %s4 = sld [smem:[#allocation0]]
  $region45: #{bottleneck_forward.4} parent=0
    _
  %s6 = ssub.s32 1, %s4
  %s7 = scalar_select 0, %s6, %s4
  loop: start=0, step=1, limit=4
  $region2: #{bottleneck_forward.4} parent=0 // loop_pre_header
    _
  $region3: #{bottleneck_forward.4} parent=0 // loop_header
    %s9 = sphi 0, %s13
    %p10 = scmp.ge.s32.totalorder %s9, 4
    %s16 = sphi 0, %s28
    %s17 = sphi 0, %s24
    %s18 = sphi 0, %s16
    %s19 = sphi 0, %s17
    %s20 = sphi 0, %s18
    %s21 = sphi 0, %s19
    %s31 = sphi 0, %s33
    %s34 = sphi 0, %s31
    %s35 = sphi 0, %s34
    %s51 = sphi 0, %s35
    %s57 = sphi 0, %s59
    %s60 = sphi 0, %s57
    %s61 = sphi 0, %s60
    %s77 = sphi 0, %s61
    %s83 = sphi 0, %s85
    %s86 = sphi 0, %s83
    %s87 = sphi 0, %s86
    %s103 = sphi 0, %s87
    %s111 = sphi 0, %s113
    %s114 = sphi 0, %s111
    %s115 = sphi 0, %s114
    %s131 = sphi 0, %s115
  $region4: #{bottleneck_forward.4} parent=0 // loop_header_branch
    %12 = sbr.rel (%p10) target = $region8
  $region5: #{bottleneck_forward.4} parent=0 // loop_body
    %s14 = ssub.s32 %s9, 1
    %s15 = ssub.s32 %s9, 2
    %s22 = sadd.s32 1, %s17
    %p23 = scmp.ge.s32.totalorder %s22, 1
    %s24 = scalar_select %p23, 0, %s22
    %s25 = sadd.s32 1, %s16
    %s26 = scalar_select %p23, %s25, %s16
    %p27 = scmp.ge.s32.totalorder %s26, 2
    %s28 = scalar_select %p27, 0, %s26
    %s29 = ssub.s32 %s16, %s28
    %p30 = scmp.eq.s32.totalorder %s29, 0
    %s32 = sadd.s32 %s31, 1
    %s33 = scalar_select %p30, %s31, %s32
    %p36 = pneg %p30
    %p37 = scmp.eq.s32.totalorder %s9, 1
    %p38 = por %p36, %p37
    %p39 = scmp.ne.s32.totalorder %s31, %s34
    %p40 = scmp.eq.s32.totalorder %s9, 0
    %p41 = por %p39, %p40
    %p42 = scmp.ne.s32.totalorder %s31, %s34
    %p43 = scmp.eq.s32.totalorder %s14, 1
    %p44 = por %p42, %p43
    %p45 = scmp.ne.s32.totalorder %s34, %s35
    %p46 = scmp.eq.s32.totalorder %s14, 0
    %p47 = por %p45, %p46
    %p48 = scmp.ne.s32.totalorder %s34, %s35
    %p49 = scmp.eq.s32.totalorder %s15, 1
    %p50 = por %p48, %p49
    %p52 = scmp.ne.s32.totalorder %s35, %s51
    %p53 = scmp.eq.s32.totalorder %s15, 0
    %p54 = por %p52, %p53
    %s55 = ssub.s32 %s17, %s24
    %p56 = scmp.eq.s32.totalorder %s55, 0
    %s58 = sadd.s32 %s57, 1
    %s59 = scalar_select %p56, %s57, %s58
    %p62 = pneg %p56
    %p63 = scmp.eq.s32.totalorder %s9, 1
    %p64 = por %p62, %p63
    %p65 = scmp.ne.s32.totalorder %s57, %s60
    %p66 = scmp.eq.s32.totalorder %s9, 0
    %p67 = por %p65, %p66
    %p68 = scmp.ne.s32.totalorder %s57, %s60
    %p69 = scmp.eq.s32.totalorder %s14, 1
    %p70 = por %p68, %p69
    %p71 = scmp.ne.s32.totalorder %s60, %s61
    %p72 = scmp.eq.s32.totalorder %s14, 0
    %p73 = por %p71, %p72
    %p74 = scmp.ne.s32.totalorder %s60, %s61
    %p75 = scmp.eq.s32.totalorder %s15, 1
    %p76 = por %p74, %p75
    %p78 = scmp.ne.s32.totalorder %s61, %s77
    %p79 = scmp.eq.s32.totalorder %s15, 0
    %p80 = por %p78, %p79
    %s81 = ssub.s32 %s17, %s24
    %p82 = scmp.eq.s32.totalorder %s81, 0
    %s84 = sadd.s32 %s83, 1
    %s85 = scalar_select %p82, %s83, %s84
    %p88 = pneg %p82
    %p89 = scmp.eq.s32.totalorder %s9, 1
    %p90 = por %p88, %p89
    %p91 = scmp.ne.s32.totalorder %s83, %s86
    %p92 = scmp.eq.s32.totalorder %s9, 0
    %p93 = por %p91, %p92
    %p94 = scmp.ne.s32.totalorder %s83, %s86
    %p95 = scmp.eq.s32.totalorder %s14, 1
    %p96 = por %p94, %p95
    %p97 = scmp.ne.s32.totalorder %s86, %s87
    %p98 = scmp.eq.s32.totalorder %s14, 0
    %p99 = por %p97, %p98
    %p100 = scmp.ne.s32.totalorder %s86, %s87
    %p101 = scmp.eq.s32.totalorder %s15, 1
    %p102 = por %p100, %p101
    %p104 = scmp.ne.s32.totalorder %s87, %s103
    %p105 = scmp.eq.s32.totalorder %s15, 0
    %p106 = por %p104, %p105
    %s107 = ssub.s32 %s16, %s28
    %s108 = ssub.s32 %s17, %s24
    %s109 = sor.u32 %s107, %s108
    %p110 = scmp.eq.s32.totalorder %s109, 0
    %s112 = sadd.s32 %s111, 1
    %s113 = scalar_select %p110, %s111, %s112
    %p116 = pneg %p110
    %p117 = scmp.eq.s32.totalorder %s9, 1
    %p118 = por %p116, %p117
    %p119 = scmp.ne.s32.totalorder %s111, %s114
    %p120 = scmp.eq.s32.totalorder %s9, 0
    %p121 = por %p119, %p120
    %p122 = scmp.ne.s32.totalorder %s111, %s114
    %p123 = scmp.eq.s32.totalorder %s14, 1
    %p124 = por %p122, %p123
    %p125 = scmp.ne.s32.totalorder %s114, %s115
    %p126 = scmp.eq.s32.totalorder %s14, 0
    %p127 = por %p125, %p126
    %p128 = scmp.ne.s32.totalorder %s114, %s115
    %p129 = scmp.eq.s32.totalorder %s15, 1
    %p130 = por %p128, %p129
    %p132 = scmp.ne.s32.totalorder %s115, %s131
    %p133 = scmp.eq.s32.totalorder %s15, 0
    %p134 = por %p132, %p133
    %p135 = scmp.le.s32.totalorder 1, %s9
    %p136 = scmp.lt.s32.totalorder %s9, 3
    %p137 = pnand %p135, %p136
    %p138 = pneg %p137
    // Predicated region
    $region9: #{bottleneck_forward.4} parent=5 // pred_check
      _
    $region10: #{bottleneck_forward.4} parent=5 // pred_check_branch
      %140 = sbr.rel (%p137) target = $region12
    $region11: #{bottleneck_forward.4} parent=5 // pred_region
      %s141 = ssub.s32 %s9, 1
      // Predicated region
      $region13: #{bottleneck_forward.4} parent=11 // pred_check
        %p142 = pneg %p73
      $region14: #{bottleneck_forward.4} parent=11 // pred_check_branch
        %144 = sbr.rel (%p142) target = $region16
      $region15: #{bottleneck_forward.4} parent=11 // pred_region
        %p145 = scmp.lt.s32.totalorder %s19, 0
        %s146 = scalar_select %p145, %s19, 0
        %s147 = smul.addr %s146, 4
        %s148 = scalar_lea.vmem %s1, %s147
      $region16: #{bottleneck_forward.4} parent=11 // pred_fallthru
        _
      // Predicated region
      $region17: #{bottleneck_forward.4} parent=11 // pred_check
        %p149 = pneg %p99
      $region18: #{bottleneck_forward.4} parent=11 // pred_check_branch
        %151 = sbr.rel (%p149) target = $region20
      $region19: #{bottleneck_forward.4} parent=11 // pred_region
        %p152 = scmp.lt.s32.totalorder %s19, 0
        %s153 = scalar_select %p152, %s19, 0
        %s154 = scalar_lea.vmem %s2, %s153
      $region20: #{bottleneck_forward.4} parent=11 // pred_fallthru
        _
    $region12: #{bottleneck_forward.4} parent=5 // pred_fallthru
      _
    %p155 = scmp.lt.s32.totalorder %s9, 2
    // Predicated region
    $region21: #{bottleneck_forward.4} parent=5 // pred_check
      %p156 = pneg %p155
    $region22: #{bottleneck_forward.4} parent=5 // pred_check_branch
      %158 = sbr.rel (%p156) target = $region24
    $region23: #{bottleneck_forward.4} parent=5 // pred_region
      // Predicated region
      $region25: #{bottleneck_forward.4} parent=23 // pred_check
        %p159 = pneg %p41
      $region26: #{bottleneck_forward.4} parent=23 // pred_check_branch
        %161 = sbr.rel (%p159) target = $region28
      $region27: #{bottleneck_forward.4} parent=23 // pred_region
        %s162 = smul.u32 32, %s16
        %p163 = scmp.lt.s32.totalorder %s162, 63
        %s164 = scalar_select %p163, %s162, 63
        %s165 = smul.addr %s164, 4
        %s166 = scalar_lea.vmem %s0, %s165
        %s167 = smul.u32 32, %s16
      $region28: #{bottleneck_forward.4} parent=23 // pred_fallthru
        _
    $region24: #{bottleneck_forward.4} parent=5 // pred_fallthru
      _
    %p168 = scmp.le.s32.totalorder 1, %s9
    %p169 = scmp.lt.s32.totalorder %s9, 3
    %p170 = pnand %p168, %p169
    %p171 = pneg %p170
    // Predicated region
    $region29: #{bottleneck_forward.4} parent=5 // pred_check
      _
    $region30: #{bottleneck_forward.4} parent=5 // pred_check_branch
      %173 = sbr.rel (%p170) target = $region32
    $region31: #{bottleneck_forward.4} parent=5 // pred_region
      %s174 = ssub.s32 %s9, 1
      %s175 = smul.u32 32, %s18
      %p176 = scmp.lt.s32.totalorder %s175, 63
      %s177 = scalar_select %p176, %s175, 63
      %s178 = smul.addr %s177, 4
      %s179 = scalar_lea.vmem %s0, %s178
      %p180 = pneg %p47
      %p181 = pneg %p44
      %p182 = scmp.lt.s32.totalorder %s19, 0
      %s183 = scalar_select %p182, %s19, 0
      %s184 = smul.addr %s183, 4
      %s185 = scalar_lea.vmem %s1, %s184
      %p186 = pneg %p73
      %p187 = pneg %p70
      %p188 = scmp.lt.s32.totalorder %s19, 0
      %s189 = scalar_select %p188, %s19, 0
      %s190 = scalar_lea.vmem %s2, %s189
      %p191 = pneg %p99
      %p192 = pneg %p96
      %p193 = pneg %p127
      %p194 = pneg %p124
      %s195 = smul.u32 32, %s18
      %p196 = scmp.lt.s32.totalorder %s195, 63
      %s197 = scalar_select %p196, %s195, 63
      %p198 = scmp.lt.s32.totalorder %s19, 0
      %s199 = scalar_select %p198, %s19, 0
      %s200 = sadd.s32 %s199, %s197
      %s201 = smul.addr %s200, 4
      %s202 = scalar_lea.vmem %s3, %s201
      %s203 = smul.u32 32, %s18
      %p204 = scmp.lt.s32.totalorder %s203, 63
      %s205 = scalar_select %p204, %s203, 63
      %s206 = smul.addr %s205, 4
      %s207 = scalar_lea.vmem %s0, %s206
      %s208 = smul.u32 32, %s18
      %p209 = scmp.lt.s32.totalorder %s19, 0
      %s210 = scalar_select %p209, %s19, 0
      %s211 = smul.addr %s210, 4
      %s212 = scalar_lea.vmem %s1, %s211
      %p213 = scmp.lt.s32.totalorder %s19, 0
      %s214 = scalar_select %p213, %s19, 0
      %s215 = scalar_lea.vmem %s2, %s214
      %s216 = smul.u32 32, %s18
      %p217 = scmp.lt.s32.totalorder %s216, 63
      %s218 = scalar_select %p217, %s216, 63
      %p219 = scmp.lt.s32.totalorder %s19, 0
      %s220 = scalar_select %p219, %s19, 0
      %s221 = sadd.s32 %s220, %s218
      %s222 = smul.addr %s221, 4
      %s223 = scalar_lea.vmem %s3, %s222
      %s224 = smul.u32 32, %s18
      %v225 = vld [vmem:[%s207] sm:$0xf]
      %v226 = vld [vmem:[%s207 + $0x4] sm:$0xf]
      %v227 = vld [vmem:[%s207 + $0x8] sm:$0xf]
      %v228 = vld [vmem:[%s207 + $0xc] sm:$0xf]
      %v229 = vld [vmem:[%s207 + $0x10] sm:$0xf]
      %v230 = vld [vmem:[%s207 + $0x14] sm:$0xf]
      %v231 = vld [vmem:[%s207 + $0x18] sm:$0xf]
      %v232 = vld [vmem:[%s207 + $0x1c] sm:$0xf]
      %v233 = vld [vmem:[%s207 + $0x20] sm:$0xf]
      %v234 = vld [vmem:[%s207 + $0x24] sm:$0xf]
      %v235 = vld [vmem:[%s207 + $0x28] sm:$0xf]
      %v236 = vld [vmem:[%s207 + $0x2c] sm:$0xf]
      %v237 = vld [vmem:[%s207 + $0x30] sm:$0xf]
      %v238 = vld [vmem:[%s207 + $0x34] sm:$0xf]
      %v239 = vld [vmem:[%s207 + $0x38] sm:$0xf]
      %v240 = vld [vmem:[%s207 + $0x3c] sm:$0xf]
      %v241 = vld [vmem:[%s207 + $0x40] sm:$0xf]
      %v242 = vld [vmem:[%s207 + $0x44] sm:$0xf]
      %v243 = vld [vmem:[%s207 + $0x48] sm:$0xf]
      %v244 = vld [vmem:[%s207 + $0x4c] sm:$0xf]
      %v245 = vld [vmem:[%s207 + $0x50] sm:$0xf]
      %v246 = vld [vmem:[%s207 + $0x54] sm:$0xf]
      %v247 = vld [vmem:[%s207 + $0x58] sm:$0xf]
      %v248 = vld [vmem:[%s207 + $0x5c] sm:$0xf]
      %v249 = vld [vmem:[%s207 + $0x60] sm:$0xf]
      %v250 = vld [vmem:[%s207 + $0x64] sm:$0xf]
      %v251 = vld [vmem:[%s207 + $0x68] sm:$0xf]
      %v252 = vld [vmem:[%s207 + $0x6c] sm:$0xf]
      %v253 = vld [vmem:[%s207 + $0x70] sm:$0xf]
      %v254 = vld [vmem:[%s207 + $0x74] sm:$0xf]
      %v255 = vld [vmem:[%s207 + $0x78] sm:$0xf]
      %v256 = vld [vmem:[%s207 + $0x7c] sm:$0xf]
      %v257 = vld [vmem:[%s212] sm:$0xf]
      %v258 = vld [vmem:[%s212 + $0x4] sm:$0xf]
      %v259 = vld [vmem:[%s212 + $0x8] sm:$0xf]
      %v260 = vld [vmem:[%s212 + $0xc] sm:$0xf]
      %v261 = vld [vmem:[%s212 + $0x10] sm:$0xf]
      %v262 = vld [vmem:[%s212 + $0x14] sm:$0xf]
      %v263 = vld [vmem:[%s212 + $0x18] sm:$0xf]
      %v264 = vld [vmem:[%s212 + $0x1c] sm:$0xf]
      %v265 = vld [vmem:[%s212 + $0x20] sm:$0xf]
      %v266 = vld [vmem:[%s212 + $0x24] sm:$0xf]
      %v267 = vld [vmem:[%s212 + $0x28] sm:$0xf]
      %v268 = vld [vmem:[%s212 + $0x2c] sm:$0xf]
      %v269 = vld [vmem:[%s212 + $0x30] sm:$0xf]
      %v270 = vld [vmem:[%s212 + $0x34] sm:$0xf]
      %v271 = vld [vmem:[%s212 + $0x38] sm:$0xf]
      %v272 = vld [vmem:[%s212 + $0x3c] sm:$0xf]
      %v273 = vld [vmem:[%s215] sm:$0x1]
      %v275 = vperm.slane %v273, 0
      %v309 = vunpack.c.l.b16 %v225
      %v310 = vunpack.c.l.b16 %v226
      %v311 = vunpack.c.l.b16 %v227
      %v312 = vunpack.c.l.b16 %v228
      %v313 = vunpack.c.l.b16 %v229
      %v314 = vunpack.c.l.b16 %v230
      %v315 = vunpack.c.l.b16 %v231
      %v316 = vunpack.c.l.b16 %v232
      %v317 = vunpack.c.l.b16 %v233
      %v318 = vunpack.c.l.b16 %v234
      %v319 = vunpack.c.l.b16 %v235
      %v320 = vunpack.c.l.b16 %v236
      %v321 = vunpack.c.l.b16 %v237
      %v322 = vunpack.c.l.b16 %v238
      %v323 = vunpack.c.l.b16 %v239
      %v324 = vunpack.c.l.b16 %v240
      %v325 = vunpack.c.l.b16 %v241
      %v326 = vunpack.c.l.b16 %v242
      %v327 = vunpack.c.l.b16 %v243
      %v328 = vunpack.c.l.b16 %v244
      %v329 = vunpack.c.l.b16 %v245
      %v330 = vunpack.c.l.b16 %v246
      %v331 = vunpack.c.l.b16 %v247
      %v332 = vunpack.c.l.b16 %v248
      %v333 = vunpack.c.l.b16 %v249
      %v334 = vunpack.c.l.b16 %v250
      %v335 = vunpack.c.l.b16 %v251
      %v336 = vunpack.c.l.b16 %v252
      %v337 = vunpack.c.l.b16 %v253
      %v338 = vunpack.c.l.b16 %v254
      %v339 = vunpack.c.l.b16 %v255
      %v340 = vunpack.c.l.b16 %v256
      %v341 = vpack.c.b16 %v310, %v309
      %v342 = vpack.c.b16 %v312, %v311
      %v343 = vpack.c.b16 %v314, %v313
      %v344 = vpack.c.b16 %v316, %v315
      %v345 = vpack.c.b16 %v318, %v317
      %v346 = vpack.c.b16 %v320, %v319
      %v347 = vpack.c.b16 %v322, %v321
      %v348 = vpack.c.b16 %v324, %v323
      %v349 = vpack.c.b16 %v326, %v325
      %v350 = vpack.c.b16 %v328, %v327
      %v351 = vpack.c.b16 %v330, %v329
      %v352 = vpack.c.b16 %v332, %v331
      %v353 = vpack.c.b16 %v334, %v333
      %v354 = vpack.c.b16 %v336, %v335
      %v355 = vpack.c.b16 %v338, %v337
      %v356 = vpack.c.b16 %v340, %v339
      %v389 = vunpack.c.l.b16 %v257
      %v390 = vunpack.c.l.b16 %v258
      %v391 = vunpack.c.l.b16 %v259
      %v392 = vunpack.c.l.b16 %v260
      %v393 = vunpack.c.l.b16 %v261
      %v394 = vunpack.c.l.b16 %v262
      %v395 = vunpack.c.l.b16 %v263
      %v396 = vunpack.c.l.b16 %v264
      %v397 = vunpack.c.l.b16 %v265
      %v398 = vunpack.c.l.b16 %v266
      %v399 = vunpack.c.l.b16 %v267
      %v400 = vunpack.c.l.b16 %v268
      %v401 = vunpack.c.l.b16 %v269
      %v402 = vunpack.c.l.b16 %v270
      %v403 = vunpack.c.l.b16 %v271
      %v404 = vunpack.c.l.b16 %v272
      %v405 = vpack.c.b16 %v390, %v389
      %v406 = vpack.c.b16 %v392, %v391
      %v407 = vpack.c.b16 %v394, %v393
      %v408 = vpack.c.b16 %v396, %v395
      %v409 = vpack.c.b16 %v398, %v397
      %v410 = vpack.c.b16 %v400, %v399
      %v411 = vpack.c.b16 %v402, %v401
      %v412 = vpack.c.b16 %v404, %v403
      %421 = vmatpush.bf16.msra.mxu0 %v412
      %422 = vmatpush.bf16.msra.mxu0 %v411
      %423 = vmatpush.bf16.msra.mxu0 %v410
      %424 = vmatpush.bf16.msra.mxu0 %v409
      %425 = vmatpush.bf16.msra.mxu0 %v408
      %426 = vmatpush.bf16.msra.mxu0 %v407
      %427 = vmatpush.bf16.msra.mxu0 %v406
      %428 = vmatpush.bf16.msra.mxu0 %v405
      %429 = vmatmul.bf16.gmra.mxu0 %v341
      %v430 = vpop.f32.mrf.mxu0
      %v431 = vadd.f32 %v275, %v430
      %v432 = vpop.f32.mrf.mxu0
      %v433 = vadd.f32 %v275, %v432
      %434 = vmatmul.bf16.gmra.mxu0 %v342
      %v435 = vpop.f32.mrf.mxu0
      %v436 = vadd.f32 %v275, %v435
      %v437 = vpop.f32.mrf.mxu0
      %v438 = vadd.f32 %v275, %v437
      %439 = vmatmul.bf16.gmra.mxu0 %v343
      %v440 = vpop.f32.mrf.mxu0
      %v441 = vadd.f32 %v275, %v440
      %v442 = vpop.f32.mrf.mxu0
      %v443 = vadd.f32 %v275, %v442
      %444 = vmatmul.bf16.gmra.mxu0 %v344
      %v445 = vpop.f32.mrf.mxu0
      %v446 = vadd.f32 %v275, %v445
      %v447 = vpop.f32.mrf.mxu0
      %v448 = vadd.f32 %v275, %v447
      %449 = vmatmul.bf16.gmra.mxu0 %v345
      %v450 = vpop.f32.mrf.mxu0
      %v451 = vadd.f32 %v275, %v450
      %v452 = vpop.f32.mrf.mxu0
      %v453 = vadd.f32 %v275, %v452
      %454 = vmatmul.bf16.gmra.mxu0 %v346
      %v455 = vpop.f32.mrf.mxu0
      %v456 = vadd.f32 %v275, %v455
      %v457 = vpop.f32.mrf.mxu0
      %v458 = vadd.f32 %v275, %v457
      %459 = vmatmul.bf16.gmra.mxu0 %v347
      %v460 = vpop.f32.mrf.mxu0
      %v461 = vadd.f32 %v275, %v460
      %v462 = vpop.f32.mrf.mxu0
      %v463 = vadd.f32 %v275, %v462
      %464 = vmatmul.bf16.gmra.mxu0 %v348
      %v465 = vpop.f32.mrf.mxu0
      %v466 = vadd.f32 %v275, %v465
      %v467 = vpop.f32.mrf.mxu0
      %v468 = vadd.f32 %v275, %v467
      %469 = vmatmul.bf16.gmra.mxu0 %v349
      %v470 = vpop.f32.mrf.mxu0
      %v471 = vadd.f32 %v275, %v470
      %v472 = vpop.f32.mrf.mxu0
      %v473 = vadd.f32 %v275, %v472
      %474 = vmatmul.bf16.gmra.mxu0 %v350
      %v475 = vpop.f32.mrf.mxu0
      %v476 = vadd.f32 %v275, %v475
      %v477 = vpop.f32.mrf.mxu0
      %v478 = vadd.f32 %v275, %v477
      %479 = vmatmul.bf16.gmra.mxu0 %v351
      %v480 = vpop.f32.mrf.mxu0
      %v481 = vadd.f32 %v275, %v480
      %v482 = vpop.f32.mrf.mxu0
      %v483 = vadd.f32 %v275, %v482
      %484 = vmatmul.bf16.gmra.mxu0 %v352
      %v485 = vpop.f32.mrf.mxu0
      %v486 = vadd.f32 %v275, %v485
      %v487 = vpop.f32.mrf.mxu0
      %v488 = vadd.f32 %v275, %v487
      %489 = vmatmul.bf16.gmra.mxu0 %v353
      %v490 = vpop.f32.mrf.mxu0
      %v491 = vadd.f32 %v275, %v490
      %v492 = vpop.f32.mrf.mxu0
      %v493 = vadd.f32 %v275, %v492
      %494 = vmatmul.bf16.gmra.mxu0 %v354
      %v495 = vpop.f32.mrf.mxu0
      %v496 = vadd.f32 %v275, %v495
      %v497 = vpop.f32.mrf.mxu0
      %v498 = vadd.f32 %v275, %v497
      %499 = vmatmul.bf16.gmra.mxu0 %v355
      %v500 = vpop.f32.mrf.mxu0
      %v501 = vadd.f32 %v275, %v500
      %v502 = vpop.f32.mrf.mxu0
      %v503 = vadd.f32 %v275, %v502
      %504 = vmatmul.bf16.gmra.mxu0 %v356
      %v505 = vpop.f32.mrf.mxu0
      %v506 = vadd.f32 %v275, %v505
      %v507 = vpop.f32.mrf.mxu0
      %v508 = vadd.f32 %v275, %v507
      %509 = vdwg.mxu0
      %v510 = vmax.f32 %v431, 0.0
      %v511 = vmax.f32 %v433, 0.0
      %v512 = vmax.f32 %v436, 0.0
      %v513 = vmax.f32 %v438, 0.0
      %v514 = vmax.f32 %v441, 0.0
      %v515 = vmax.f32 %v443, 0.0
      %v516 = vmax.f32 %v446, 0.0
      %v517 = vmax.f32 %v448, 0.0
      %v518 = vmax.f32 %v451, 0.0
      %v519 = vmax.f32 %v453, 0.0
      %v520 = vmax.f32 %v456, 0.0
      %v521 = vmax.f32 %v458, 0.0
      %v522 = vmax.f32 %v461, 0.0
      %v523 = vmax.f32 %v463, 0.0
      %v524 = vmax.f32 %v466, 0.0
      %v525 = vmax.f32 %v468, 0.0
      %v526 = vmax.f32 %v471, 0.0
      %v527 = vmax.f32 %v473, 0.0
      %v528 = vmax.f32 %v476, 0.0
      %v529 = vmax.f32 %v478, 0.0
      %v530 = vmax.f32 %v481, 0.0
      %v531 = vmax.f32 %v483, 0.0
      %v532 = vmax.f32 %v486, 0.0
      %v533 = vmax.f32 %v488, 0.0
      %v534 = vmax.f32 %v491, 0.0
      %v535 = vmax.f32 %v493, 0.0
      %v536 = vmax.f32 %v496, 0.0
      %v537 = vmax.f32 %v498, 0.0
      %v538 = vmax.f32 %v501, 0.0
      %v539 = vmax.f32 %v503, 0.0
      %v540 = vmax.f32 %v506, 0.0
      %v541 = vmax.f32 %v508, 0.0
      %v542 = vpack.c.bf16 %v510, %v510
      %v543 = vpack.c.bf16 %v511, %v511
      %v544 = vpack.c.bf16 %v512, %v512
      %v545 = vpack.c.bf16 %v513, %v513
      %v546 = vpack.c.bf16 %v514, %v514
      %v547 = vpack.c.bf16 %v515, %v515
      %v548 = vpack.c.bf16 %v516, %v516
      %v549 = vpack.c.bf16 %v517, %v517
      %v550 = vpack.c.bf16 %v518, %v518
      %v551 = vpack.c.bf16 %v519, %v519
      %v552 = vpack.c.bf16 %v520, %v520
      %v553 = vpack.c.bf16 %v521, %v521
      %v554 = vpack.c.bf16 %v522, %v522
      %v555 = vpack.c.bf16 %v523, %v523
      %v556 = vpack.c.bf16 %v524, %v524
      %v557 = vpack.c.bf16 %v525, %v525
      %v558 = vpack.c.bf16 %v526, %v526
      %v559 = vpack.c.bf16 %v527, %v527
      %v560 = vpack.c.bf16 %v528, %v528
      %v561 = vpack.c.bf16 %v529, %v529
      %v562 = vpack.c.bf16 %v530, %v530
      %v563 = vpack.c.bf16 %v531, %v531
      %v564 = vpack.c.bf16 %v532, %v532
      %v565 = vpack.c.bf16 %v533, %v533
      %v566 = vpack.c.bf16 %v534, %v534
      %v567 = vpack.c.bf16 %v535, %v535
      %v568 = vpack.c.bf16 %v536, %v536
      %v569 = vpack.c.bf16 %v537, %v537
      %v570 = vpack.c.bf16 %v538, %v538
      %v571 = vpack.c.bf16 %v539, %v539
      %v572 = vpack.c.bf16 %v540, %v540
      %v573 = vpack.c.bf16 %v541, %v541
      %574 = vst [vmem:[%s223] sm:$0xf] %v542
      %575 = vst [vmem:[%s223 + $0x4] sm:$0xf] %v543
      %576 = vst [vmem:[%s223 + $0x8] sm:$0xf] %v544
      %577 = vst [vmem:[%s223 + $0xc] sm:$0xf] %v545
      %578 = vst [vmem:[%s223 + $0x10] sm:$0xf] %v546
      %579 = vst [vmem:[%s223 + $0x14] sm:$0xf] %v547
      %580 = vst [vmem:[%s223 + $0x18] sm:$0xf] %v548
      %581 = vst [vmem:[%s223 + $0x1c] sm:$0xf] %v549
      %582 = vst [vmem:[%s223 + $0x20] sm:$0xf] %v550
      %583 = vst [vmem:[%s223 + $0x24] sm:$0xf] %v551
      %584 = vst [vmem:[%s223 + $0x28] sm:$0xf] %v552
      %585 = vst [vmem:[%s223 + $0x2c] sm:$0xf] %v553
      %586 = vst [vmem:[%s223 + $0x30] sm:$0xf] %v554
      %587 = vst [vmem:[%s223 + $0x34] sm:$0xf] %v555
      %588 = vst [vmem:[%s223 + $0x38] sm:$0xf] %v556
      %589 = vst [vmem:[%s223 + $0x3c] sm:$0xf] %v557
      %590 = vst [vmem:[%s223 + $0x40] sm:$0xf] %v558
      %591 = vst [vmem:[%s223 + $0x44] sm:$0xf] %v559
      %592 = vst [vmem:[%s223 + $0x48] sm:$0xf] %v560
      %593 = vst [vmem:[%s223 + $0x4c] sm:$0xf] %v561
      %594 = vst [vmem:[%s223 + $0x50] sm:$0xf] %v562
      %595 = vst [vmem:[%s223 + $0x54] sm:$0xf] %v563
      %596 = vst [vmem:[%s223 + $0x58] sm:$0xf] %v564
      %597 = vst [vmem:[%s223 + $0x5c] sm:$0xf] %v565
      %598 = vst [vmem:[%s223 + $0x60] sm:$0xf] %v566
      %599 = vst [vmem:[%s223 + $0x64] sm:$0xf] %v567
      %600 = vst [vmem:[%s223 + $0x68] sm:$0xf] %v568
      %601 = vst [vmem:[%s223 + $0x6c] sm:$0xf] %v569
      %602 = vst [vmem:[%s223 + $0x70] sm:$0xf] %v570
      %603 = vst [vmem:[%s223 + $0x74] sm:$0xf] %v571
      %604 = vst [vmem:[%s223 + $0x78] sm:$0xf] %v572
      %605 = vst [vmem:[%s223 + $0x7c] sm:$0xf] %v573
      %s606 = smul.u32 32, %s18
      %p607 = scmp.lt.s32.totalorder %s606, 63
      %s608 = scalar_select %p607, %s606, 63
      %p609 = scmp.lt.s32.totalorder %s19, 0
      %s610 = scalar_select %p609, %s19, 0
      %s611 = sadd.s32 %s610, %s608
      %s612 = smul.addr %s611, 4
      %s613 = scalar_lea.vmem %s3, %s612
      // Predicated region
      $region33: #{bottleneck_forward.4} parent=31 // pred_check
        %p614 = pneg %p124
      $region34: #{bottleneck_forward.4} parent=31 // pred_check_branch
        %616 = sbr.rel (%p614) target = $region36
      $region35: #{bottleneck_forward.4} parent=31 // pred_region
        %s617 = smul.u32 32, %s18
      $region36: #{bottleneck_forward.4} parent=31 // pred_fallthru
        _
    $region32: #{bottleneck_forward.4} parent=5 // pred_fallthru
      _
    %p618 = scmp.le.s32.totalorder 2, %s9
    // Predicated region
    $region37: #{bottleneck_forward.4} parent=5 // pred_check
      %p619 = pneg %p618
    $region38: #{bottleneck_forward.4} parent=5 // pred_check_branch
      %621 = sbr.rel (%p619) target = $region40
    $region39: #{bottleneck_forward.4} parent=5 // pred_region
      %s622 = ssub.s32 %s9, 2
      // Predicated region
      $region41: #{bottleneck_forward.4} parent=39 // pred_check
        %p623 = pneg %p130
      $region42: #{bottleneck_forward.4} parent=39 // pred_check_branch
        %625 = sbr.rel (%p623) target = $region44
      $region43: #{bottleneck_forward.4} parent=39 // pred_region
        %s626 = smul.u32 32, %s20
        %p627 = scmp.lt.s32.totalorder %s626, 63
        %s628 = scalar_select %p627, %s626, 63
        %p629 = scmp.lt.s32.totalorder %s21, 0
        %s630 = scalar_select %p629, %s21, 0
        %s631 = sadd.s32 %s630, %s628
        %s632 = smul.addr %s631, 4
        %s633 = scalar_lea.vmem %s3, %s632
      $region44: #{bottleneck_forward.4} parent=39 // pred_fallthru
        _
    $region40: #{bottleneck_forward.4} parent=5 // pred_fallthru
      _
  $region6: #{bottleneck_forward.4} parent=0 // loop_footer
    %s13 = sadd.s32 1, %s9
  $region7: #{bottleneck_forward.4} parent=0 // loop_footer_branch
    %8 = sbr.rel target = $region3
  $region8: #{bottleneck_forward.4} parent=0 // loop_exit
    _

// kernel: bottleneck_forward.6
$region0: #{bottleneck_forward.6}
  #allocation0 [shape = 'u32[]', space=smem, size = 0x4, offset = 0x4, fixed_abs, tag = 'smem constant byte address 0x4 - core index']
  #allocation1 [shape = 'u32[72,128]{1,0:T(1,128)}', space=vmem, size = 0x9000, scoped, tag = 'internal scratch']
  %s0 = inlined_call_operand.vmem [shape: bf16[512,128], index: 0, kind: input, shape index: {}]
  %s1 = inlined_call_operand.vmem [shape: bf16[128,128], index: 1, kind: input, shape index: {}]
  %s2 = inlined_call_operand.vmem [shape: f32[1,128], index: 2, kind: input, shape index: {}]
  %s3 = inlined_call_operand.vmem [shape: bf16[512,128], index: 3, kind: output, shape index: {}]
  %s4 = sld [smem:[#allocation0]]
  $region45: #{bottleneck_forward.6} parent=0
    _
  %s6 = ssub.s32 1, %s4
  %s7 = scalar_select 0, %s6, %s4
  loop: start=0, step=1, limit=4
  $region2: #{bottleneck_forward.6} parent=0 // loop_pre_header
    _
  $region3: #{bottleneck_forward.6} parent=0 // loop_header
    %s9 = sphi 0, %s13
    %p10 = scmp.ge.s32.totalorder %s9, 4
    %s16 = sphi 0, %s28
    %s17 = sphi 0, %s24
    %s18 = sphi 0, %s16
    %s19 = sphi 0, %s17
    %s20 = sphi 0, %s18
    %s21 = sphi 0, %s19
    %s31 = sphi 0, %s33
    %s34 = sphi 0, %s31
    %s35 = sphi 0, %s34
    %s51 = sphi 0, %s35
    %s57 = sphi 0, %s59
    %s60 = sphi 0, %s57
    %s61 = sphi 0, %s60
    %s77 = sphi 0, %s61
    %s83 = sphi 0, %s85
    %s86 = sphi 0, %s83
    %s87 = sphi 0, %s86
    %s103 = sphi 0, %s87
    %s111 = sphi 0, %s113
    %s114 = sphi 0, %s111
    %s115 = sphi 0, %s114
    %s131 = sphi 0, %s115
  $region4: #{bottleneck_forward.6} parent=0 // loop_header_branch
    %12 = sbr.rel (%p10) target = $region8
  $region5: #{bottleneck_forward.6} parent=0 // loop_body
    %s14 = ssub.s32 %s9, 1
    %s15 = ssub.s32 %s9, 2
    %s22 = sadd.s32 1, %s17
    %p23 = scmp.ge.s32.totalorder %s22, 1
    %s24 = scalar_select %p23, 0, %s22
    %s25 = sadd.s32 1, %s16
    %s26 = scalar_select %p23, %s25, %s16
    %p27 = scmp.ge.s32.totalorder %s26, 2
    %s28 = scalar_select %p27, 0, %s26
    %s29 = ssub.s32 %s16, %s28
    %p30 = scmp.eq.s32.totalorder %s29, 0
    %s32 = sadd.s32 %s31, 1
    %s33 = scalar_select %p30, %s31, %s32
    %p36 = pneg %p30
    %p37 = scmp.eq.s32.totalorder %s9, 1
    %p38 = por %p36, %p37
    %p39 = scmp.ne.s32.totalorder %s31, %s34
    %p40 = scmp.eq.s32.totalorder %s9, 0
    %p41 = por %p39, %p40
    %p42 = scmp.ne.s32.totalorder %s31, %s34
    %p43 = scmp.eq.s32.totalorder %s14, 1
    %p44 = por %p42, %p43
    %p45 = scmp.ne.s32.totalorder %s34, %s35
    %p46 = scmp.eq.s32.totalorder %s14, 0
    %p47 = por %p45, %p46
    %p48 = scmp.ne.s32.totalorder %s34, %s35
    %p49 = scmp.eq.s32.totalorder %s15, 1
    %p50 = por %p48, %p49
    %p52 = scmp.ne.s32.totalorder %s35, %s51
    %p53 = scmp.eq.s32.totalorder %s15, 0
    %p54 = por %p52, %p53
    %s55 = ssub.s32 %s17, %s24
    %p56 = scmp.eq.s32.totalorder %s55, 0
    %s58 = sadd.s32 %s57, 1
    %s59 = scalar_select %p56, %s57, %s58
    %p62 = pneg %p56
    %p63 = scmp.eq.s32.totalorder %s9, 1
    %p64 = por %p62, %p63
    %p65 = scmp.ne.s32.totalorder %s57, %s60
    %p66 = scmp.eq.s32.totalorder %s9, 0
    %p67 = por %p65, %p66
    %p68 = scmp.ne.s32.totalorder %s57, %s60
    %p69 = scmp.eq.s32.totalorder %s14, 1
    %p70 = por %p68, %p69
    %p71 = scmp.ne.s32.totalorder %s60, %s61
    %p72 = scmp.eq.s32.totalorder %s14, 0
    %p73 = por %p71, %p72
    %p74 = scmp.ne.s32.totalorder %s60, %s61
    %p75 = scmp.eq.s32.totalorder %s15, 1
    %p76 = por %p74, %p75
    %p78 = scmp.ne.s32.totalorder %s61, %s77
    %p79 = scmp.eq.s32.totalorder %s15, 0
    %p80 = por %p78, %p79
    %s81 = ssub.s32 %s17, %s24
    %p82 = scmp.eq.s32.totalorder %s81, 0
    %s84 = sadd.s32 %s83, 1
    %s85 = scalar_select %p82, %s83, %s84
    %p88 = pneg %p82
    %p89 = scmp.eq.s32.totalorder %s9, 1
    %p90 = por %p88, %p89
    %p91 = scmp.ne.s32.totalorder %s83, %s86
    %p92 = scmp.eq.s32.totalorder %s9, 0
    %p93 = por %p91, %p92
    %p94 = scmp.ne.s32.totalorder %s83, %s86
    %p95 = scmp.eq.s32.totalorder %s14, 1
    %p96 = por %p94, %p95
    %p97 = scmp.ne.s32.totalorder %s86, %s87
    %p98 = scmp.eq.s32.totalorder %s14, 0
    %p99 = por %p97, %p98
    %p100 = scmp.ne.s32.totalorder %s86, %s87
    %p101 = scmp.eq.s32.totalorder %s15, 1
    %p102 = por %p100, %p101
    %p104 = scmp.ne.s32.totalorder %s87, %s103
    %p105 = scmp.eq.s32.totalorder %s15, 0
    %p106 = por %p104, %p105
    %s107 = ssub.s32 %s16, %s28
    %s108 = ssub.s32 %s17, %s24
    %s109 = sor.u32 %s107, %s108
    %p110 = scmp.eq.s32.totalorder %s109, 0
    %s112 = sadd.s32 %s111, 1
    %s113 = scalar_select %p110, %s111, %s112
    %p116 = pneg %p110
    %p117 = scmp.eq.s32.totalorder %s9, 1
    %p118 = por %p116, %p117
    %p119 = scmp.ne.s32.totalorder %s111, %s114
    %p120 = scmp.eq.s32.totalorder %s9, 0
    %p121 = por %p119, %p120
    %p122 = scmp.ne.s32.totalorder %s111, %s114
    %p123 = scmp.eq.s32.totalorder %s14, 1
    %p124 = por %p122, %p123
    %p125 = scmp.ne.s32.totalorder %s114, %s115
    %p126 = scmp.eq.s32.totalorder %s14, 0
    %p127 = por %p125, %p126
    %p128 = scmp.ne.s32.totalorder %s114, %s115
    %p129 = scmp.eq.s32.totalorder %s15, 1
    %p130 = por %p128, %p129
    %p132 = scmp.ne.s32.totalorder %s115, %s131
    %p133 = scmp.eq.s32.totalorder %s15, 0
    %p134 = por %p132, %p133
    %p135 = scmp.le.s32.totalorder 1, %s9
    %p136 = scmp.lt.s32.totalorder %s9, 3
    %p137 = pnand %p135, %p136
    %p138 = pneg %p137
    // Predicated region
    $region9: #{bottleneck_forward.6} parent=5 // pred_check
      _
    $region10: #{bottleneck_forward.6} parent=5 // pred_check_branch
      %140 = sbr.rel (%p137) target = $region12
    $region11: #{bottleneck_forward.6} parent=5 // pred_region
      %s141 = ssub.s32 %s9, 1
      // Predicated region
      $region13: #{bottleneck_forward.6} parent=11 // pred_check
        %p142 = pneg %p73
      $region14: #{bottleneck_forward.6} parent=11 // pred_check_branch
        %144 = sbr.rel (%p142) target = $region16
      $region15: #{bottleneck_forward.6} parent=11 // pred_region
        %p145 = scmp.lt.s32.totalorder %s19, 0
        %s146 = scalar_select %p145, %s19, 0
        %s147 = smul.addr %s146, 4
        %s148 = scalar_lea.vmem %s1, %s147
      $region16: #{bottleneck_forward.6} parent=11 // pred_fallthru
        _
      // Predicated region
      $region17: #{bottleneck_forward.6} parent=11 // pred_check
        %p149 = pneg %p99
      $region18: #{bottleneck_forward.6} parent=11 // pred_check_branch
        %151 = sbr.rel (%p149) target = $region20
      $region19: #{bottleneck_forward.6} parent=11 // pred_region
        %p152 = scmp.lt.s32.totalorder %s19, 0
        %s153 = scalar_select %p152, %s19, 0
        %s154 = scalar_lea.vmem %s2, %s153
      $region20: #{bottleneck_forward.6} parent=11 // pred_fallthru
        _
    $region12: #{bottleneck_forward.6} parent=5 // pred_fallthru
      _
    %p155 = scmp.lt.s32.totalorder %s9, 2
    // Predicated region
    $region21: #{bottleneck_forward.6} parent=5 // pred_check
      %p156 = pneg %p155
    $region22: #{bottleneck_forward.6} parent=5 // pred_check_branch
      %158 = sbr.rel (%p156) target = $region24
    $region23: #{bottleneck_forward.6} parent=5 // pred_region
      // Predicated region
      $region25: #{bottleneck_forward.6} parent=23 // pred_check
        %p159 = pneg %p41
      $region26: #{bottleneck_forward.6} parent=23 // pred_check_branch
        %161 = sbr.rel (%p159) target = $region28
      $region27: #{bottleneck_forward.6} parent=23 // pred_region
        %s162 = smul.u32 32, %s16
        %p163 = scmp.lt.s32.totalorder %s162, 63
        %s164 = scalar_select %p163, %s162, 63
        %s165 = smul.addr %s164, 4
        %s166 = scalar_lea.vmem %s0, %s165
        %s167 = smul.u32 32, %s16
      $region28: #{bottleneck_forward.6} parent=23 // pred_fallthru
        _
    $region24: #{bottleneck_forward.6} parent=5 // pred_fallthru
      _
    %p168 = scmp.le.s32.totalorder 1, %s9
    %p169 = scmp.lt.s32.totalorder %s9, 3
    %p170 = pnand %p168, %p169
    %p171 = pneg %p170
    // Predicated region
    $region29: #{bottleneck_forward.6} parent=5 // pred_check
      _
    $region30: #{bottleneck_forward.6} parent=5 // pred_check_branch
      %173 = sbr.rel (%p170) target = $region32
    $region31: #{bottleneck_forward.6} parent=5 // pred_region
      %s174 = ssub.s32 %s9, 1
      %s175 = smul.u32 32, %s18
      %p176 = scmp.lt.s32.totalorder %s175, 63
      %s177 = scalar_select %p176, %s175, 63
      %s178 = smul.addr %s177, 4
      %s179 = scalar_lea.vmem %s0, %s178
      %p180 = pneg %p47
      %p181 = pneg %p44
      %p182 = scmp.lt.s32.totalorder %s19, 0
      %s183 = scalar_select %p182, %s19, 0
      %s184 = smul.addr %s183, 4
      %s185 = scalar_lea.vmem %s1, %s184
      %p186 = pneg %p73
      %p187 = pneg %p70
      %p188 = scmp.lt.s32.totalorder %s19, 0
      %s189 = scalar_select %p188, %s19, 0
      %s190 = scalar_lea.vmem %s2, %s189
      %p191 = pneg %p99
      %p192 = pneg %p96
      %p193 = pneg %p127
      %p194 = pneg %p124
      %s195 = smul.u32 32, %s18
      %p196 = scmp.lt.s32.totalorder %s195, 63
      %s197 = scalar_select %p196, %s195, 63
      %p198 = scmp.lt.s32.totalorder %s19, 0
      %s199 = scalar_select %p198, %s19, 0
      %s200 = sadd.s32 %s199, %s197
      %s201 = smul.addr %s200, 4
      %s202 = scalar_lea.vmem %s3, %s201
      %s203 = smul.u32 32, %s18
      %p204 = scmp.lt.s32.totalorder %s203, 63
      %s205 = scalar_select %p204, %s203, 63
      %s206 = smul.addr %s205, 4
      %s207 = scalar_lea.vmem %s0, %s206
      %s208 = smul.u32 32, %s18
      %p209 = scmp.lt.s32.totalorder %s19, 0
      %s210 = scalar_select %p209, %s19, 0
      %s211 = smul.addr %s210, 4
      %s212 = scalar_lea.vmem %s1, %s211
      %p213 = scmp.lt.s32.totalorder %s19, 0
      %s214 = scalar_select %p213, %s19, 0
      %s215 = scalar_lea.vmem %s2, %s214
      %s216 = smul.u32 32, %s18
      %p217 = scmp.lt.s32.totalorder %s216, 63
      %s218 = scalar_select %p217, %s216, 63
      %p219 = scmp.lt.s32.totalorder %s19, 0
      %s220 = scalar_select %p219, %s19, 0
      %s221 = sadd.s32 %s220, %s218
      %s222 = smul.addr %s221, 4
      %s223 = scalar_lea.vmem %s3, %s222
      %s224 = smul.u32 32, %s18
      %v225 = vld [vmem:[%s207] sm:$0xf]
      %v226 = vld [vmem:[%s207 + $0x4] sm:$0xf]
      %v227 = vld [vmem:[%s207 + $0x8] sm:$0xf]
      %v228 = vld [vmem:[%s207 + $0xc] sm:$0xf]
      %v229 = vld [vmem:[%s207 + $0x10] sm:$0xf]
      %v230 = vld [vmem:[%s207 + $0x14] sm:$0xf]
      %v231 = vld [vmem:[%s207 + $0x18] sm:$0xf]
      %v232 = vld [vmem:[%s207 + $0x1c] sm:$0xf]
      %v233 = vld [vmem:[%s207 + $0x20] sm:$0xf]
      %v234 = vld [vmem:[%s207 + $0x24] sm:$0xf]
      %v235 = vld [vmem:[%s207 + $0x28] sm:$0xf]
      %v236 = vld [vmem:[%s207 + $0x2c] sm:$0xf]
      %v237 = vld [vmem:[%s207 + $0x30] sm:$0xf]
      %v238 = vld [vmem:[%s207 + $0x34] sm:$0xf]
      %v239 = vld [vmem:[%s207 + $0x38] sm:$0xf]
      %v240 = vld [vmem:[%s207 + $0x3c] sm:$0xf]
      %v241 = vld [vmem:[%s207 + $0x40] sm:$0xf]
      %v242 = vld [vmem:[%s207 + $0x44] sm:$0xf]
      %v243 = vld [vmem:[%s207 + $0x48] sm:$0xf]
      %v244 = vld [vmem:[%s207 + $0x4c] sm:$0xf]
      %v245 = vld [vmem:[%s207 + $0x50] sm:$0xf]
      %v246 = vld [vmem:[%s207 + $0x54] sm:$0xf]
      %v247 = vld [vmem:[%s207 + $0x58] sm:$0xf]
      %v248 = vld [vmem:[%s207 + $0x5c] sm:$0xf]
      %v249 = vld [vmem:[%s207 + $0x60] sm:$0xf]
      %v250 = vld [vmem:[%s207 + $0x64] sm:$0xf]
      %v251 = vld [vmem:[%s207 + $0x68] sm:$0xf]
      %v252 = vld [vmem:[%s207 + $0x6c] sm:$0xf]
      %v253 = vld [vmem:[%s207 + $0x70] sm:$0xf]
      %v254 = vld [vmem:[%s207 + $0x74] sm:$0xf]
      %v255 = vld [vmem:[%s207 + $0x78] sm:$0xf]
      %v256 = vld [vmem:[%s207 + $0x7c] sm:$0xf]
      %v257 = vld [vmem:[%s212] sm:$0xf]
      %v258 = vld [vmem:[%s212 + $0x4] sm:$0xf]
      %v259 = vld [vmem:[%s212 + $0x8] sm:$0xf]
      %v260 = vld [vmem:[%s212 + $0xc] sm:$0xf]
      %v261 = vld [vmem:[%s212 + $0x10] sm:$0xf]
      %v262 = vld [vmem:[%s212 + $0x14] sm:$0xf]
      %v263 = vld [vmem:[%s212 + $0x18] sm:$0xf]
      %v264 = vld [vmem:[%s212 + $0x1c] sm:$0xf]
      %v265 = vld [vmem:[%s212 + $0x20] sm:$0xf]
      %v266 = vld [vmem:[%s212 + $0x24] sm:$0xf]
      %v267 = vld [vmem:[%s212 + $0x28] sm:$0xf]
      %v268 = vld [vmem:[%s212 + $0x2c] sm:$0xf]
      %v269 = vld [vmem:[%s212 + $0x30] sm:$0xf]
      %v270 = vld [vmem:[%s212 + $0x34] sm:$0xf]
      %v271 = vld [vmem:[%s212 + $0x38] sm:$0xf]
      %v272 = vld [vmem:[%s212 + $0x3c] sm:$0xf]
      %v273 = vld [vmem:[%s215] sm:$0x1]
      %v275 = vperm.slane %v273, 0
      %v309 = vunpack.c.l.b16 %v225
      %v310 = vunpack.c.l.b16 %v226
      %v311 = vunpack.c.l.b16 %v227
      %v312 = vunpack.c.l.b16 %v228
      %v313 = vunpack.c.l.b16 %v229
      %v314 = vunpack.c.l.b16 %v230
      %v315 = vunpack.c.l.b16 %v231
      %v316 = vunpack.c.l.b16 %v232
      %v317 = vunpack.c.l.b16 %v233
      %v318 = vunpack.c.l.b16 %v234
      %v319 = vunpack.c.l.b16 %v235
      %v320 = vunpack.c.l.b16 %v236
      %v321 = vunpack.c.l.b16 %v237
      %v322 = vunpack.c.l.b16 %v238
      %v323 = vunpack.c.l.b16 %v239
      %v324 = vunpack.c.l.b16 %v240
      %v325 = vunpack.c.l.b16 %v241
      %v326 = vunpack.c.l.b16 %v242
      %v327 = vunpack.c.l.b16 %v243
      %v328 = vunpack.c.l.b16 %v244
      %v329 = vunpack.c.l.b16 %v245
      %v330 = vunpack.c.l.b16 %v246
      %v331 = vunpack.c.l.b16 %v247
      %v332 = vunpack.c.l.b16 %v248
      %v333 = vunpack.c.l.b16 %v249
      %v334 = vunpack.c.l.b16 %v250
      %v335 = vunpack.c.l.b16 %v251
      %v336 = vunpack.c.l.b16 %v252
      %v337 = vunpack.c.l.b16 %v253
      %v338 = vunpack.c.l.b16 %v254
      %v339 = vunpack.c.l.b16 %v255
      %v340 = vunpack.c.l.b16 %v256
      %v341 = vpack.c.b16 %v310, %v309
      %v342 = vpack.c.b16 %v312, %v311
      %v343 = vpack.c.b16 %v314, %v313
      %v344 = vpack.c.b16 %v316, %v315
      %v345 = vpack.c.b16 %v318, %v317
      %v346 = vpack.c.b16 %v320, %v319
      %v347 = vpack.c.b16 %v322, %v321
      %v348 = vpack.c.b16 %v324, %v323
      %v349 = vpack.c.b16 %v326, %v325
      %v350 = vpack.c.b16 %v328, %v327
      %v351 = vpack.c.b16 %v330, %v329
      %v352 = vpack.c.b16 %v332, %v331
      %v353 = vpack.c.b16 %v334, %v333
      %v354 = vpack.c.b16 %v336, %v335
      %v355 = vpack.c.b16 %v338, %v337
      %v356 = vpack.c.b16 %v340, %v339
      %v389 = vunpack.c.l.b16 %v257
      %v390 = vunpack.c.l.b16 %v258
      %v391 = vunpack.c.l.b16 %v259
      %v392 = vunpack.c.l.b16 %v260
      %v393 = vunpack.c.l.b16 %v261
      %v394 = vunpack.c.l.b16 %v262
      %v395 = vunpack.c.l.b16 %v263
      %v396 = vunpack.c.l.b16 %v264
      %v397 = vunpack.c.l.b16 %v265
      %v398 = vunpack.c.l.b16 %v266
      %v399 = vunpack.c.l.b16 %v267
      %v400 = vunpack.c.l.b16 %v268
      %v401 = vunpack.c.l.b16 %v269
      %v402 = vunpack.c.l.b16 %v270
      %v403 = vunpack.c.l.b16 %v271
      %v404 = vunpack.c.l.b16 %v272
      %v405 = vpack.c.b16 %v390, %v389
      %v406 = vpack.c.b16 %v392, %v391
      %v407 = vpack.c.b16 %v394, %v393
      %v408 = vpack.c.b16 %v396, %v395
      %v409 = vpack.c.b16 %v398, %v397
      %v410 = vpack.c.b16 %v400, %v399
      %v411 = vpack.c.b16 %v402, %v401
      %v412 = vpack.c.b16 %v404, %v403
      %421 = vmatpush.bf16.msra.mxu0 %v412
      %422 = vmatpush.bf16.msra.mxu0 %v411
      %423 = vmatpush.bf16.msra.mxu0 %v410
      %424 = vmatpush.bf16.msra.mxu0 %v409
      %425 = vmatpush.bf16.msra.mxu0 %v408
      %426 = vmatpush.bf16.msra.mxu0 %v407
      %427 = vmatpush.bf16.msra.mxu0 %v406
      %428 = vmatpush.bf16.msra.mxu0 %v405
      %429 = vmatmul.bf16.gmra.mxu0 %v341
      %v430 = vpop.f32.mrf.mxu0
      %v431 = vadd.f32 %v275, %v430
      %v432 = vpop.f32.mrf.mxu0
      %v433 = vadd.f32 %v275, %v432
      %434 = vmatmul.bf16.gmra.mxu0 %v342
      %v435 = vpop.f32.mrf.mxu0
      %v436 = vadd.f32 %v275, %v435
      %v437 = vpop.f32.mrf.mxu0
      %v438 = vadd.f32 %v275, %v437
      %439 = vmatmul.bf16.gmra.mxu0 %v343
      %v440 = vpop.f32.mrf.mxu0
      %v441 = vadd.f32 %v275, %v440
      %v442 = vpop.f32.mrf.mxu0
      %v443 = vadd.f32 %v275, %v442
      %444 = vmatmul.bf16.gmra.mxu0 %v344
      %v445 = vpop.f32.mrf.mxu0
      %v446 = vadd.f32 %v275, %v445
      %v447 = vpop.f32.mrf.mxu0
      %v448 = vadd.f32 %v275, %v447
      %449 = vmatmul.bf16.gmra.mxu0 %v345
      %v450 = vpop.f32.mrf.mxu0
      %v451 = vadd.f32 %v275, %v450
      %v452 = vpop.f32.mrf.mxu0
      %v453 = vadd.f32 %v275, %v452
      %454 = vmatmul.bf16.gmra.mxu0 %v346
      %v455 = vpop.f32.mrf.mxu0
      %v456 = vadd.f32 %v275, %v455
      %v457 = vpop.f32.mrf.mxu0
      %v458 = vadd.f32 %v275, %v457
      %459 = vmatmul.bf16.gmra.mxu0 %v347
      %v460 = vpop.f32.mrf.mxu0
      %v461 = vadd.f32 %v275, %v460
      %v462 = vpop.f32.mrf.mxu0
      %v463 = vadd.f32 %v275, %v462
      %464 = vmatmul.bf16.gmra.mxu0 %v348
      %v465 = vpop.f32.mrf.mxu0
      %v466 = vadd.f32 %v275, %v465
      %v467 = vpop.f32.mrf.mxu0
      %v468 = vadd.f32 %v275, %v467
      %469 = vmatmul.bf16.gmra.mxu0 %v349
      %v470 = vpop.f32.mrf.mxu0
      %v471 = vadd.f32 %v275, %v470
      %v472 = vpop.f32.mrf.mxu0
      %v473 = vadd.f32 %v275, %v472
      %474 = vmatmul.bf16.gmra.mxu0 %v350
      %v475 = vpop.f32.mrf.mxu0
      %v476 = vadd.f32 %v275, %v475
      %v477 = vpop.f32.mrf.mxu0
      %v478 = vadd.f32 %v275, %v477
      %479 = vmatmul.bf16.gmra.mxu0 %v351
      %v480 = vpop.f32.mrf.mxu0
      %v481 = vadd.f32 %v275, %v480
      %v482 = vpop.f32.mrf.mxu0
      %v483 = vadd.f32 %v275, %v482
      %484 = vmatmul.bf16.gmra.mxu0 %v352
      %v485 = vpop.f32.mrf.mxu0
      %v486 = vadd.f32 %v275, %v485
      %v487 = vpop.f32.mrf.mxu0
      %v488 = vadd.f32 %v275, %v487
      %489 = vmatmul.bf16.gmra.mxu0 %v353
      %v490 = vpop.f32.mrf.mxu0
      %v491 = vadd.f32 %v275, %v490
      %v492 = vpop.f32.mrf.mxu0
      %v493 = vadd.f32 %v275, %v492
      %494 = vmatmul.bf16.gmra.mxu0 %v354
      %v495 = vpop.f32.mrf.mxu0
      %v496 = vadd.f32 %v275, %v495
      %v497 = vpop.f32.mrf.mxu0
      %v498 = vadd.f32 %v275, %v497
      %499 = vmatmul.bf16.gmra.mxu0 %v355
      %v500 = vpop.f32.mrf.mxu0
      %v501 = vadd.f32 %v275, %v500
      %v502 = vpop.f32.mrf.mxu0
      %v503 = vadd.f32 %v275, %v502
      %504 = vmatmul.bf16.gmra.mxu0 %v356
      %v505 = vpop.f32.mrf.mxu0
      %v506 = vadd.f32 %v275, %v505
      %v507 = vpop.f32.mrf.mxu0
      %v508 = vadd.f32 %v275, %v507
      %509 = vdwg.mxu0
      %v510 = vpack.c.bf16 %v431, %v431
      %v511 = vpack.c.bf16 %v433, %v433
      %v512 = vpack.c.bf16 %v436, %v436
      %v513 = vpack.c.bf16 %v438, %v438
      %v514 = vpack.c.bf16 %v441, %v441
      %v515 = vpack.c.bf16 %v443, %v443
      %v516 = vpack.c.bf16 %v446, %v446
      %v517 = vpack.c.bf16 %v448, %v448
      %v518 = vpack.c.bf16 %v451, %v451
      %v519 = vpack.c.bf16 %v453, %v453
      %v520 = vpack.c.bf16 %v456, %v456
      %v521 = vpack.c.bf16 %v458, %v458
      %v522 = vpack.c.bf16 %v461, %v461
      %v523 = vpack.c.bf16 %v463, %v463
      %v524 = vpack.c.bf16 %v466, %v466
      %v525 = vpack.c.bf16 %v468, %v468
      %v526 = vpack.c.bf16 %v471, %v471
      %v527 = vpack.c.bf16 %v473, %v473
      %v528 = vpack.c.bf16 %v476, %v476
      %v529 = vpack.c.bf16 %v478, %v478
      %v530 = vpack.c.bf16 %v481, %v481
      %v531 = vpack.c.bf16 %v483, %v483
      %v532 = vpack.c.bf16 %v486, %v486
      %v533 = vpack.c.bf16 %v488, %v488
      %v534 = vpack.c.bf16 %v491, %v491
      %v535 = vpack.c.bf16 %v493, %v493
      %v536 = vpack.c.bf16 %v496, %v496
      %v537 = vpack.c.bf16 %v498, %v498
      %v538 = vpack.c.bf16 %v501, %v501
      %v539 = vpack.c.bf16 %v503, %v503
      %v540 = vpack.c.bf16 %v506, %v506
      %v541 = vpack.c.bf16 %v508, %v508
      %542 = vst [vmem:[%s223] sm:$0xf] %v510
      %543 = vst [vmem:[%s223 + $0x4] sm:$0xf] %v511
      %544 = vst [vmem:[%s223 + $0x8] sm:$0xf] %v512
      %545 = vst [vmem:[%s223 + $0xc] sm:$0xf] %v513
      %546 = vst [vmem:[%s223 + $0x10] sm:$0xf] %v514
      %547 = vst [vmem:[%s223 + $0x14] sm:$0xf] %v515
      %548 = vst [vmem:[%s223 + $0x18] sm:$0xf] %v516
      %549 = vst [vmem:[%s223 + $0x1c] sm:$0xf] %v517
      %550 = vst [vmem:[%s223 + $0x20] sm:$0xf] %v518
      %551 = vst [vmem:[%s223 + $0x24] sm:$0xf] %v519
      %552 = vst [vmem:[%s223 + $0x28] sm:$0xf] %v520
      %553 = vst [vmem:[%s223 + $0x2c] sm:$0xf] %v521
      %554 = vst [vmem:[%s223 + $0x30] sm:$0xf] %v522
      %555 = vst [vmem:[%s223 + $0x34] sm:$0xf] %v523
      %556 = vst [vmem:[%s223 + $0x38] sm:$0xf] %v524
      %557 = vst [vmem:[%s223 + $0x3c] sm:$0xf] %v525
      %558 = vst [vmem:[%s223 + $0x40] sm:$0xf] %v526
      %559 = vst [vmem:[%s223 + $0x44] sm:$0xf] %v527
      %560 = vst [vmem:[%s223 + $0x48] sm:$0xf] %v528
      %561 = vst [vmem:[%s223 + $0x4c] sm:$0xf] %v529
      %562 = vst [vmem:[%s223 + $0x50] sm:$0xf] %v530
      %563 = vst [vmem:[%s223 + $0x54] sm:$0xf] %v531
      %564 = vst [vmem:[%s223 + $0x58] sm:$0xf] %v532
      %565 = vst [vmem:[%s223 + $0x5c] sm:$0xf] %v533
      %566 = vst [vmem:[%s223 + $0x60] sm:$0xf] %v534
      %567 = vst [vmem:[%s223 + $0x64] sm:$0xf] %v535
      %568 = vst [vmem:[%s223 + $0x68] sm:$0xf] %v536
      %569 = vst [vmem:[%s223 + $0x6c] sm:$0xf] %v537
      %570 = vst [vmem:[%s223 + $0x70] sm:$0xf] %v538
      %571 = vst [vmem:[%s223 + $0x74] sm:$0xf] %v539
      %572 = vst [vmem:[%s223 + $0x78] sm:$0xf] %v540
      %573 = vst [vmem:[%s223 + $0x7c] sm:$0xf] %v541
      %s574 = smul.u32 32, %s18
      %p575 = scmp.lt.s32.totalorder %s574, 63
      %s576 = scalar_select %p575, %s574, 63
      %p577 = scmp.lt.s32.totalorder %s19, 0
      %s578 = scalar_select %p577, %s19, 0
      %s579 = sadd.s32 %s578, %s576
      %s580 = smul.addr %s579, 4
      %s581 = scalar_lea.vmem %s3, %s580
      // Predicated region
      $region33: #{bottleneck_forward.6} parent=31 // pred_check
        %p582 = pneg %p124
      $region34: #{bottleneck_forward.6} parent=31 // pred_check_branch
        %584 = sbr.rel (%p582) target = $region36
      $region35: #{bottleneck_forward.6} parent=31 // pred_region
        %s585 = smul.u32 32, %s18
      $region36: #{bottleneck_forward.6} parent=31 // pred_fallthru
        _
    $region32: #{bottleneck_forward.6} parent=5 // pred_fallthru
      _
    %p586 = scmp.le.s32.totalorder 2, %s9
    // Predicated region
    $region37: #{bottleneck_forward.6} parent=5 // pred_check
      %p587 = pneg %p586
    $region38: #{bottleneck_forward.6} parent=5 // pred_check_branch
      %589 = sbr.rel (%p587) target = $region40
    $region39: #{bottleneck_forward.6} parent=5 // pred_region
      %s590 = ssub.s32 %s9, 2
      // Predicated region
      $region41: #{bottleneck_forward.6} parent=39 // pred_check
        %p591 = pneg %p130
      $region42: #{bottleneck_forward.6} parent=39 // pred_check_branch
        %593 = sbr.rel (%p591) target = $region44
      $region43: #{bottleneck_forward.6} parent=39 // pred_region
        %s594 = smul.u32 32, %s20
        %p595 = scmp.lt.s32.totalorder %s594, 63
        %s596 = scalar_select %p595, %s594, 63
        %p597 = scmp.lt.s32.totalorder %s21, 0
        %s598 = scalar_select %p597, %s21, 0
        %s599 = sadd.s32 %s598, %s596
        %s600 = smul.addr %s599, 4
        %s601 = scalar_lea.vmem %s3, %s600
      $region44: #{bottleneck_forward.6} parent=39 // pred_fallthru
        _
    $region40: #{bottleneck_forward.6} parent=5 // pred_fallthru
      _
  $region6: #{bottleneck_forward.6} parent=0 // loop_footer
    %s13 = sadd.s32 1, %s9
  $region7: #{bottleneck_forward.6} parent=0 // loop_footer_branch
    %8 = sbr.rel target = $region3
  $region8: #{bottleneck_forward.6} parent=0 // loop_exit
    _

// kernel: bottleneck_forward.7
$region0: #{bottleneck_forward.7}
  #allocation0 [shape = 'u32[]', space=smem, size = 0x4, offset = 0x4, fixed_abs, tag = 'smem constant byte address 0x4 - core index']
  #allocation1 [shape = 'u32[72,128]{1,0:T(1,128)}', space=vmem, size = 0x9000, scoped, tag = 'internal scratch']
  %s0 = inlined_call_operand.vmem [shape: bf16[512,128], index: 0, kind: input, shape index: {}]
  %s1 = inlined_call_operand.vmem [shape: bf16[128,128], index: 1, kind: input, shape index: {}]
  %s2 = inlined_call_operand.vmem [shape: f32[1,128], index: 2, kind: input, shape index: {}]
  %s3 = inlined_call_operand.vmem [shape: bf16[512,128], index: 3, kind: input, shape index: {}]
  %s4 = inlined_call_operand.vmem [shape: f32[512,128], index: 4, kind: output, shape index: {}]
  %s5 = sld [smem:[#allocation0]]
  $region49: #{bottleneck_forward.7} parent=0
    _
  %s7 = ssub.s32 1, %s5
  %s8 = scalar_select 0, %s7, %s5
  loop: start=0, step=1, limit=4
  $region2: #{bottleneck_forward.7} parent=0 // loop_pre_header
    _
  $region3: #{bottleneck_forward.7} parent=0 // loop_header
    %s10 = sphi 0, %s14
    %p11 = scmp.ge.s32.totalorder %s10, 4
    %s17 = sphi 0, %s29
    %s18 = sphi 0, %s25
    %s19 = sphi 0, %s17
    %s20 = sphi 0, %s18
    %s21 = sphi 0, %s19
    %s22 = sphi 0, %s20
    %s32 = sphi 0, %s34
    %s35 = sphi 0, %s32
    %s36 = sphi 0, %s35
    %s52 = sphi 0, %s36
    %s58 = sphi 0, %s60
    %s61 = sphi 0, %s58
    %s62 = sphi 0, %s61
    %s78 = sphi 0, %s62
    %s84 = sphi 0, %s86
    %s87 = sphi 0, %s84
    %s88 = sphi 0, %s87
    %s104 = sphi 0, %s88
    %s112 = sphi 0, %s114
    %s115 = sphi 0, %s112
    %s116 = sphi 0, %s115
    %s132 = sphi 0, %s116
    %s140 = sphi 0, %s142
    %s143 = sphi 0, %s140
    %s144 = sphi 0, %s143
    %s160 = sphi 0, %s144
  $region4: #{bottleneck_forward.7} parent=0 // loop_header_branch
    %13 = sbr.rel (%p11) target = $region8
  $region5: #{bottleneck_forward.7} parent=0 // loop_body
    %s15 = ssub.s32 %s10, 1
    %s16 = ssub.s32 %s10, 2
    %s23 = sadd.s32 1, %s18
    %p24 = scmp.ge.s32.totalorder %s23, 1
    %s25 = scalar_select %p24, 0, %s23
    %s26 = sadd.s32 1, %s17
    %s27 = scalar_select %p24, %s26, %s17
    %p28 = scmp.ge.s32.totalorder %s27, 2
    %s29 = scalar_select %p28, 0, %s27
    %s30 = ssub.s32 %s17, %s29
    %p31 = scmp.eq.s32.totalorder %s30, 0
    %s33 = sadd.s32 %s32, 1
    %s34 = scalar_select %p31, %s32, %s33
    %p37 = pneg %p31
    %p38 = scmp.eq.s32.totalorder %s10, 1
    %p39 = por %p37, %p38
    %p40 = scmp.ne.s32.totalorder %s32, %s35
    %p41 = scmp.eq.s32.totalorder %s10, 0
    %p42 = por %p40, %p41
    %p43 = scmp.ne.s32.totalorder %s32, %s35
    %p44 = scmp.eq.s32.totalorder %s15, 1
    %p45 = por %p43, %p44
    %p46 = scmp.ne.s32.totalorder %s35, %s36
    %p47 = scmp.eq.s32.totalorder %s15, 0
    %p48 = por %p46, %p47
    %p49 = scmp.ne.s32.totalorder %s35, %s36
    %p50 = scmp.eq.s32.totalorder %s16, 1
    %p51 = por %p49, %p50
    %p53 = scmp.ne.s32.totalorder %s36, %s52
    %p54 = scmp.eq.s32.totalorder %s16, 0
    %p55 = por %p53, %p54
    %s56 = ssub.s32 %s18, %s25
    %p57 = scmp.eq.s32.totalorder %s56, 0
    %s59 = sadd.s32 %s58, 1
    %s60 = scalar_select %p57, %s58, %s59
    %p63 = pneg %p57
    %p64 = scmp.eq.s32.totalorder %s10, 1
    %p65 = por %p63, %p64
    %p66 = scmp.ne.s32.totalorder %s58, %s61
    %p67 = scmp.eq.s32.totalorder %s10, 0
    %p68 = por %p66, %p67
    %p69 = scmp.ne.s32.totalorder %s58, %s61
    %p70 = scmp.eq.s32.totalorder %s15, 1
    %p71 = por %p69, %p70
    %p72 = scmp.ne.s32.totalorder %s61, %s62
    %p73 = scmp.eq.s32.totalorder %s15, 0
    %p74 = por %p72, %p73
    %p75 = scmp.ne.s32.totalorder %s61, %s62
    %p76 = scmp.eq.s32.totalorder %s16, 1
    %p77 = por %p75, %p76
    %p79 = scmp.ne.s32.totalorder %s62, %s78
    %p80 = scmp.eq.s32.totalorder %s16, 0
    %p81 = por %p79, %p80
    %s82 = ssub.s32 %s18, %s25
    %p83 = scmp.eq.s32.totalorder %s82, 0
    %s85 = sadd.s32 %s84, 1
    %s86 = scalar_select %p83, %s84, %s85
    %p89 = pneg %p83
    %p90 = scmp.eq.s32.totalorder %s10, 1
    %p91 = por %p89, %p90
    %p92 = scmp.ne.s32.totalorder %s84, %s87
    %p93 = scmp.eq.s32.totalorder %s10, 0
    %p94 = por %p92, %p93
    %p95 = scmp.ne.s32.totalorder %s84, %s87
    %p96 = scmp.eq.s32.totalorder %s15, 1
    %p97 = por %p95, %p96
    %p98 = scmp.ne.s32.totalorder %s87, %s88
    %p99 = scmp.eq.s32.totalorder %s15, 0
    %p100 = por %p98, %p99
    %p101 = scmp.ne.s32.totalorder %s87, %s88
    %p102 = scmp.eq.s32.totalorder %s16, 1
    %p103 = por %p101, %p102
    %p105 = scmp.ne.s32.totalorder %s88, %s104
    %p106 = scmp.eq.s32.totalorder %s16, 0
    %p107 = por %p105, %p106
    %s108 = ssub.s32 %s17, %s29
    %s109 = ssub.s32 %s18, %s25
    %s110 = sor.u32 %s108, %s109
    %p111 = scmp.eq.s32.totalorder %s110, 0
    %s113 = sadd.s32 %s112, 1
    %s114 = scalar_select %p111, %s112, %s113
    %p117 = pneg %p111
    %p118 = scmp.eq.s32.totalorder %s10, 1
    %p119 = por %p117, %p118
    %p120 = scmp.ne.s32.totalorder %s112, %s115
    %p121 = scmp.eq.s32.totalorder %s10, 0
    %p122 = por %p120, %p121
    %p123 = scmp.ne.s32.totalorder %s112, %s115
    %p124 = scmp.eq.s32.totalorder %s15, 1
    %p125 = por %p123, %p124
    %p126 = scmp.ne.s32.totalorder %s115, %s116
    %p127 = scmp.eq.s32.totalorder %s15, 0
    %p128 = por %p126, %p127
    %p129 = scmp.ne.s32.totalorder %s115, %s116
    %p130 = scmp.eq.s32.totalorder %s16, 1
    %p131 = por %p129, %p130
    %p133 = scmp.ne.s32.totalorder %s116, %s132
    %p134 = scmp.eq.s32.totalorder %s16, 0
    %p135 = por %p133, %p134
    %s136 = ssub.s32 %s17, %s29
    %s137 = ssub.s32 %s18, %s25
    %s138 = sor.u32 %s136, %s137
    %p139 = scmp.eq.s32.totalorder %s138, 0
    %s141 = sadd.s32 %s140, 1
    %s142 = scalar_select %p139, %s140, %s141
    %p145 = pneg %p139
    %p146 = scmp.eq.s32.totalorder %s10, 1
    %p147 = por %p145, %p146
    %p148 = scmp.ne.s32.totalorder %s140, %s143
    %p149 = scmp.eq.s32.totalorder %s10, 0
    %p150 = por %p148, %p149
    %p151 = scmp.ne.s32.totalorder %s140, %s143
    %p152 = scmp.eq.s32.totalorder %s15, 1
    %p153 = por %p151, %p152
    %p154 = scmp.ne.s32.totalorder %s143, %s144
    %p155 = scmp.eq.s32.totalorder %s15, 0
    %p156 = por %p154, %p155
    %p157 = scmp.ne.s32.totalorder %s143, %s144
    %p158 = scmp.eq.s32.totalorder %s16, 1
    %p159 = por %p157, %p158
    %p161 = scmp.ne.s32.totalorder %s144, %s160
    %p162 = scmp.eq.s32.totalorder %s16, 0
    %p163 = por %p161, %p162
    %p164 = scmp.le.s32.totalorder 1, %s10
    %p165 = scmp.lt.s32.totalorder %s10, 3
    %p166 = pnand %p164, %p165
    %p167 = pneg %p166
    // Predicated region
    $region9: #{bottleneck_forward.7} parent=5 // pred_check
      _
    $region10: #{bottleneck_forward.7} parent=5 // pred_check_branch
      %169 = sbr.rel (%p166) target = $region12
    $region11: #{bottleneck_forward.7} parent=5 // pred_region
      %s170 = ssub.s32 %s10, 1
      // Predicated region
      $region13: #{bottleneck_forward.7} parent=11 // pred_check
        %p171 = pneg %p74
      $region14: #{bottleneck_forward.7} parent=11 // pred_check_branch
        %173 = sbr.rel (%p171) target = $region16
      $region15: #{bottleneck_forward.7} parent=11 // pred_region
        %p174 = scmp.lt.s32.totalorder %s20, 0
        %s175 = scalar_select %p174, %s20, 0
        %s176 = smul.addr %s175, 4
        %s177 = scalar_lea.vmem %s1, %s176
      $region16: #{bottleneck_forward.7} parent=11 // pred_fallthru
        _
      // Predicated region
      $region17: #{bottleneck_forward.7} parent=11 // pred_check
        %p178 = pneg %p100
      $region18: #{bottleneck_forward.7} parent=11 // pred_check_branch
        %180 = sbr.rel (%p178) target = $region20
      $region19: #{bottleneck_forward.7} parent=11 // pred_region
        %p181 = scmp.lt.s32.totalorder %s20, 0
        %s182 = scalar_select %p181, %s20, 0
        %s183 = scalar_lea.vmem %s2, %s182
      $region20: #{bottleneck_forward.7} parent=11 // pred_fallthru
        _
    $region12: #{bottleneck_forward.7} parent=5 // pred_fallthru
      _
    %p184 = scmp.lt.s32.totalorder %s10, 2
    // Predicated region
    $region21: #{bottleneck_forward.7} parent=5 // pred_check
      %p185 = pneg %p184
    $region22: #{bottleneck_forward.7} parent=5 // pred_check_branch
      %187 = sbr.rel (%p185) target = $region24
    $region23: #{bottleneck_forward.7} parent=5 // pred_region
      // Predicated region
      $region25: #{bottleneck_forward.7} parent=23 // pred_check
        %p188 = pneg %p42
      $region26: #{bottleneck_forward.7} parent=23 // pred_check_branch
        %190 = sbr.rel (%p188) target = $region28
      $region27: #{bottleneck_forward.7} parent=23 // pred_region
        %s191 = smul.u32 32, %s17
        %p192 = scmp.lt.s32.totalorder %s191, 63
        %s193 = scalar_select %p192, %s191, 63
        %s194 = smul.addr %s193, 4
        %s195 = scalar_lea.vmem %s0, %s194
        %s196 = smul.u32 32, %s17
      $region28: #{bottleneck_forward.7} parent=23 // pred_fallthru
        _
      // Predicated region
      $region29: #{bottleneck_forward.7} parent=23 // pred_check
        %p197 = pneg %p122
      $region30: #{bottleneck_forward.7} parent=23 // pred_check_branch
        %199 = sbr.rel (%p197) target = $region32
      $region31: #{bottleneck_forward.7} parent=23 // pred_region
        %s200 = smul.u32 32, %s17
        %p201 = scmp.lt.s32.totalorder %s200, 63
        %s202 = scalar_select %p201, %s200, 63
        %p203 = scmp.lt.s32.totalorder %s18, 0
        %s204 = scalar_select %p203, %s18, 0
        %s205 = sadd.s32 %s204, %s202
        %s206 = smul.addr %s205, 4
        %s207 = scalar_lea.vmem %s3, %s206
        %s208 = smul.u32 32, %s17
      $region32: #{bottleneck_forward.7} parent=23 // pred_fallthru
        _
    $region24: #{bottleneck_forward.7} parent=5 // pred_fallthru
      _
    %p209 = scmp.le.s32.totalorder 1, %s10
    %p210 = scmp.lt.s32.totalorder %s10, 3
    %p211 = pnand %p209, %p210
    %p212 = pneg %p211
    // Predicated region
    $region33: #{bottleneck_forward.7} parent=5 // pred_check
      _
    $region34: #{bottleneck_forward.7} parent=5 // pred_check_branch
      %214 = sbr.rel (%p211) target = $region36
    $region35: #{bottleneck_forward.7} parent=5 // pred_region
      %s215 = ssub.s32 %s10, 1
      %s216 = smul.u32 32, %s19
      %p217 = scmp.lt.s32.totalorder %s216, 63
      %s218 = scalar_select %p217, %s216, 63
      %s219 = smul.addr %s218, 4
      %s220 = scalar_lea.vmem %s0, %s219
      %p221 = pneg %p48
      %p222 = pneg %p45
      %p223 = scmp.lt.s32.totalorder %s20, 0
      %s224 = scalar_select %p223, %s20, 0
      %s225 = smul.addr %s224, 4
      %s226 = scalar_lea.vmem %s1, %s225
      %p227 = pneg %p74
      %p228 = pneg %p71
      %p229 = scmp.lt.s32.totalorder %s20, 0
      %s230 = scalar_select %p229, %s20, 0
      %s231 = scalar_lea.vmem %s2, %s230
      %p232 = pneg %p100
      %p233 = pneg %p97
      %s234 = smul.u32 32, %s19
      %p235 = scmp.lt.s32.totalorder %s234, 63
      %s236 = scalar_select %p235, %s234, 63
      %p237 = scmp.lt.s32.totalorder %s20, 0
      %s238 = scalar_select %p237, %s20, 0
      %s239 = sadd.s32 %s238, %s236
      %s240 = smul.addr %s239, 4
      %s241 = scalar_lea.vmem %s3, %s240
      %p242 = pneg %p128
      %p243 = pneg %p125
      %p244 = pneg %p156
      %p245 = pneg %p153
      %s246 = smul.u32 32, %s19
      %p247 = scmp.lt.s32.totalorder %s246, 63
      %s248 = scalar_select %p247, %s246, 63
      %p249 = scmp.lt.s32.totalorder %s20, 0
      %s250 = scalar_select %p249, %s20, 0
      %s251 = sadd.s32 %s250, %s248
      %s252 = smul.addr %s251, 8
      %s253 = scalar_lea.vmem %s4, %s252
      %s254 = smul.u32 32, %s19
      %p255 = scmp.lt.s32.totalorder %s254, 63
      %s256 = scalar_select %p255, %s254, 63
      %s257 = smul.addr %s256, 4
      %s258 = scalar_lea.vmem %s0, %s257
      %s259 = smul.u32 32, %s19
      %p260 = scmp.lt.s32.totalorder %s20, 0
      %s261 = scalar_select %p260, %s20, 0
      %s262 = smul.addr %s261, 4
      %s263 = scalar_lea.vmem %s1, %s262
      %p264 = scmp.lt.s32.totalorder %s20, 0
      %s265 = scalar_select %p264, %s20, 0
      %s266 = scalar_lea.vmem %s2, %s265
      %s267 = smul.u32 32, %s19
      %p268 = scmp.lt.s32.totalorder %s267, 63
      %s269 = scalar_select %p268, %s267, 63
      %p270 = scmp.lt.s32.totalorder %s20, 0
      %s271 = scalar_select %p270, %s20, 0
      %s272 = sadd.s32 %s271, %s269
      %s273 = smul.addr %s272, 4
      %s274 = scalar_lea.vmem %s3, %s273
      %s275 = smul.u32 32, %s19
      %s276 = smul.u32 32, %s19
      %p277 = scmp.lt.s32.totalorder %s276, 63
      %s278 = scalar_select %p277, %s276, 63
      %p279 = scmp.lt.s32.totalorder %s20, 0
      %s280 = scalar_select %p279, %s20, 0
      %s281 = sadd.s32 %s280, %s278
      %s282 = smul.addr %s281, 8
      %s283 = scalar_lea.vmem %s4, %s282
      %s284 = smul.u32 32, %s19
      %v285 = vld [vmem:[%s258] sm:$0xf]
      %v286 = vld [vmem:[%s258 + $0x4] sm:$0xf]
      %v287 = vld [vmem:[%s258 + $0x8] sm:$0xf]
      %v288 = vld [vmem:[%s258 + $0xc] sm:$0xf]
      %v289 = vld [vmem:[%s258 + $0x10] sm:$0xf]
      %v290 = vld [vmem:[%s258 + $0x14] sm:$0xf]
      %v291 = vld [vmem:[%s258 + $0x18] sm:$0xf]
      %v292 = vld [vmem:[%s258 + $0x1c] sm:$0xf]
      %v293 = vld [vmem:[%s258 + $0x20] sm:$0xf]
      %v294 = vld [vmem:[%s258 + $0x24] sm:$0xf]
      %v295 = vld [vmem:[%s258 + $0x28] sm:$0xf]
      %v296 = vld [vmem:[%s258 + $0x2c] sm:$0xf]
      %v297 = vld [vmem:[%s258 + $0x30] sm:$0xf]
      %v298 = vld [vmem:[%s258 + $0x34] sm:$0xf]
      %v299 = vld [vmem:[%s258 + $0x38] sm:$0xf]
      %v300 = vld [vmem:[%s258 + $0x3c] sm:$0xf]
      %v301 = vld [vmem:[%s258 + $0x40] sm:$0xf]
      %v302 = vld [vmem:[%s258 + $0x44] sm:$0xf]
      %v303 = vld [vmem:[%s258 + $0x48] sm:$0xf]
      %v304 = vld [vmem:[%s258 + $0x4c] sm:$0xf]
      %v305 = vld [vmem:[%s258 + $0x50] sm:$0xf]
      %v306 = vld [vmem:[%s258 + $0x54] sm:$0xf]
      %v307 = vld [vmem:[%s258 + $0x58] sm:$0xf]
      %v308 = vld [vmem:[%s258 + $0x5c] sm:$0xf]
      %v309 = vld [vmem:[%s258 + $0x60] sm:$0xf]
      %v310 = vld [vmem:[%s258 + $0x64] sm:$0xf]
      %v311 = vld [vmem:[%s258 + $0x68] sm:$0xf]
      %v312 = vld [vmem:[%s258 + $0x6c] sm:$0xf]
      %v313 = vld [vmem:[%s258 + $0x70] sm:$0xf]
      %v314 = vld [vmem:[%s258 + $0x74] sm:$0xf]
      %v315 = vld [vmem:[%s258 + $0x78] sm:$0xf]
      %v316 = vld [vmem:[%s258 + $0x7c] sm:$0xf]
      %v317 = vld [vmem:[%s263] sm:$0xf]
      %v318 = vld [vmem:[%s263 + $0x4] sm:$0xf]
      %v319 = vld [vmem:[%s263 + $0x8] sm:$0xf]
      %v320 = vld [vmem:[%s263 + $0xc] sm:$0xf]
      %v321 = vld [vmem:[%s263 + $0x10] sm:$0xf]
      %v322 = vld [vmem:[%s263 + $0x14] sm:$0xf]
      %v323 = vld [vmem:[%s263 + $0x18] sm:$0xf]
      %v324 = vld [vmem:[%s263 + $0x1c] sm:$0xf]
      %v325 = vld [vmem:[%s263 + $0x20] sm:$0xf]
      %v326 = vld [vmem:[%s263 + $0x24] sm:$0xf]
      %v327 = vld [vmem:[%s263 + $0x28] sm:$0xf]
      %v328 = vld [vmem:[%s263 + $0x2c] sm:$0xf]
      %v329 = vld [vmem:[%s263 + $0x30] sm:$0xf]
      %v330 = vld [vmem:[%s263 + $0x34] sm:$0xf]
      %v331 = vld [vmem:[%s263 + $0x38] sm:$0xf]
      %v332 = vld [vmem:[%s263 + $0x3c] sm:$0xf]
      %v333 = vld [vmem:[%s266] sm:$0x1]
      %v335 = vperm.slane %v333, 0
      %v369 = vunpack.c.l.b16 %v285
      %v370 = vunpack.c.l.b16 %v286
      %v371 = vunpack.c.l.b16 %v287
      %v372 = vunpack.c.l.b16 %v288
      %v373 = vunpack.c.l.b16 %v289
      %v374 = vunpack.c.l.b16 %v290
      %v375 = vunpack.c.l.b16 %v291
      %v376 = vunpack.c.l.b16 %v292
      %v377 = vunpack.c.l.b16 %v293
      %v378 = vunpack.c.l.b16 %v294
      %v379 = vunpack.c.l.b16 %v295
      %v380 = vunpack.c.l.b16 %v296
      %v381 = vunpack.c.l.b16 %v297
      %v382 = vunpack.c.l.b16 %v298
      %v383 = vunpack.c.l.b16 %v299
      %v384 = vunpack.c.l.b16 %v300
      %v385 = vunpack.c.l.b16 %v301
      %v386 = vunpack.c.l.b16 %v302
      %v387 = vunpack.c.l.b16 %v303
      %v388 = vunpack.c.l.b16 %v304
      %v389 = vunpack.c.l.b16 %v305
      %v390 = vunpack.c.l.b16 %v306
      %v391 = vunpack.c.l.b16 %v307
      %v392 = vunpack.c.l.b16 %v308
      %v393 = vunpack.c.l.b16 %v309
      %v394 = vunpack.c.l.b16 %v310
      %v395 = vunpack.c.l.b16 %v311
      %v396 = vunpack.c.l.b16 %v312
      %v397 = vunpack.c.l.b16 %v313
      %v398 = vunpack.c.l.b16 %v314
      %v399 = vunpack.c.l.b16 %v315
      %v400 = vunpack.c.l.b16 %v316
      %v401 = vpack.c.b16 %v370, %v369
      %v402 = vpack.c.b16 %v372, %v371
      %v403 = vpack.c.b16 %v374, %v373
      %v404 = vpack.c.b16 %v376, %v375
      %v405 = vpack.c.b16 %v378, %v377
      %v406 = vpack.c.b16 %v380, %v379
      %v407 = vpack.c.b16 %v382, %v381
      %v408 = vpack.c.b16 %v384, %v383
      %v409 = vpack.c.b16 %v386, %v385
      %v410 = vpack.c.b16 %v388, %v387
      %v411 = vpack.c.b16 %v390, %v389
      %v412 = vpack.c.b16 %v392, %v391
      %v413 = vpack.c.b16 %v394, %v393
      %v414 = vpack.c.b16 %v396, %v395
      %v415 = vpack.c.b16 %v398, %v397
      %v416 = vpack.c.b16 %v400, %v399
      %v449 = vunpack.c.l.b16 %v317
      %v450 = vunpack.c.l.b16 %v318
      %v451 = vunpack.c.l.b16 %v319
      %v452 = vunpack.c.l.b16 %v320
      %v453 = vunpack.c.l.b16 %v321
      %v454 = vunpack.c.l.b16 %v322
      %v455 = vunpack.c.l.b16 %v323
      %v456 = vunpack.c.l.b16 %v324
      %v457 = vunpack.c.l.b16 %v325
      %v458 = vunpack.c.l.b16 %v326
      %v459 = vunpack.c.l.b16 %v327
      %v460 = vunpack.c.l.b16 %v328
      %v461 = vunpack.c.l.b16 %v329
      %v462 = vunpack.c.l.b16 %v330
      %v463 = vunpack.c.l.b16 %v331
      %v464 = vunpack.c.l.b16 %v332
      %v465 = vpack.c.b16 %v450, %v449
      %v466 = vpack.c.b16 %v452, %v451
      %v467 = vpack.c.b16 %v454, %v453
      %v468 = vpack.c.b16 %v456, %v455
      %v469 = vpack.c.b16 %v458, %v457
      %v470 = vpack.c.b16 %v460, %v459
      %v471 = vpack.c.b16 %v462, %v461
      %v472 = vpack.c.b16 %v464, %v463
      %481 = vmatpush.bf16.msra.mxu0 %v472
      %482 = vmatpush.bf16.msra.mxu0 %v471
      %483 = vmatpush.bf16.msra.mxu0 %v470
      %484 = vmatpush.bf16.msra.mxu0 %v469
      %485 = vmatpush.bf16.msra.mxu0 %v468
      %486 = vmatpush.bf16.msra.mxu0 %v467
      %487 = vmatpush.bf16.msra.mxu0 %v466
      %488 = vmatpush.bf16.msra.mxu0 %v465
      %489 = vmatmul.bf16.gmra.mxu0 %v401
      %v490 = vpop.f32.mrf.mxu0
      %v491 = vadd.f32 %v335, %v490
      %v492 = vpop.f32.mrf.mxu0
      %v493 = vadd.f32 %v335, %v492
      %494 = vmatmul.bf16.gmra.mxu0 %v402
      %v495 = vpop.f32.mrf.mxu0
      %v496 = vadd.f32 %v335, %v495
      %v497 = vpop.f32.mrf.mxu0
      %v498 = vadd.f32 %v335, %v497
      %499 = vmatmul.bf16.gmra.mxu0 %v403
      %v500 = vpop.f32.mrf.mxu0
      %v501 = vadd.f32 %v335, %v500
      %v502 = vpop.f32.mrf.mxu0
      %v503 = vadd.f32 %v335, %v502
      %504 = vmatmul.bf16.gmra.mxu0 %v404
      %v505 = vpop.f32.mrf.mxu0
      %v506 = vadd.f32 %v335, %v505
      %v507 = vpop.f32.mrf.mxu0
      %v508 = vadd.f32 %v335, %v507
      %509 = vmatmul.bf16.gmra.mxu0 %v405
      %v510 = vpop.f32.mrf.mxu0
      %v511 = vadd.f32 %v335, %v510
      %v512 = vpop.f32.mrf.mxu0
      %v513 = vadd.f32 %v335, %v512
      %514 = vmatmul.bf16.gmra.mxu0 %v406
      %v515 = vpop.f32.mrf.mxu0
      %v516 = vadd.f32 %v335, %v515
      %v517 = vpop.f32.mrf.mxu0
      %v518 = vadd.f32 %v335, %v517
      %519 = vmatmul.bf16.gmra.mxu0 %v407
      %v520 = vpop.f32.mrf.mxu0
      %v521 = vadd.f32 %v335, %v520
      %v522 = vpop.f32.mrf.mxu0
      %v523 = vadd.f32 %v335, %v522
      %524 = vmatmul.bf16.gmra.mxu0 %v408
      %v525 = vpop.f32.mrf.mxu0
      %v526 = vadd.f32 %v335, %v525
      %v527 = vpop.f32.mrf.mxu0
      %v528 = vadd.f32 %v335, %v527
      %529 = vmatmul.bf16.gmra.mxu0 %v409
      %v530 = vpop.f32.mrf.mxu0
      %v531 = vadd.f32 %v335, %v530
      %v532 = vpop.f32.mrf.mxu0
      %v533 = vadd.f32 %v335, %v532
      %534 = vmatmul.bf16.gmra.mxu0 %v410
      %v535 = vpop.f32.mrf.mxu0
      %v536 = vadd.f32 %v335, %v535
      %v537 = vpop.f32.mrf.mxu0
      %v538 = vadd.f32 %v335, %v537
      %539 = vmatmul.bf16.gmra.mxu0 %v411
      %v540 = vpop.f32.mrf.mxu0
      %v541 = vadd.f32 %v335, %v540
      %v542 = vpop.f32.mrf.mxu0
      %v543 = vadd.f32 %v335, %v542
      %544 = vmatmul.bf16.gmra.mxu0 %v412
      %v545 = vpop.f32.mrf.mxu0
      %v546 = vadd.f32 %v335, %v545
      %v547 = vpop.f32.mrf.mxu0
      %v548 = vadd.f32 %v335, %v547
      %549 = vmatmul.bf16.gmra.mxu0 %v413
      %v550 = vpop.f32.mrf.mxu0
      %v551 = vadd.f32 %v335, %v550
      %v552 = vpop.f32.mrf.mxu0
      %v553 = vadd.f32 %v335, %v552
      %554 = vmatmul.bf16.gmra.mxu0 %v414
      %v555 = vpop.f32.mrf.mxu0
      %v556 = vadd.f32 %v335, %v555
      %v557 = vpop.f32.mrf.mxu0
      %v558 = vadd.f32 %v335, %v557
      %559 = vmatmul.bf16.gmra.mxu0 %v415
      %v560 = vpop.f32.mrf.mxu0
      %v561 = vadd.f32 %v335, %v560
      %v562 = vpop.f32.mrf.mxu0
      %v563 = vadd.f32 %v335, %v562
      %564 = vmatmul.bf16.gmra.mxu0 %v416
      %v565 = vpop.f32.mrf.mxu0
      %v566 = vadd.f32 %v335, %v565
      %v567 = vpop.f32.mrf.mxu0
      %v568 = vadd.f32 %v335, %v567
      %569 = vdwg.mxu0
      %v570 = vld [vmem:[%s274] sm:$0xf]
      %v571 = vld [vmem:[%s274 + $0x4] sm:$0xf]
      %v572 = vld [vmem:[%s274 + $0x8] sm:$0xf]
      %v573 = vld [vmem:[%s274 + $0xc] sm:$0xf]
      %v574 = vld [vmem:[%s274 + $0x10] sm:$0xf]
      %v575 = vld [vmem:[%s274 + $0x14] sm:$0xf]
      %v576 = vld [vmem:[%s274 + $0x18] sm:$0xf]
      %v577 = vld [vmem:[%s274 + $0x1c] sm:$0xf]
      %v578 = vld [vmem:[%s274 + $0x20] sm:$0xf]
      %v579 = vld [vmem:[%s274 + $0x24] sm:$0xf]
      %v580 = vld [vmem:[%s274 + $0x28] sm:$0xf]
      %v581 = vld [vmem:[%s274 + $0x2c] sm:$0xf]
      %v582 = vld [vmem:[%s274 + $0x30] sm:$0xf]
      %v583 = vld [vmem:[%s274 + $0x34] sm:$0xf]
      %v584 = vld [vmem:[%s274 + $0x38] sm:$0xf]
      %v585 = vld [vmem:[%s274 + $0x3c] sm:$0xf]
      %v586 = vld [vmem:[%s274 + $0x40] sm:$0xf]
      %v587 = vld [vmem:[%s274 + $0x44] sm:$0xf]
      %v588 = vld [vmem:[%s274 + $0x48] sm:$0xf]
      %v589 = vld [vmem:[%s274 + $0x4c] sm:$0xf]
      %v590 = vld [vmem:[%s274 + $0x50] sm:$0xf]
      %v591 = vld [vmem:[%s274 + $0x54] sm:$0xf]
      %v592 = vld [vmem:[%s274 + $0x58] sm:$0xf]
      %v593 = vld [vmem:[%s274 + $0x5c] sm:$0xf]
      %v594 = vld [vmem:[%s274 + $0x60] sm:$0xf]
      %v595 = vld [vmem:[%s274 + $0x64] sm:$0xf]
      %v596 = vld [vmem:[%s274 + $0x68] sm:$0xf]
      %v597 = vld [vmem:[%s274 + $0x6c] sm:$0xf]
      %v598 = vld [vmem:[%s274 + $0x70] sm:$0xf]
      %v599 = vld [vmem:[%s274 + $0x74] sm:$0xf]
      %v600 = vld [vmem:[%s274 + $0x78] sm:$0xf]
      %v601 = vld [vmem:[%s274 + $0x7c] sm:$0xf]
      %v602 = vunpack.c.l.bf16 %v570
      %v603 = vunpack.c.l.bf16 %v571
      %v604 = vunpack.c.l.bf16 %v572
      %v605 = vunpack.c.l.bf16 %v573
      %v606 = vunpack.c.l.bf16 %v574
      %v607 = vunpack.c.l.bf16 %v575
      %v608 = vunpack.c.l.bf16 %v576
      %v609 = vunpack.c.l.bf16 %v577
      %v610 = vunpack.c.l.bf16 %v578
      %v611 = vunpack.c.l.bf16 %v579
      %v612 = vunpack.c.l.bf16 %v580
      %v613 = vunpack.c.l.bf16 %v581
      %v614 = vunpack.c.l.bf16 %v582
      %v615 = vunpack.c.l.bf16 %v583
      %v616 = vunpack.c.l.bf16 %v584
      %v617 = vunpack.c.l.bf16 %v585
      %v618 = vunpack.c.l.bf16 %v586
      %v619 = vunpack.c.l.bf16 %v587
      %v620 = vunpack.c.l.bf16 %v588
      %v621 = vunpack.c.l.bf16 %v589
      %v622 = vunpack.c.l.bf16 %v590
      %v623 = vunpack.c.l.bf16 %v591
      %v624 = vunpack.c.l.bf16 %v592
      %v625 = vunpack.c.l.bf16 %v593
      %v626 = vunpack.c.l.bf16 %v594
      %v627 = vunpack.c.l.bf16 %v595
      %v628 = vunpack.c.l.bf16 %v596
      %v629 = vunpack.c.l.bf16 %v597
      %v630 = vunpack.c.l.bf16 %v598
      %v631 = vunpack.c.l.bf16 %v599
      %v632 = vunpack.c.l.bf16 %v600
      %v633 = vunpack.c.l.bf16 %v601
      %v634 = vadd.f32 %v491, %v602
      %v635 = vadd.f32 %v493, %v603
      %v636 = vadd.f32 %v496, %v604
      %v637 = vadd.f32 %v498, %v605
      %v638 = vadd.f32 %v501, %v606
      %v639 = vadd.f32 %v503, %v607
      %v640 = vadd.f32 %v506, %v608
      %v641 = vadd.f32 %v508, %v609
      %v642 = vadd.f32 %v511, %v610
      %v643 = vadd.f32 %v513, %v611
      %v644 = vadd.f32 %v516, %v612
      %v645 = vadd.f32 %v518, %v613
      %v646 = vadd.f32 %v521, %v614
      %v647 = vadd.f32 %v523, %v615
      %v648 = vadd.f32 %v526, %v616
      %v649 = vadd.f32 %v528, %v617
      %v650 = vadd.f32 %v531, %v618
      %v651 = vadd.f32 %v533, %v619
      %v652 = vadd.f32 %v536, %v620
      %v653 = vadd.f32 %v538, %v621
      %v654 = vadd.f32 %v541, %v622
      %v655 = vadd.f32 %v543, %v623
      %v656 = vadd.f32 %v546, %v624
      %v657 = vadd.f32 %v548, %v625
      %v658 = vadd.f32 %v551, %v626
      %v659 = vadd.f32 %v553, %v627
      %v660 = vadd.f32 %v556, %v628
      %v661 = vadd.f32 %v558, %v629
      %v662 = vadd.f32 %v561, %v630
      %v663 = vadd.f32 %v563, %v631
      %v664 = vadd.f32 %v566, %v632
      %v665 = vadd.f32 %v568, %v633
      %v666 = vmax.f32 %v634, 0.0
      %v667 = vmax.f32 %v635, 0.0
      %v668 = vmax.f32 %v636, 0.0
      %v669 = vmax.f32 %v637, 0.0
      %v670 = vmax.f32 %v638, 0.0
      %v671 = vmax.f32 %v639, 0.0
      %v672 = vmax.f32 %v640, 0.0
      %v673 = vmax.f32 %v641, 0.0
      %v674 = vmax.f32 %v642, 0.0
      %v675 = vmax.f32 %v643, 0.0
      %v676 = vmax.f32 %v644, 0.0
      %v677 = vmax.f32 %v645, 0.0
      %v678 = vmax.f32 %v646, 0.0
      %v679 = vmax.f32 %v647, 0.0
      %v680 = vmax.f32 %v648, 0.0
      %v681 = vmax.f32 %v649, 0.0
      %v682 = vmax.f32 %v650, 0.0
      %v683 = vmax.f32 %v651, 0.0
      %v684 = vmax.f32 %v652, 0.0
      %v685 = vmax.f32 %v653, 0.0
      %v686 = vmax.f32 %v654, 0.0
      %v687 = vmax.f32 %v655, 0.0
      %v688 = vmax.f32 %v656, 0.0
      %v689 = vmax.f32 %v657, 0.0
      %v690 = vmax.f32 %v658, 0.0
      %v691 = vmax.f32 %v659, 0.0
      %v692 = vmax.f32 %v660, 0.0
      %v693 = vmax.f32 %v661, 0.0
      %v694 = vmax.f32 %v662, 0.0
      %v695 = vmax.f32 %v663, 0.0
      %v696 = vmax.f32 %v664, 0.0
      %v697 = vmax.f32 %v665, 0.0
      %698 = vst [vmem:[%s283] sm:$0xff] %v666
      %699 = vst [vmem:[%s283 + $0x8] sm:$0xff] %v667
      %700 = vst [vmem:[%s283 + $0x10] sm:$0xff] %v668
      %701 = vst [vmem:[%s283 + $0x18] sm:$0xff] %v669
      %702 = vst [vmem:[%s283 + $0x20] sm:$0xff] %v670
      %703 = vst [vmem:[%s283 + $0x28] sm:$0xff] %v671
      %704 = vst [vmem:[%s283 + $0x30] sm:$0xff] %v672
      %705 = vst [vmem:[%s283 + $0x38] sm:$0xff] %v673
      %706 = vst [vmem:[%s283 + $0x40] sm:$0xff] %v674
      %707 = vst [vmem:[%s283 + $0x48] sm:$0xff] %v675
      %708 = vst [vmem:[%s283 + $0x50] sm:$0xff] %v676
      %709 = vst [vmem:[%s283 + $0x58] sm:$0xff] %v677
      %710 = vst [vmem:[%s283 + $0x60] sm:$0xff] %v678
      %711 = vst [vmem:[%s283 + $0x68] sm:$0xff] %v679
      %712 = vst [vmem:[%s283 + $0x70] sm:$0xff] %v680
      %713 = vst [vmem:[%s283 + $0x78] sm:$0xff] %v681
      %714 = vst [vmem:[%s283 + $0x80] sm:$0xff] %v682
      %715 = vst [vmem:[%s283 + $0x88] sm:$0xff] %v683
      %716 = vst [vmem:[%s283 + $0x90] sm:$0xff] %v684
      %717 = vst [vmem:[%s283 + $0x98] sm:$0xff] %v685
      %718 = vst [vmem:[%s283 + $0xa0] sm:$0xff] %v686
      %719 = vst [vmem:[%s283 + $0xa8] sm:$0xff] %v687
      %720 = vst [vmem:[%s283 + $0xb0] sm:$0xff] %v688
      %721 = vst [vmem:[%s283 + $0xb8] sm:$0xff] %v689
      %722 = vst [vmem:[%s283 + $0xc0] sm:$0xff] %v690
      %723 = vst [vmem:[%s283 + $0xc8] sm:$0xff] %v691
      %724 = vst [vmem:[%s283 + $0xd0] sm:$0xff] %v692
      %725 = vst [vmem:[%s283 + $0xd8] sm:$0xff] %v693
      %726 = vst [vmem:[%s283 + $0xe0] sm:$0xff] %v694
      %727 = vst [vmem:[%s283 + $0xe8] sm:$0xff] %v695
      %728 = vst [vmem:[%s283 + $0xf0] sm:$0xff] %v696
      %729 = vst [vmem:[%s283 + $0xf8] sm:$0xff] %v697
      %s730 = smul.u32 32, %s19
      %p731 = scmp.lt.s32.totalorder %s730, 63
      %s732 = scalar_select %p731, %s730, 63
      %p733 = scmp.lt.s32.totalorder %s20, 0
      %s734 = scalar_select %p733, %s20, 0
      %s735 = sadd.s32 %s734, %s732
      %s736 = smul.addr %s735, 8
      %s737 = scalar_lea.vmem %s4, %s736
      // Predicated region
      $region37: #{bottleneck_forward.7} parent=35 // pred_check
        %p738 = pneg %p153
      $region38: #{bottleneck_forward.7} parent=35 // pred_check_branch
        %740 = sbr.rel (%p738) target = $region40
      $region39: #{bottleneck_forward.7} parent=35 // pred_region
        %s741 = smul.u32 32, %s19
      $region40: #{bottleneck_forward.7} parent=35 // pred_fallthru
        _
    $region36: #{bottleneck_forward.7} parent=5 // pred_fallthru
      _
    %p742 = scmp.le.s32.totalorder 2, %s10
    // Predicated region
    $region41: #{bottleneck_forward.7} parent=5 // pred_check
      %p743 = pneg %p742
    $region42: #{bottleneck_forward.7} parent=5 // pred_check_branch
      %745 = sbr.rel (%p743) target = $region44
    $region43: #{bottleneck_forward.7} parent=5 // pred_region
      %s746 = ssub.s32 %s10, 2
      // Predicated region
      $region45: #{bottleneck_forward.7} parent=43 // pred_check
        %p747 = pneg %p159
      $region46: #{bottleneck_forward.7} parent=43 // pred_check_branch
        %749 = sbr.rel (%p747) target = $region48
      $region47: #{bottleneck_forward.7} parent=43 // pred_region
        %s750 = smul.u32 32, %s21
        %p751 = scmp.lt.s32.totalorder %s750, 63
        %s752 = scalar_select %p751, %s750, 63
        %p753 = scmp.lt.s32.totalorder %s22, 0
        %s754 = scalar_select %p753, %s22, 0
        %s755 = sadd.s32 %s754, %s752
        %s756 = smul.addr %s755, 8
        %s757 = scalar_lea.vmem %s4, %s756
      $region48: #{bottleneck_forward.7} parent=43 // pred_fallthru
        _
    $region44: #{bottleneck_forward.7} parent=5 // pred_fallthru
      _
  $region6: #{bottleneck_forward.7} parent=0 // loop_footer
    %s14 = sadd.s32 1, %s10
  $region7: #{bottleneck_forward.7} parent=0 // loop_footer_branch
    %9 = sbr.rel target = $region3
  $region8: #{bottleneck_forward.7} parent=0 // loop_exit
    _

// kernel: bottleneck_forward.5
$region0: #{bottleneck_forward.5}
  #allocation0 [shape = 'u32[]', space=smem, size = 0x4, offset = 0x4, fixed_abs, tag = 'smem constant byte address 0x4 - core index']
  #allocation1 [shape = 'u32[72,128]{1,0:T(1,128)}', space=vmem, size = 0x9000, scoped, tag = 'internal scratch']
  %s0 = inlined_call_operand.vmem [shape: bf16[2,18,18,128], index: 0, kind: input, shape index: {}]
  %s1 = inlined_call_operand.vmem [shape: bf16[9,128,128], index: 1, kind: input, shape index: {}]
  %s2 = inlined_call_operand.vmem [shape: f32[1,128], index: 2, kind: input, shape index: {}]
  %s3 = inlined_call_operand.vmem [shape: bf16[2,256,128], index: 3, kind: output, shape index: {}]
  %s4 = sld [smem:[#allocation0]]
  $region45: #{bottleneck_forward.5} parent=0
    _
  %s6 = ssub.s32 1, %s4
  %s7 = scalar_select 0, %s6, %s4
  loop: start=0, step=1, limit=6
  $region2: #{bottleneck_forward.5} parent=0 // loop_pre_header
    _
  $region3: #{bottleneck_forward.5} parent=0 // loop_header
    %s9 = sphi 0, %s13
    %p10 = scmp.ge.s32.totalorder %s9, 6
    %s16 = sphi 0, %s28
    %s17 = sphi 0, %s24
    %s18 = sphi 0, %s16
    %s19 = sphi 0, %s17
    %s20 = sphi 0, %s18
    %s21 = sphi 0, %s19
    %s31 = sphi 0, %s33
    %s34 = sphi 0, %s31
    %s35 = sphi 0, %s34
    %s51 = sphi 0, %s35
    %s55 = sphi 0, %s55
    %s57 = sphi 0, %s55
    %s58 = sphi 0, %s57
    %s72 = sphi 0, %s58
    %s76 = sphi 0, %s76
    %s78 = sphi 0, %s76
    %s79 = sphi 0, %s78
    %s93 = sphi 0, %s79
    %s101 = sphi 0, %s103
    %s104 = sphi 0, %s101
    %s105 = sphi 0, %s104
    %s121 = sphi 0, %s105
  $region4: #{bottleneck_forward.5} parent=0 // loop_header_branch
    %12 = sbr.rel (%p10) target = $region8
  $region5: #{bottleneck_forward.5} parent=0 // loop_body
    %s14 = ssub.s32 %s9, 1
    %s15 = ssub.s32 %s9, 2
    %s22 = sadd.s32 1, %s17
    %p23 = scmp.ge.s32.totalorder %s22, 2
    %s24 = scalar_select %p23, 0, %s22
    %s25 = sadd.s32 1, %s16
    %s26 = scalar_select %p23, %s25, %s16
    %p27 = scmp.ge.s32.totalorder %s26, 2
    %s28 = scalar_select %p27, 0, %s26
    %s29 = ssub.s32 %s16, %s28
    %p30 = scmp.eq.s32.totalorder %s29, 0
    %s32 = sadd.s32 %s31, 1
    %s33 = scalar_select %p30, %s31, %s32
    %p36 = pneg %p30
    %p37 = scmp.eq.s32.totalorder %s9, 3
    %p38 = por %p36, %p37
    %p39 = scmp.ne.s32.totalorder %s31, %s34
    %p40 = scmp.eq.s32.totalorder %s9, 0
    %p41 = por %p39, %p40
    %p42 = scmp.ne.s32.totalorder %s31, %s34
    %p43 = scmp.eq.s32.totalorder %s14, 3
    %p44 = por %p42, %p43
    %p45 = scmp.ne.s32.totalorder %s34, %s35
    %p46 = scmp.eq.s32.totalorder %s14, 0
    %p47 = por %p45, %p46
    %p48 = scmp.ne.s32.totalorder %s34, %s35
    %p49 = scmp.eq.s32.totalorder %s15, 3
    %p50 = por %p48, %p49
    %p52 = scmp.ne.s32.totalorder %s35, %s51
    %p53 = scmp.eq.s32.totalorder %s15, 0
    %p54 = por %p52, %p53
    %s56 = sadd.s32 %s55, 1
    %p59 = scmp.eq.s32.totalorder %s9, 3
    %p60 = scmp.ne.s32.totalorder %s55, %s57
    %p61 = scmp.eq.s32.totalorder %s9, 0
    %p62 = por %p60, %p61
    %p63 = scmp.ne.s32.totalorder %s55, %s57
    %p64 = scmp.eq.s32.totalorder %s14, 3
    %p65 = por %p63, %p64
    %p66 = scmp.ne.s32.totalorder %s57, %s58
    %p67 = scmp.eq.s32.totalorder %s14, 0
    %p68 = por %p66, %p67
    %p69 = scmp.ne.s32.totalorder %s57, %s58
    %p70 = scmp.eq.s32.totalorder %s15, 3
    %p71 = por %p69, %p70
    %p73 = scmp.ne.s32.totalorder %s58, %s72
    %p74 = scmp.eq.s32.totalorder %s15, 0
    %p75 = por %p73, %p74
    %s77 = sadd.s32 %s76, 1
    %p80 = scmp.eq.s32.totalorder %s9, 3
    %p81 = scmp.ne.s32.totalorder %s76, %s78
    %p82 = scmp.eq.s32.totalorder %s9, 0
    %p83 = por %p81, %p82
    %p84 = scmp.ne.s32.totalorder %s76, %s78
    %p85 = scmp.eq.s32.totalorder %s14, 3
    %p86 = por %p84, %p85
    %p87 = scmp.ne.s32.totalorder %s78, %s79
    %p88 = scmp.eq.s32.totalorder %s14, 0
    %p89 = por %p87, %p88
    %p90 = scmp.ne.s32.totalorder %s78, %s79
    %p91 = scmp.eq.s32.totalorder %s15, 3
    %p92 = por %p90, %p91
    %p94 = scmp.ne.s32.totalorder %s79, %s93
    %p95 = scmp.eq.s32.totalorder %s15, 0
    %p96 = por %p94, %p95
    %s97 = ssub.s32 %s16, %s28
    %s98 = ssub.s32 %s17, %s24
    %s99 = sor.u32 %s97, %s98
    %p100 = scmp.eq.s32.totalorder %s99, 0
    %s102 = sadd.s32 %s101, 1
    %s103 = scalar_select %p100, %s101, %s102
    %p106 = pneg %p100
    %p107 = scmp.eq.s32.totalorder %s9, 3
    %p108 = por %p106, %p107
    %p109 = scmp.ne.s32.totalorder %s101, %s104
    %p110 = scmp.eq.s32.totalorder %s9, 0
    %p111 = por %p109, %p110
    %p112 = scmp.ne.s32.totalorder %s101, %s104
    %p113 = scmp.eq.s32.totalorder %s14, 3
    %p114 = por %p112, %p113
    %p115 = scmp.ne.s32.totalorder %s104, %s105
    %p116 = scmp.eq.s32.totalorder %s14, 0
    %p117 = por %p115, %p116
    %p118 = scmp.ne.s32.totalorder %s104, %s105
    %p119 = scmp.eq.s32.totalorder %s15, 3
    %p120 = por %p118, %p119
    %p122 = scmp.ne.s32.totalorder %s105, %s121
    %p123 = scmp.eq.s32.totalorder %s15, 0
    %p124 = por %p122, %p123
    %p125 = scmp.le.s32.totalorder 1, %s9
    %p126 = scmp.lt.s32.totalorder %s9, 5
    %p127 = pnand %p125, %p126
    %p128 = pneg %p127
    // Predicated region
    $region9: #{bottleneck_forward.5} parent=5 // pred_check
      _
    $region10: #{bottleneck_forward.5} parent=5 // pred_check_branch
      %130 = sbr.rel (%p127) target = $region12
    $region11: #{bottleneck_forward.5} parent=5 // pred_region
      %s131 = ssub.s32 %s9, 1
      // Predicated region
      $region13: #{bottleneck_forward.5} parent=11 // pred_check
        %p132 = pneg %p68
      $region14: #{bottleneck_forward.5} parent=11 // pred_check_branch
        %134 = sbr.rel (%p132) target = $region16
      $region15: #{bottleneck_forward.5} parent=11 // pred_region
        _
      $region16: #{bottleneck_forward.5} parent=11 // pred_fallthru
        _
      // Predicated region
      $region17: #{bottleneck_forward.5} parent=11 // pred_check
        %p135 = pneg %p89
      $region18: #{bottleneck_forward.5} parent=11 // pred_check_branch
        %137 = sbr.rel (%p135) target = $region20
      $region19: #{bottleneck_forward.5} parent=11 // pred_region
        _
      $region20: #{bottleneck_forward.5} parent=11 // pred_fallthru
        _
    $region12: #{bottleneck_forward.5} parent=5 // pred_fallthru
      _
    %p138 = scmp.lt.s32.totalorder %s9, 4
    // Predicated region
    $region21: #{bottleneck_forward.5} parent=5 // pred_check
      %p139 = pneg %p138
    $region22: #{bottleneck_forward.5} parent=5 // pred_check_branch
      %141 = sbr.rel (%p139) target = $region24
    $region23: #{bottleneck_forward.5} parent=5 // pred_region
      // Predicated region
      $region25: #{bottleneck_forward.5} parent=23 // pred_check
        %p142 = pneg %p41
      $region26: #{bottleneck_forward.5} parent=23 // pred_check_branch
        %144 = sbr.rel (%p142) target = $region28
      $region27: #{bottleneck_forward.5} parent=23 // pred_region
        %p145 = scmp.lt.s32.totalorder %s16, 1
        %s146 = scalar_select %p145, %s16, 1
        %s147 = smul.addr %s146, 54
        %s148 = smul.addr %s147, 4
        %s149 = scalar_lea.vmem %s0, %s148
      $region28: #{bottleneck_forward.5} parent=23 // pred_fallthru
        _
    $region24: #{bottleneck_forward.5} parent=5 // pred_fallthru
      _
    %p150 = scmp.le.s32.totalorder 1, %s9
    %p151 = scmp.lt.s32.totalorder %s9, 5
    %p152 = pnand %p150, %p151
    %p153 = pneg %p152
    // Predicated region
    $region29: #{bottleneck_forward.5} parent=5 // pred_check
      _
    $region30: #{bottleneck_forward.5} parent=5 // pred_check_branch
      %155 = sbr.rel (%p152) target = $region32
    $region31: #{bottleneck_forward.5} parent=5 // pred_region
      %s156 = ssub.s32 %s9, 1
      %p157 = scmp.lt.s32.totalorder %s18, 1
      %s158 = scalar_select %p157, %s18, 1
      %s159 = smul.addr %s158, 54
      %s160 = smul.addr %s159, 4
      %s161 = scalar_lea.vmem %s0, %s160
      %p162 = pneg %p47
      %p163 = pneg %p44
      %p164 = pneg %p68
      %p165 = pneg %p65
      %p166 = pneg %p89
      %p167 = pneg %p86
      %p168 = pneg %p117
      %p169 = pneg %p114
      %s170 = smul.u32 16, %s19
      %p171 = scmp.lt.s32.totalorder %s18, 1
      %s172 = scalar_select %p171, %s18, 1
      %p173 = scmp.lt.s32.totalorder %s170, 31
      %s174 = scalar_select %p173, %s170, 31
      %s175 = smul.addr %s172, 32
      %s176 = sadd.s32 %s174, %s175
      %s177 = smul.addr %s176, 4
      %s178 = scalar_lea.vmem %s3, %s177
      %p179 = scmp.lt.s32.totalorder %s18, 1
      %s180 = scalar_select %p179, %s18, 1
      %s181 = smul.addr %s180, 54
      %s182 = smul.addr %s181, 4
      %s183 = scalar_lea.vmem %s0, %s182
      %s184 = smul.u32 16, %s19
      %p185 = scmp.lt.s32.totalorder %s18, 1
      %s186 = scalar_select %p185, %s18, 1
      %p187 = scmp.lt.s32.totalorder %s184, 31
      %s188 = scalar_select %p187, %s184, 31
      %s189 = smul.addr %s186, 32
      %s190 = sadd.s32 %s188, %s189
      %s191 = smul.addr %s190, 4
      %s192 = scalar_lea.vmem %s3, %s191
      %s193 = smul.u32 16, %s19
      %s194 = smul.u32 %s19, 8
      %s195 = smul.u32 %s194, 3
      %s196 = smul.addr %s195, 4
      %s197 = scalar_lea.vmem %s183, %s196
      %v198 = vld [vmem:[%s197] sm:$0xf]
      %v199 = vld [vmem:[%s197 + $0x4] sm:$0xf]
      %v200 = vld [vmem:[%s197 + $0xc] sm:$0xf]
      %v201 = vld [vmem:[%s197 + $0x10] sm:$0xf]
      %v202 = vld [vmem:[%s197 + $0x18] sm:$0xf]
      %v203 = vld [vmem:[%s197 + $0x1c] sm:$0xf]
      %v204 = vld [vmem:[%s197 + $0x24] sm:$0xf]
      %v205 = vld [vmem:[%s197 + $0x28] sm:$0xf]
      %v206 = vld [vmem:[%s197 + $0x30] sm:$0xf]
      %v207 = vld [vmem:[%s197 + $0x34] sm:$0xf]
      %v208 = vld [vmem:[%s197 + $0x3c] sm:$0xf]
      %v209 = vld [vmem:[%s197 + $0x40] sm:$0xf]
      %v210 = vld [vmem:[%s197 + $0x48] sm:$0xf]
      %v211 = vld [vmem:[%s197 + $0x4c] sm:$0xf]
      %v212 = vld [vmem:[%s197 + $0x54] sm:$0xf]
      %v213 = vld [vmem:[%s197 + $0x58] sm:$0xf]
      %v214 = vld [vmem:[%s1] sm:$0xf]
      %v215 = vld [vmem:[%s1 + $0x4] sm:$0xf]
      %v216 = vld [vmem:[%s1 + $0x8] sm:$0xf]
      %v217 = vld [vmem:[%s1 + $0xc] sm:$0xf]
      %v218 = vld [vmem:[%s1 + $0x10] sm:$0xf]
      %v219 = vld [vmem:[%s1 + $0x14] sm:$0xf]
      %v220 = vld [vmem:[%s1 + $0x18] sm:$0xf]
      %v221 = vld [vmem:[%s1 + $0x1c] sm:$0xf]
      %v222 = vld [vmem:[%s1 + $0x20] sm:$0xf]
      %v223 = vld [vmem:[%s1 + $0x24] sm:$0xf]
      %v224 = vld [vmem:[%s1 + $0x28] sm:$0xf]
      %v225 = vld [vmem:[%s1 + $0x2c] sm:$0xf]
      %v226 = vld [vmem:[%s1 + $0x30] sm:$0xf]
      %v227 = vld [vmem:[%s1 + $0x34] sm:$0xf]
      %v228 = vld [vmem:[%s1 + $0x38] sm:$0xf]
      %v229 = vld [vmem:[%s1 + $0x3c] sm:$0xf]
      %v230 = vld [vmem:[%s197 + $0x8] sm:$0x1]
      %v231 = vld [vmem:[%s197 + $0x14] sm:$0x1]
      %v232 = vld [vmem:[%s197 + $0x20] sm:$0x1]
      %v233 = vld [vmem:[%s197 + $0x2c] sm:$0x1]
      %v234 = vld [vmem:[%s197 + $0x38] sm:$0x1]
      %v235 = vld [vmem:[%s197 + $0x44] sm:$0x1]
      %v236 = vld [vmem:[%s197 + $0x50] sm:$0x1]
      %v237 = vld [vmem:[%s197 + $0x5c] sm:$0x1]
      %vm238 = vsmask.f32 3328
      %vm239 = vsmask.f32 7440
      %vm240 = vmor %vm238, %vm239
      %v242 = vshrl.u32 %v198, 16
      %v244 = vrot.slane %v242, 4
      %v245 = vshll.u32 %v198, 16
      %v247 = vrot.slane %v245, 5
      %v248 = vor.u32 %v244, %v247
      %v249 = vrot.slane %v248, 4
      %v251 = vshll.u32 %v199, 16
      %v253 = vrot.slane %v251, 5
      %v254 = vsel %vm240, %v249, %v253
      %v255 = vshrl.u32 %v199, 16
      %v257 = vrot.slane %v255, 4
      %v258 = vor.u32 %v257, %v253
      %v259 = vrot.slane %v258, 4
      %v261 = vshll.u32 %v230, 16
      %v263 = vrot.slane %v261, 5
      %v264 = vsel %vm240, %v259, %v263
      %v266 = vshrl.u32 %v200, 16
      %v268 = vrot.slane %v266, 4
      %v269 = vshll.u32 %v200, 16
      %v271 = vrot.slane %v269, 5
      %v272 = vor.u32 %v268, %v271
      %v273 = vrot.slane %v272, 4
      %v275 = vshll.u32 %v201, 16
      %v277 = vrot.slane %v275, 5
      %v278 = vsel %vm240, %v273, %v277
      %v279 = vshrl.u32 %v201, 16
      %v281 = vrot.slane %v279, 4
      %v282 = vor.u32 %v281, %v277
      %v283 = vrot.slane %v282, 4
      %v285 = vshll.u32 %v231, 16
      %v287 = vrot.slane %v285, 5
      %v288 = vsel %vm240, %v283, %v287
      %v290 = vshrl.u32 %v202, 16
      %v292 = vrot.slane %v290, 4
      %v293 = vshll.u32 %v202, 16
      %v295 = vrot.slane %v293, 5
      %v296 = vor.u32 %v292, %v295
      %v297 = vrot.slane %v296, 4
      %v299 = vshll.u32 %v203, 16
      %v301 = vrot.slane %v299, 5
      %v302 = vsel %vm240, %v297, %v301
      %v303 = vshrl.u32 %v203, 16
      %v305 = vrot.slane %v303, 4
      %v306 = vor.u32 %v305, %v301
      %v307 = vrot.slane %v306, 4
      %v309 = vshll.u32 %v232, 16
      %v311 = vrot.slane %v309, 5
      %v312 = vsel %vm240, %v307, %v311
      %v314 = vshrl.u32 %v204, 16
      %v316 = vrot.slane %v314, 4
      %v317 = vshll.u32 %v204, 16
      %v319 = vrot.slane %v317, 5
      %v320 = vor.u32 %v316, %v319
      %v321 = vrot.slane %v320, 4
      %v323 = vshll.u32 %v205, 16
      %v325 = vrot.slane %v323, 5
      %v326 = vsel %vm240, %v321, %v325
      %v327 = vshrl.u32 %v205, 16
      %v329 = vrot.slane %v327, 4
      %v330 = vor.u32 %v329, %v325
      %v331 = vrot.slane %v330, 4
      %v333 = vshll.u32 %v233, 16
      %v335 = vrot.slane %v333, 5
      %v336 = vsel %vm240, %v331, %v335
      %v338 = vshrl.u32 %v206, 16
      %v340 = vrot.slane %v338, 4
      %v341 = vshll.u32 %v206, 16
      %v343 = vrot.slane %v341, 5
      %v344 = vor.u32 %v340, %v343
      %v345 = vrot.slane %v344, 4
      %v347 = vshll.u32 %v207, 16
      %v349 = vrot.slane %v347, 5
      %v350 = vsel %vm240, %v345, %v349
      %v351 = vshrl.u32 %v207, 16
      %v353 = vrot.slane %v351, 4
      %v354 = vor.u32 %v353, %v349
      %v355 = vrot.slane %v354, 4
      %v357 = vshll.u32 %v234, 16
      %v359 = vrot.slane %v357, 5
      %v360 = vsel %vm240, %v355, %v359
      %v362 = vshrl.u32 %v208, 16
      %v364 = vrot.slane %v362, 4
      %v365 = vshll.u32 %v208, 16
      %v367 = vrot.slane %v365, 5
      %v368 = vor.u32 %v364, %v367
      %v369 = vrot.slane %v368, 4
      %v371 = vshll.u32 %v209, 16
      %v373 = vrot.slane %v371, 5
      %v374 = vsel %vm240, %v369, %v373
      %v375 = vshrl.u32 %v209, 16
      %v377 = vrot.slane %v375, 4
      %v378 = vor.u32 %v377, %v373
      %v379 = vrot.slane %v378, 4
      %v381 = vshll.u32 %v235, 16
      %v383 = vrot.slane %v381, 5
      %v384 = vsel %vm240, %v379, %v383
      %v386 = vshrl.u32 %v210, 16
      %v388 = vrot.slane %v386, 4
      %v389 = vshll.u32 %v210, 16
      %v391 = vrot.slane %v389, 5
      %v392 = vor.u32 %v388, %v391
      %v393 = vrot.slane %v392, 4
      %v395 = vshll.u32 %v211, 16
      %v397 = vrot.slane %v395, 5
      %v398 = vsel %vm240, %v393, %v397
      %v399 = vshrl.u32 %v211, 16
      %v401 = vrot.slane %v399, 4
      %v402 = vor.u32 %v401, %v397
      %v403 = vrot.slane %v402, 4
      %v405 = vshll.u32 %v236, 16
      %v407 = vrot.slane %v405, 5
      %v408 = vsel %vm240, %v403, %v407
      %v410 = vshrl.u32 %v212, 16
      %v412 = vrot.slane %v410, 4
      %v413 = vshll.u32 %v212, 16
      %v415 = vrot.slane %v413, 5
      %v416 = vor.u32 %v412, %v415
      %v417 = vrot.slane %v416, 4
      %v419 = vshll.u32 %v213, 16
      %v421 = vrot.slane %v419, 5
      %v422 = vsel %vm240, %v417, %v421
      %v423 = vshrl.u32 %v213, 16
      %v425 = vrot.slane %v423, 4
      %v426 = vor.u32 %v425, %v421
      %v427 = vrot.slane %v426, 4
      %v429 = vshll.u32 %v237, 16
      %v431 = vrot.slane %v429, 5
      %v432 = vsel %vm240, %v427, %v431
      %s433 = scalar_lea.vmem %s1, 64
      %v434 = vld [vmem:[%s433] sm:$0xf]
      %v435 = vld [vmem:[%s433 + $0x4] sm:$0xf]
      %v436 = vld [vmem:[%s433 + $0x8] sm:$0xf]
      %v437 = vld [vmem:[%s433 + $0xc] sm:$0xf]
      %v438 = vld [vmem:[%s433 + $0x10] sm:$0xf]
      %v439 = vld [vmem:[%s433 + $0x14] sm:$0xf]
      %v440 = vld [vmem:[%s433 + $0x18] sm:$0xf]
      %v441 = vld [vmem:[%s433 + $0x1c] sm:$0xf]
      %v442 = vld [vmem:[%s433 + $0x20] sm:$0xf]
      %v443 = vld [vmem:[%s433 + $0x24] sm:$0xf]
      %v444 = vld [vmem:[%s433 + $0x28] sm:$0xf]
      %v445 = vld [vmem:[%s433 + $0x2c] sm:$0xf]
      %v446 = vld [vmem:[%s433 + $0x30] sm:$0xf]
      %v447 = vld [vmem:[%s433 + $0x34] sm:$0xf]
      %v448 = vld [vmem:[%s433 + $0x38] sm:$0xf]
      %v449 = vld [vmem:[%s433 + $0x3c] sm:$0xf]
      %v450 = vunpack.c.l.b16 %v254
      %v451 = vunpack.c.l.b16 %v264
      %v452 = vunpack.c.l.b16 %v278
      %v453 = vunpack.c.l.b16 %v288
      %v454 = vunpack.c.l.b16 %v302
      %v455 = vunpack.c.l.b16 %v312
      %v456 = vunpack.c.l.b16 %v326
      %v457 = vunpack.c.l.b16 %v336
      %v458 = vunpack.c.l.b16 %v350
      %v459 = vunpack.c.l.b16 %v360
      %v460 = vunpack.c.l.b16 %v374
      %v461 = vunpack.c.l.b16 %v384
      %v462 = vunpack.c.l.b16 %v398
      %v463 = vunpack.c.l.b16 %v408
      %v464 = vunpack.c.l.b16 %v422
      %v465 = vunpack.c.l.b16 %v432
      %v466 = vpack.c.b16 %v451, %v450
      %v467 = vpack.c.b16 %v453, %v452
      %v468 = vpack.c.b16 %v455, %v454
      %v469 = vpack.c.b16 %v457, %v456
      %v470 = vpack.c.b16 %v459, %v458
      %v471 = vpack.c.b16 %v461, %v460
      %v472 = vpack.c.b16 %v463, %v462
      %v473 = vpack.c.b16 %v465, %v464
      %v498 = vunpack.c.l.b16 %v434
      %v499 = vunpack.c.l.b16 %v435
      %v500 = vunpack.c.l.b16 %v436
      %v501 = vunpack.c.l.b16 %v437
      %v502 = vunpack.c.l.b16 %v438
      %v503 = vunpack.c.l.b16 %v439
      %v504 = vunpack.c.l.b16 %v440
      %v505 = vunpack.c.l.b16 %v441
      %v506 = vunpack.c.l.b16 %v442
      %v507 = vunpack.c.l.b16 %v443
      %v508 = vunpack.c.l.b16 %v444
      %v509 = vunpack.c.l.b16 %v445
      %v510 = vunpack.c.l.b16 %v446
      %v511 = vunpack.c.l.b16 %v447
      %v512 = vunpack.c.l.b16 %v448
      %v513 = vunpack.c.l.b16 %v449
      %v514 = vpack.c.b16 %v499, %v498
      %v515 = vpack.c.b16 %v501, %v500
      %v516 = vpack.c.b16 %v503, %v502
      %v517 = vpack.c.b16 %v505, %v504
      %v518 = vpack.c.b16 %v507, %v506
      %v519 = vpack.c.b16 %v509, %v508
      %v520 = vpack.c.b16 %v511, %v510
      %v521 = vpack.c.b16 %v513, %v512
      %530 = vmatpush.bf16.msra.mxu0 %v521
      %531 = vmatpush.bf16.msra.mxu0 %v520
      %532 = vmatpush.bf16.msra.mxu0 %v519
      %533 = vmatpush.bf16.msra.mxu0 %v518
      %534 = vmatpush.bf16.msra.mxu0 %v517
      %535 = vmatpush.bf16.msra.mxu0 %v516
      %536 = vmatpush.bf16.msra.mxu0 %v515
      %537 = vmatpush.bf16.msra.mxu0 %v514
      %538 = vmatmul.bf16.gmra.mxu0 %v466
      %v539 = vpop.f32.mrf.mxu0
      %v540 = vadd.f32 0.0, %v539
      %v541 = vpop.f32.mrf.mxu0
      %v542 = vadd.f32 0.0, %v541
      %543 = vmatmul.bf16.gmra.mxu0 %v467
      %v544 = vpop.f32.mrf.mxu0
      %v545 = vadd.f32 0.0, %v544
      %v546 = vpop.f32.mrf.mxu0
      %v547 = vadd.f32 0.0, %v546
      %548 = vmatmul.bf16.gmra.mxu0 %v468
      %v549 = vpop.f32.mrf.mxu0
      %v550 = vadd.f32 0.0, %v549
      %v551 = vpop.f32.mrf.mxu0
      %v552 = vadd.f32 0.0, %v551
      %553 = vmatmul.bf16.gmra.mxu0 %v469
      %v554 = vpop.f32.mrf.mxu0
      %v555 = vadd.f32 0.0, %v554
      %v556 = vpop.f32.mrf.mxu0
      %v557 = vadd.f32 0.0, %v556
      %558 = vmatmul.bf16.gmra.mxu0 %v470
      %v559 = vpop.f32.mrf.mxu0
      %v560 = vadd.f32 0.0, %v559
      %v561 = vpop.f32.mrf.mxu0
      %v562 = vadd.f32 0.0, %v561
      %563 = vmatmul.bf16.gmra.mxu0 %v471
      %v564 = vpop.f32.mrf.mxu0
      %v565 = vadd.f32 0.0, %v564
      %v566 = vpop.f32.mrf.mxu0
      %v567 = vadd.f32 0.0, %v566
      %568 = vmatmul.bf16.gmra.mxu0 %v472
      %v569 = vpop.f32.mrf.mxu0
      %v570 = vadd.f32 0.0, %v569
      %v571 = vpop.f32.mrf.mxu0
      %v572 = vadd.f32 0.0, %v571
      %573 = vmatmul.bf16.gmra.mxu0 %v473
      %v574 = vpop.f32.mrf.mxu0
      %v575 = vadd.f32 0.0, %v574
      %v576 = vpop.f32.mrf.mxu0
      %v577 = vadd.f32 0.0, %v576
      %578 = vdwg.mxu0
      %v595 = vunpack.c.l.b16 %v198
      %v596 = vunpack.c.l.b16 %v199
      %v597 = vunpack.c.l.b16 %v200
      %v598 = vunpack.c.l.b16 %v201
      %v599 = vunpack.c.l.b16 %v202
      %v600 = vunpack.c.l.b16 %v203
      %v601 = vunpack.c.l.b16 %v204
      %v602 = vunpack.c.l.b16 %v205
      %v603 = vunpack.c.l.b16 %v206
      %v604 = vunpack.c.l.b16 %v207
      %v605 = vunpack.c.l.b16 %v208
      %v606 = vunpack.c.l.b16 %v209
      %v607 = vunpack.c.l.b16 %v210
      %v608 = vunpack.c.l.b16 %v211
      %v609 = vunpack.c.l.b16 %v212
      %v610 = vunpack.c.l.b16 %v213
      %v611 = vpack.c.b16 %v596, %v595
      %v612 = vpack.c.b16 %v598, %v597
      %v613 = vpack.c.b16 %v600, %v599
      %v614 = vpack.c.b16 %v602, %v601
      %v615 = vpack.c.b16 %v604, %v603
      %v616 = vpack.c.b16 %v606, %v605
      %v617 = vpack.c.b16 %v608, %v607
      %v618 = vpack.c.b16 %v610, %v609
      %v643 = vunpack.c.l.b16 %v214
      %v644 = vunpack.c.l.b16 %v215
      %v645 = vunpack.c.l.b16 %v216
      %v646 = vunpack.c.l.b16 %v217
      %v647 = vunpack.c.l.b16 %v218
      %v648 = vunpack.c.l.b16 %v219
      %v649 = vunpack.c.l.b16 %v220
      %v650 = vunpack.c.l.b16 %v221
      %v651 = vunpack.c.l.b16 %v222
      %v652 = vunpack.c.l.b16 %v223
      %v653 = vunpack.c.l.b16 %v224
      %v654 = vunpack.c.l.b16 %v225
      %v655 = vunpack.c.l.b16 %v226
      %v656 = vunpack.c.l.b16 %v227
      %v657 = vunpack.c.l.b16 %v228
      %v658 = vunpack.c.l.b16 %v229
      %v659 = vpack.c.b16 %v644, %v643
      %v660 = vpack.c.b16 %v646, %v645
      %v661 = vpack.c.b16 %v648, %v647
      %v662 = vpack.c.b16 %v650, %v649
      %v663 = vpack.c.b16 %v652, %v651
      %v664 = vpack.c.b16 %v654, %v653
      %v665 = vpack.c.b16 %v656, %v655
      %v666 = vpack.c.b16 %v658, %v657
      %675 = vmatpush.bf16.msra.mxu0 %v666
      %676 = vmatpush.bf16.msra.mxu0 %v665
      %677 = vmatpush.bf16.msra.mxu0 %v664
      %678 = vmatpush.bf16.msra.mxu0 %v663
      %679 = vmatpush.bf16.msra.mxu0 %v662
      %680 = vmatpush.bf16.msra.mxu0 %v661
      %681 = vmatpush.bf16.msra.mxu0 %v660
      %682 = vmatpush.bf16.msra.mxu0 %v659
      %683 = vmatmul.bf16.gmra.mxu0 %v611
      %v684 = vpop.f32.mrf.mxu0
      %v685 = vadd.f32 %v540, %v684
      %v686 = vpop.f32.mrf.mxu0
      %v687 = vadd.f32 %v542, %v686
      %688 = vmatmul.bf16.gmra.mxu0 %v612
      %v689 = vpop.f32.mrf.mxu0
      %v690 = vadd.f32 %v545, %v689
      %v691 = vpop.f32.mrf.mxu0
      %v692 = vadd.f32 %v547, %v691
      %693 = vmatmul.bf16.gmra.mxu0 %v613
      %v694 = vpop.f32.mrf.mxu0
      %v695 = vadd.f32 %v550, %v694
      %v696 = vpop.f32.mrf.mxu0
      %v697 = vadd.f32 %v552, %v696
      %698 = vmatmul.bf16.gmra.mxu0 %v614
      %v699 = vpop.f32.mrf.mxu0
      %v700 = vadd.f32 %v555, %v699
      %v701 = vpop.f32.mrf.mxu0
      %v702 = vadd.f32 %v557, %v701
      %703 = vmatmul.bf16.gmra.mxu0 %v615
      %v704 = vpop.f32.mrf.mxu0
      %v705 = vadd.f32 %v560, %v704
      %v706 = vpop.f32.mrf.mxu0
      %v707 = vadd.f32 %v562, %v706
      %708 = vmatmul.bf16.gmra.mxu0 %v616
      %v709 = vpop.f32.mrf.mxu0
      %v710 = vadd.f32 %v565, %v709
      %v711 = vpop.f32.mrf.mxu0
      %v712 = vadd.f32 %v567, %v711
      %713 = vmatmul.bf16.gmra.mxu0 %v617
      %v714 = vpop.f32.mrf.mxu0
      %v715 = vadd.f32 %v570, %v714
      %v716 = vpop.f32.mrf.mxu0
      %v717 = vadd.f32 %v572, %v716
      %718 = vmatmul.bf16.gmra.mxu0 %v618
      %v719 = vpop.f32.mrf.mxu0
      %v720 = vadd.f32 %v575, %v719
      %v721 = vpop.f32.mrf.mxu0
      %v722 = vadd.f32 %v577, %v721
      %723 = vdwg.mxu0
      %v724 = vld [vmem:[%s197] sm:$0xe]
      %v725 = vld [vmem:[%s197 + $0xc] sm:$0xe]
      %v726 = vld [vmem:[%s197 + $0x18] sm:$0xe]
      %v727 = vld [vmem:[%s197 + $0x24] sm:$0xe]
      %v728 = vld [vmem:[%s197 + $0x30] sm:$0xe]
      %v729 = vld [vmem:[%s197 + $0x3c] sm:$0xe]
      %v730 = vld [vmem:[%s197 + $0x48] sm:$0xe]
      %v731 = vld [vmem:[%s197 + $0x54] sm:$0xe]
      %vm748 = vcmask 1042432
      %vm749 = vcmask 1046532
      %vm750 = vmor %vm748, %vm749
      %v751 = vrot.slane %v724, 5
      %v752 = vrot.slane %v751, 4
      %v753 = vrot.slane %v199, 5
      %v754 = vsel %vm750, %v752, %v753
      %v755 = vrot.slane %v753, 4
      %v756 = vrot.slane %v230, 5
      %v757 = vsel %vm750, %v755, %v756
      %v758 = vrot.slane %v725, 5
      %v759 = vrot.slane %v758, 4
      %v760 = vrot.slane %v201, 5
      %v761 = vsel %vm750, %v759, %v760
      %v762 = vrot.slane %v760, 4
      %v763 = vrot.slane %v231, 5
      %v764 = vsel %vm750, %v762, %v763
      %v765 = vrot.slane %v726, 5
      %v766 = vrot.slane %v765, 4
      %v767 = vrot.slane %v203, 5
      %v768 = vsel %vm750, %v766, %v767
      %v769 = vrot.slane %v767, 4
      %v770 = vrot.slane %v232, 5
      %v771 = vsel %vm750, %v769, %v770
      %v772 = vrot.slane %v727, 5
      %v773 = vrot.slane %v772, 4
      %v774 = vrot.slane %v205, 5
      %v775 = vsel %vm750, %v773, %v774
      %v776 = vrot.slane %v774, 4
      %v777 = vrot.slane %v233, 5
      %v778 = vsel %vm750, %v776, %v777
      %v779 = vrot.slane %v728, 5
      %v780 = vrot.slane %v779, 4
      %v781 = vrot.slane %v207, 5
      %v782 = vsel %vm750, %v780, %v781
      %v783 = vrot.slane %v781, 4
      %v784 = vrot.slane %v234, 5
      %v785 = vsel %vm750, %v783, %v784
      %v786 = vrot.slane %v729, 5
      %v787 = vrot.slane %v786, 4
      %v788 = vrot.slane %v209, 5
      %v789 = vsel %vm750, %v787, %v788
      %v790 = vrot.slane %v788, 4
      %v791 = vrot.slane %v235, 5
      %v792 = vsel %vm750, %v790, %v791
      %v793 = vrot.slane %v730, 5
      %v794 = vrot.slane %v793, 4
      %v795 = vrot.slane %v211, 5
      %v796 = vsel %vm750, %v794, %v795
      %v797 = vrot.slane %v795, 4
      %v798 = vrot.slane %v236, 5
      %v799 = vsel %vm750, %v797, %v798
      %v800 = vrot.slane %v731, 5
      %v801 = vrot.slane %v800, 4
      %v802 = vrot.slane %v213, 5
      %v803 = vsel %vm750, %v801, %v802
      %v804 = vrot.slane %v802, 4
      %v805 = vrot.slane %v237, 5
      %v806 = vsel %vm750, %v804, %v805
      %s807 = scalar_lea.vmem %s1, 128
      %v808 = vld [vmem:[%s807] sm:$0xf]
      %v809 = vld [vmem:[%s807 + $0x4] sm:$0xf]
      %v810 = vld [vmem:[%s807 + $0x8] sm:$0xf]
      %v811 = vld [vmem:[%s807 + $0xc] sm:$0xf]
      %v812 = vld [vmem:[%s807 + $0x10] sm:$0xf]
      %v813 = vld [vmem:[%s807 + $0x14] sm:$0xf]
      %v814 = vld [vmem:[%s807 + $0x18] sm:$0xf]
      %v815 = vld [vmem:[%s807 + $0x1c] sm:$0xf]
      %v816 = vld [vmem:[%s807 + $0x20] sm:$0xf]
      %v817 = vld [vmem:[%s807 + $0x24] sm:$0xf]
      %v818 = vld [vmem:[%s807 + $0x28] sm:$0xf]
      %v819 = vld [vmem:[%s807 + $0x2c] sm:$0xf]
      %v820 = vld [vmem:[%s807 + $0x30] sm:$0xf]
      %v821 = vld [vmem:[%s807 + $0x34] sm:$0xf]
      %v822 = vld [vmem:[%s807 + $0x38] sm:$0xf]
      %v823 = vld [vmem:[%s807 + $0x3c] sm:$0xf]
      %v824 = vunpack.c.l.b16 %v754
      %v825 = vunpack.c.l.b16 %v757
      %v826 = vunpack.c.l.b16 %v761
      %v827 = vunpack.c.l.b16 %v764
      %v828 = vunpack.c.l.b16 %v768
      %v829 = vunpack.c.l.b16 %v771
      %v830 = vunpack.c.l.b16 %v775
      %v831 = vunpack.c.l.b16 %v778
      %v832 = vunpack.c.l.b16 %v782
      %v833 = vunpack.c.l.b16 %v785
      %v834 = vunpack.c.l.b16 %v789
      %v835 = vunpack.c.l.b16 %v792
      %v836 = vunpack.c.l.b16 %v796
      %v837 = vunpack.c.l.b16 %v799
      %v838 = vunpack.c.l.b16 %v803
      %v839 = vunpack.c.l.b16 %v806
      %v840 = vpack.c.b16 %v825, %v824
      %v841 = vpack.c.b16 %v827, %v826
      %v842 = vpack.c.b16 %v829, %v828
      %v843 = vpack.c.b16 %v831, %v830
      %v844 = vpack.c.b16 %v833, %v832
      %v845 = vpack.c.b16 %v835, %v834
      %v846 = vpack.c.b16 %v837, %v836
      %v847 = vpack.c.b16 %v839, %v838
      %v872 = vunpack.c.l.b16 %v808
      %v873 = vunpack.c.l.b16 %v809
      %v874 = vunpack.c.l.b16 %v810
      %v875 = vunpack.c.l.b16 %v811
      %v876 = vunpack.c.l.b16 %v812
      %v877 = vunpack.c.l.b16 %v813
      %v878 = vunpack.c.l.b16 %v814
      %v879 = vunpack.c.l.b16 %v815
      %v880 = vunpack.c.l.b16 %v816
      %v881 = vunpack.c.l.b16 %v817
      %v882 = vunpack.c.l.b16 %v818
      %v883 = vunpack.c.l.b16 %v819
      %v884 = vunpack.c.l.b16 %v820
      %v885 = vunpack.c.l.b16 %v821
      %v886 = vunpack.c.l.b16 %v822
      %v887 = vunpack.c.l.b16 %v823
      %v888 = vpack.c.b16 %v873, %v872
      %v889 = vpack.c.b16 %v875, %v874
      %v890 = vpack.c.b16 %v877, %v876
      %v891 = vpack.c.b16 %v879, %v878
      %v892 = vpack.c.b16 %v881, %v880
      %v893 = vpack.c.b16 %v883, %v882
      %v894 = vpack.c.b16 %v885, %v884
      %v895 = vpack.c.b16 %v887, %v886
      %904 = vmatpush.bf16.msra.mxu0 %v895
      %905 = vmatpush.bf16.msra.mxu0 %v894
      %906 = vmatpush.bf16.msra.mxu0 %v893
      %907 = vmatpush.bf16.msra.mxu0 %v892
      %908 = vmatpush.bf16.msra.mxu0 %v891
      %909 = vmatpush.bf16.msra.mxu0 %v890
      %910 = vmatpush.bf16.msra.mxu0 %v889
      %911 = vmatpush.bf16.msra.mxu0 %v888
      %912 = vmatmul.bf16.gmra.mxu0 %v840
      %v913 = vpop.f32.mrf.mxu0
      %v914 = vadd.f32 0.0, %v913
      %v915 = vpop.f32.mrf.mxu0
      %v916 = vadd.f32 0.0, %v915
      %917 = vmatmul.bf16.gmra.mxu0 %v841
      %v918 = vpop.f32.mrf.mxu0
      %v919 = vadd.f32 0.0, %v918
      %v920 = vpop.f32.mrf.mxu0
      %v921 = vadd.f32 0.0, %v920
      %922 = vmatmul.bf16.gmra.mxu0 %v842
      %v923 = vpop.f32.mrf.mxu0
      %v924 = vadd.f32 0.0, %v923
      %v925 = vpop.f32.mrf.mxu0
      %v926 = vadd.f32 0.0, %v925
      %927 = vmatmul.bf16.gmra.mxu0 %v843
      %v928 = vpop.f32.mrf.mxu0
      %v929 = vadd.f32 0.0, %v928
      %v930 = vpop.f32.mrf.mxu0
      %v931 = vadd.f32 0.0, %v930
      %932 = vmatmul.bf16.gmra.mxu0 %v844
      %v933 = vpop.f32.mrf.mxu0
      %v934 = vadd.f32 0.0, %v933
      %v935 = vpop.f32.mrf.mxu0
      %v936 = vadd.f32 0.0, %v935
      %937 = vmatmul.bf16.gmra.mxu0 %v845
      %v938 = vpop.f32.mrf.mxu0
      %v939 = vadd.f32 0.0, %v938
      %v940 = vpop.f32.mrf.mxu0
      %v941 = vadd.f32 0.0, %v940
      %942 = vmatmul.bf16.gmra.mxu0 %v846
      %v943 = vpop.f32.mrf.mxu0
      %v944 = vadd.f32 0.0, %v943
      %v945 = vpop.f32.mrf.mxu0
      %v946 = vadd.f32 0.0, %v945
      %947 = vmatmul.bf16.gmra.mxu0 %v847
      %v948 = vpop.f32.mrf.mxu0
      %v949 = vadd.f32 0.0, %v948
      %v950 = vpop.f32.mrf.mxu0
      %v951 = vadd.f32 0.0, %v950
      %952 = vdwg.mxu0
      %v953 = vadd.f32 %v685, %v914
      %v954 = vadd.f32 %v687, %v916
      %v955 = vadd.f32 %v690, %v919
      %v956 = vadd.f32 %v692, %v921
      %v957 = vadd.f32 %v695, %v924
      %v958 = vadd.f32 %v697, %v926
      %v959 = vadd.f32 %v700, %v929
      %v960 = vadd.f32 %v702, %v931
      %v961 = vadd.f32 %v705, %v934
      %v962 = vadd.f32 %v707, %v936
      %v963 = vadd.f32 %v710, %v939
      %v964 = vadd.f32 %v712, %v941
      %v965 = vadd.f32 %v715, %v944
      %v966 = vadd.f32 %v717, %v946
      %v967 = vadd.f32 %v720, %v949
      %v968 = vadd.f32 %v722, %v951
      %s969 = sadd.s32 %s194, 1
      %s970 = smul.u32 %s969, 3
      %s971 = smul.addr %s970, 4
      %s972 = scalar_lea.vmem %s183, %s971
      %v973 = vld [vmem:[%s972] sm:$0xf]
      %v974 = vld [vmem:[%s972 + $0x4] sm:$0xf]
      %v975 = vld [vmem:[%s972 + $0xc] sm:$0xf]
      %v976 = vld [vmem:[%s972 + $0x10] sm:$0xf]
      %v977 = vld [vmem:[%s972 + $0x18] sm:$0xf]
      %v978 = vld [vmem:[%s972 + $0x1c] sm:$0xf]
      %v979 = vld [vmem:[%s972 + $0x24] sm:$0xf]
      %v980 = vld [vmem:[%s972 + $0x28] sm:$0xf]
      %v981 = vld [vmem:[%s972 + $0x30] sm:$0xf]
      %v982 = vld [vmem:[%s972 + $0x34] sm:$0xf]
      %v983 = vld [vmem:[%s972 + $0x3c] sm:$0xf]
      %v984 = vld [vmem:[%s972 + $0x40] sm:$0xf]
      %v985 = vld [vmem:[%s972 + $0x48] sm:$0xf]
      %v986 = vld [vmem:[%s972 + $0x4c] sm:$0xf]
      %v987 = vld [vmem:[%s972 + $0x54] sm:$0xf]
      %v988 = vld [vmem:[%s972 + $0x58] sm:$0xf]
      %s989 = scalar_lea.vmem %s1, 192
      %v990 = vld [vmem:[%s989] sm:$0xf]
      %v991 = vld [vmem:[%s989 + $0x4] sm:$0xf]
      %v992 = vld [vmem:[%s989 + $0x8] sm:$0xf]
      %v993 = vld [vmem:[%s989 + $0xc] sm:$0xf]
      %v994 = vld [vmem:[%s989 + $0x10] sm:$0xf]
      %v995 = vld [vmem:[%s989 + $0x14] sm:$0xf]
      %v996 = vld [vmem:[%s989 + $0x18] sm:$0xf]
      %v997 = vld [vmem:[%s989 + $0x1c] sm:$0xf]
      %v998 = vld [vmem:[%s989 + $0x20] sm:$0xf]
      %v999 = vld [vmem:[%s989 + $0x24] sm:$0xf]
      %v1000 = vld [vmem:[%s989 + $0x28] sm:$0xf]
      %v1001 = vld [vmem:[%s989 + $0x2c] sm:$0xf]
      %v1002 = vld [vmem:[%s989 + $0x30] sm:$0xf]
      %v1003 = vld [vmem:[%s989 + $0x34] sm:$0xf]
      %v1004 = vld [vmem:[%s989 + $0x38] sm:$0xf]
      %v1005 = vld [vmem:[%s989 + $0x3c] sm:$0xf]
      %v1022 = vunpack.c.l.b16 %v973
      %v1023 = vunpack.c.l.b16 %v974
      %v1024 = vunpack.c.l.b16 %v975
      %v1025 = vunpack.c.l.b16 %v976
      %v1026 = vunpack.c.l.b16 %v977
      %v1027 = vunpack.c.l.b16 %v978
      %v1028 = vunpack.c.l.b16 %v979
      %v1029 = vunpack.c.l.b16 %v980
      %v1030 = vunpack.c.l.b16 %v981
      %v1031 = vunpack.c.l.b16 %v982
      %v1032 = vunpack.c.l.b16 %v983
      %v1033 = vunpack.c.l.b16 %v984
      %v1034 = vunpack.c.l.b16 %v985
      %v1035 = vunpack.c.l.b16 %v986
      %v1036 = vunpack.c.l.b16 %v987
      %v1037 = vunpack.c.l.b16 %v988
      %v1038 = vpack.c.b16 %v1023, %v1022
      %v1039 = vpack.c.b16 %v1025, %v1024
      %v1040 = vpack.c.b16 %v1027, %v1026
      %v1041 = vpack.c.b16 %v1029, %v1028
      %v1042 = vpack.c.b16 %v1031, %v1030
      %v1043 = vpack.c.b16 %v1033, %v1032
      %v1044 = vpack.c.b16 %v1035, %v1034
      %v1045 = vpack.c.b16 %v1037, %v1036
      %v1070 = vunpack.c.l.b16 %v990
      %v1071 = vunpack.c.l.b16 %v991
      %v1072 = vunpack.c.l.b16 %v992
      %v1073 = vunpack.c.l.b16 %v993
      %v1074 = vunpack.c.l.b16 %v994
      %v1075 = vunpack.c.l.b16 %v995
      %v1076 = vunpack.c.l.b16 %v996
      %v1077 = vunpack.c.l.b16 %v997
      %v1078 = vunpack.c.l.b16 %v998
      %v1079 = vunpack.c.l.b16 %v999
      %v1080 = vunpack.c.l.b16 %v1000
      %v1081 = vunpack.c.l.b16 %v1001
      %v1082 = vunpack.c.l.b16 %v1002
      %v1083 = vunpack.c.l.b16 %v1003
      %v1084 = vunpack.c.l.b16 %v1004
      %v1085 = vunpack.c.l.b16 %v1005
      %v1086 = vpack.c.b16 %v1071, %v1070
      %v1087 = vpack.c.b16 %v1073, %v1072
      %v1088 = vpack.c.b16 %v1075, %v1074
      %v1089 = vpack.c.b16 %v1077, %v1076
      %v1090 = vpack.c.b16 %v1079, %v1078
      %v1091 = vpack.c.b16 %v1081, %v1080
      %v1092 = vpack.c.b16 %v1083, %v1082
      %v1093 = vpack.c.b16 %v1085, %v1084
      %1102 = vmatpush.bf16.msra.mxu0 %v1093
      %1103 = vmatpush.bf16.msra.mxu0 %v1092
      %1104 = vmatpush.bf16.msra.mxu0 %v1091
      %1105 = vmatpush.bf16.msra.mxu0 %v1090
      %1106 = vmatpush.bf16.msra.mxu0 %v1089
      %1107 = vmatpush.bf16.msra.mxu0 %v1088
      %1108 = vmatpush.bf16.msra.mxu0 %v1087
      %1109 = vmatpush.bf16.msra.mxu0 %v1086
      %1110 = vmatmul.bf16.gmra.mxu0 %v1038
      %v1111 = vpop.f32.mrf.mxu0
      %v1112 = vadd.f32 0.0, %v1111
      %v1113 = vpop.f32.mrf.mxu0
      %v1114 = vadd.f32 0.0, %v1113
      %1115 = vmatmul.bf16.gmra.mxu0 %v1039
      %v1116 = vpop.f32.mrf.mxu0
      %v1117 = vadd.f32 0.0, %v1116
      %v1118 = vpop.f32.mrf.mxu0
      %v1119 = vadd.f32 0.0, %v1118
      %1120 = vmatmul.bf16.gmra.mxu0 %v1040
      %v1121 = vpop.f32.mrf.mxu0
      %v1122 = vadd.f32 0.0, %v1121
      %v1123 = vpop.f32.mrf.mxu0
      %v1124 = vadd.f32 0.0, %v1123
      %1125 = vmatmul.bf16.gmra.mxu0 %v1041
      %v1126 = vpop.f32.mrf.mxu0
      %v1127 = vadd.f32 0.0, %v1126
      %v1128 = vpop.f32.mrf.mxu0
      %v1129 = vadd.f32 0.0, %v1128
      %1130 = vmatmul.bf16.gmra.mxu0 %v1042
      %v1131 = vpop.f32.mrf.mxu0
      %v1132 = vadd.f32 0.0, %v1131
      %v1133 = vpop.f32.mrf.mxu0
      %v1134 = vadd.f32 0.0, %v1133
      %1135 = vmatmul.bf16.gmra.mxu0 %v1043
      %v1136 = vpop.f32.mrf.mxu0
      %v1137 = vadd.f32 0.0, %v1136
      %v1138 = vpop.f32.mrf.mxu0
      %v1139 = vadd.f32 0.0, %v1138
      %1140 = vmatmul.bf16.gmra.mxu0 %v1044
      %v1141 = vpop.f32.mrf.mxu0
      %v1142 = vadd.f32 0.0, %v1141
      %v1143 = vpop.f32.mrf.mxu0
      %v1144 = vadd.f32 0.0, %v1143
      %1145 = vmatmul.bf16.gmra.mxu0 %v1045
      %v1146 = vpop.f32.mrf.mxu0
      %v1147 = vadd.f32 0.0, %v1146
      %v1148 = vpop.f32.mrf.mxu0
      %v1149 = vadd.f32 0.0, %v1148
      %1150 = vdwg.mxu0
      %v1151 = vadd.f32 %v953, %v1112
      %v1152 = vadd.f32 %v954, %v1114
      %v1153 = vadd.f32 %v955, %v1117
      %v1154 = vadd.f32 %v956, %v1119
      %v1155 = vadd.f32 %v957, %v1122
      %v1156 = vadd.f32 %v958, %v1124
      %v1157 = vadd.f32 %v959, %v1127
      %v1158 = vadd.f32 %v960, %v1129
      %v1159 = vadd.f32 %v961, %v1132
      %v1160 = vadd.f32 %v962, %v1134
      %v1161 = vadd.f32 %v963, %v1137
      %v1162 = vadd.f32 %v964, %v1139
      %v1163 = vadd.f32 %v965, %v1142
      %v1164 = vadd.f32 %v966, %v1144
      %v1165 = vadd.f32 %v967, %v1147
      %v1166 = vadd.f32 %v968, %v1149
      %v1167 = vld [vmem:[%s972] sm:$0xf]
      %v1168 = vld [vmem:[%s972 + $0x4] sm:$0xf]
      %v1169 = vld [vmem:[%s972 + $0x8] sm:$0x1]
      %v1170 = vld [vmem:[%s972 + $0xc] sm:$0xf]
      %v1171 = vld [vmem:[%s972 + $0x10] sm:$0xf]
      %v1172 = vld [vmem:[%s972 + $0x14] sm:$0x1]
      %v1173 = vld [vmem:[%s972 + $0x18] sm:$0xf]
      %v1174 = vld [vmem:[%s972 + $0x1c] sm:$0xf]
      %v1175 = vld [vmem:[%s972 + $0x20] sm:$0x1]
      %v1176 = vld [vmem:[%s972 + $0x24] sm:$0xf]
      %v1177 = vld [vmem:[%s972 + $0x28] sm:$0xf]
      %v1178 = vld [vmem:[%s972 + $0x2c] sm:$0x1]
      %v1179 = vld [vmem:[%s972 + $0x30] sm:$0xf]
      %v1180 = vld [vmem:[%s972 + $0x34] sm:$0xf]
      %v1181 = vld [vmem:[%s972 + $0x38] sm:$0x1]
      %v1182 = vld [vmem:[%s972 + $0x3c] sm:$0xf]
      %v1183 = vld [vmem:[%s972 + $0x40] sm:$0xf]
      %v1184 = vld [vmem:[%s972 + $0x44] sm:$0x1]
      %v1185 = vld [vmem:[%s972 + $0x48] sm:$0xf]
      %v1186 = vld [vmem:[%s972 + $0x4c] sm:$0xf]
      %v1187 = vld [vmem:[%s972 + $0x50] sm:$0x1]
      %v1188 = vld [vmem:[%s972 + $0x54] sm:$0xf]
      %v1189 = vld [vmem:[%s972 + $0x58] sm:$0xf]
      %v1190 = vld [vmem:[%s972 + $0x5c] sm:$0x1]
      %v1192 = vshrl.u32 %v1167, 16
      %v1194 = vrot.slane %v1192, 4
      %v1195 = vshll.u32 %v1167, 16
      %v1197 = vrot.slane %v1195, 5
      %v1198 = vor.u32 %v1194, %v1197
      %v1199 = vrot.slane %v1198, 4
      %v1201 = vshll.u32 %v1168, 16
      %v1203 = vrot.slane %v1201, 5
      %v1204 = vsel %vm240, %v1199, %v1203
      %v1205 = vshrl.u32 %v1168, 16
      %v1207 = vrot.slane %v1205, 4
      %v1208 = vor.u32 %v1207, %v1203
      %v1209 = vrot.slane %v1208, 4
      %v1211 = vshll.u32 %v1169, 16
      %v1213 = vrot.slane %v1211, 5
      %v1214 = vsel %vm240, %v1209, %v1213
      %v1216 = vshrl.u32 %v1170, 16
      %v1218 = vrot.slane %v1216, 4
      %v1219 = vshll.u32 %v1170, 16
      %v1221 = vrot.slane %v1219, 5
      %v1222 = vor.u32 %v1218, %v1221
      %v1223 = vrot.slane %v1222, 4
      %v1225 = vshll.u32 %v1171, 16
      %v1227 = vrot.slane %v1225, 5
      %v1228 = vsel %vm240, %v1223, %v1227
      %v1229 = vshrl.u32 %v1171, 16
      %v1231 = vrot.slane %v1229, 4
      %v1232 = vor.u32 %v1231, %v1227
      %v1233 = vrot.slane %v1232, 4
      %v1235 = vshll.u32 %v1172, 16
      %v1237 = vrot.slane %v1235, 5
      %v1238 = vsel %vm240, %v1233, %v1237
      %v1240 = vshrl.u32 %v1173, 16
      %v1242 = vrot.slane %v1240, 4
      %v1243 = vshll.u32 %v1173, 16
      %v1245 = vrot.slane %v1243, 5
      %v1246 = vor.u32 %v1242, %v1245
      %v1247 = vrot.slane %v1246, 4
      %v1249 = vshll.u32 %v1174, 16
      %v1251 = vrot.slane %v1249, 5
      %v1252 = vsel %vm240, %v1247, %v1251
      %v1253 = vshrl.u32 %v1174, 16
      %v1255 = vrot.slane %v1253, 4
      %v1256 = vor.u32 %v1255, %v1251
      %v1257 = vrot.slane %v1256, 4
      %v1259 = vshll.u32 %v1175, 16
      %v1261 = vrot.slane %v1259, 5
      %v1262 = vsel %vm240, %v1257, %v1261
      %v1264 = vshrl.u32 %v1176, 16
      %v1266 = vrot.slane %v1264, 4
      %v1267 = vshll.u32 %v1176, 16
      %v1269 = vrot.slane %v1267, 5
      %v1270 = vor.u32 %v1266, %v1269
      %v1271 = vrot.slane %v1270, 4
      %v1273 = vshll.u32 %v1177, 16
      %v1275 = vrot.slane %v1273, 5
      %v1276 = vsel %vm240, %v1271, %v1275
      %v1277 = vshrl.u32 %v1177, 16
      %v1279 = vrot.slane %v1277, 4
      %v1280 = vor.u32 %v1279, %v1275
      %v1281 = vrot.slane %v1280, 4
      %v1283 = vshll.u32 %v1178, 16
      %v1285 = vrot.slane %v1283, 5
      %v1286 = vsel %vm240, %v1281, %v1285
      %v1288 = vshrl.u32 %v1179, 16
      %v1290 = vrot.slane %v1288, 4
      %v1291 = vshll.u32 %v1179, 16
      %v1293 = vrot.slane %v1291, 5
      %v1294 = vor.u32 %v1290, %v1293
      %v1295 = vrot.slane %v1294, 4
      %v1297 = vshll.u32 %v1180, 16
      %v1299 = vrot.slane %v1297, 5
      %v1300 = vsel %vm240, %v1295, %v1299
      %v1301 = vshrl.u32 %v1180, 16
      %v1303 = vrot.slane %v1301, 4
      %v1304 = vor.u32 %v1303, %v1299
      %v1305 = vrot.slane %v1304, 4
      %v1307 = vshll.u32 %v1181, 16
      %v1309 = vrot.slane %v1307, 5
      %v1310 = vsel %vm240, %v1305, %v1309
      %v1312 = vshrl.u32 %v1182, 16
      %v1314 = vrot.slane %v1312, 4
      %v1315 = vshll.u32 %v1182, 16
      %v1317 = vrot.slane %v1315, 5
      %v1318 = vor.u32 %v1314, %v1317
      %v1319 = vrot.slane %v1318, 4
      %v1321 = vshll.u32 %v1183, 16
      %v1323 = vrot.slane %v1321, 5
      %v1324 = vsel %vm240, %v1319, %v1323
      %v1325 = vshrl.u32 %v1183, 16
      %v1327 = vrot.slane %v1325, 4
      %v1328 = vor.u32 %v1327, %v1323
      %v1329 = vrot.slane %v1328, 4
      %v1331 = vshll.u32 %v1184, 16
      %v1333 = vrot.slane %v1331, 5
      %v1334 = vsel %vm240, %v1329, %v1333
      %v1336 = vshrl.u32 %v1185, 16
      %v1338 = vrot.slane %v1336, 4
      %v1339 = vshll.u32 %v1185, 16
      %v1341 = vrot.slane %v1339, 5
      %v1342 = vor.u32 %v1338, %v1341
      %v1343 = vrot.slane %v1342, 4
      %v1345 = vshll.u32 %v1186, 16
      %v1347 = vrot.slane %v1345, 5
      %v1348 = vsel %vm240, %v1343, %v1347
      %v1349 = vshrl.u32 %v1186, 16
      %v1351 = vrot.slane %v1349, 4
      %v1352 = vor.u32 %v1351, %v1347
      %v1353 = vrot.slane %v1352, 4
      %v1355 = vshll.u32 %v1187, 16
      %v1357 = vrot.slane %v1355, 5
      %v1358 = vsel %vm240, %v1353, %v1357
      %v1360 = vshrl.u32 %v1188, 16
      %v1362 = vrot.slane %v1360, 4
      %v1363 = vshll.u32 %v1188, 16
      %v1365 = vrot.slane %v1363, 5
      %v1366 = vor.u32 %v1362, %v1365
      %v1367 = vrot.slane %v1366, 4
      %v1369 = vshll.u32 %v1189, 16
      %v1371 = vrot.slane %v1369, 5
      %v1372 = vsel %vm240, %v1367, %v1371
      %v1373 = vshrl.u32 %v1189, 16
      %v1375 = vrot.slane %v1373, 4
      %v1376 = vor.u32 %v1375, %v1371
      %v1377 = vrot.slane %v1376, 4
      %v1379 = vshll.u32 %v1190, 16
      %v1381 = vrot.slane %v1379, 5
      %v1382 = vsel %vm240, %v1377, %v1381
      %s1383 = scalar_lea.vmem %s1, 256
      %v1384 = vld [vmem:[%s1383] sm:$0xf]
      %v1385 = vld [vmem:[%s1383 + $0x4] sm:$0xf]
      %v1386 = vld [vmem:[%s1383 + $0x8] sm:$0xf]
      %v1387 = vld [vmem:[%s1383 + $0xc] sm:$0xf]
      %v1388 = vld [vmem:[%s1383 + $0x10] sm:$0xf]
      %v1389 = vld [vmem:[%s1383 + $0x14] sm:$0xf]
      %v1390 = vld [vmem:[%s1383 + $0x18] sm:$0xf]
      %v1391 = vld [vmem:[%s1383 + $0x1c] sm:$0xf]
      %v1392 = vld [vmem:[%s1383 + $0x20] sm:$0xf]
      %v1393 = vld [vmem:[%s1383 + $0x24] sm:$0xf]
      %v1394 = vld [vmem:[%s1383 + $0x28] sm:$0xf]
      %v1395 = vld [vmem:[%s1383 + $0x2c] sm:$0xf]
      %v1396 = vld [vmem:[%s1383 + $0x30] sm:$0xf]
      %v1397 = vld [vmem:[%s1383 + $0x34] sm:$0xf]
      %v1398 = vld [vmem:[%s1383 + $0x38] sm:$0xf]
      %v1399 = vld [vmem:[%s1383 + $0x3c] sm:$0xf]
      %v1400 = vunpack.c.l.b16 %v1204
      %v1401 = vunpack.c.l.b16 %v1214
      %v1402 = vunpack.c.l.b16 %v1228
      %v1403 = vunpack.c.l.b16 %v1238
      %v1404 = vunpack.c.l.b16 %v1252
      %v1405 = vunpack.c.l.b16 %v1262
      %v1406 = vunpack.c.l.b16 %v1276
      %v1407 = vunpack.c.l.b16 %v1286
      %v1408 = vunpack.c.l.b16 %v1300
      %v1409 = vunpack.c.l.b16 %v1310
      %v1410 = vunpack.c.l.b16 %v1324
      %v1411 = vunpack.c.l.b16 %v1334
      %v1412 = vunpack.c.l.b16 %v1348
      %v1413 = vunpack.c.l.b16 %v1358
      %v1414 = vunpack.c.l.b16 %v1372
      %v1415 = vunpack.c.l.b16 %v1382
      %v1416 = vpack.c.b16 %v1401, %v1400
      %v1417 = vpack.c.b16 %v1403, %v1402
      %v1418 = vpack.c.b16 %v1405, %v1404
      %v1419 = vpack.c.b16 %v1407, %v1406
      %v1420 = vpack.c.b16 %v1409, %v1408
      %v1421 = vpack.c.b16 %v1411, %v1410
      %v1422 = vpack.c.b16 %v1413, %v1412
      %v1423 = vpack.c.b16 %v1415, %v1414
      %v1448 = vunpack.c.l.b16 %v1384
      %v1449 = vunpack.c.l.b16 %v1385
      %v1450 = vunpack.c.l.b16 %v1386
      %v1451 = vunpack.c.l.b16 %v1387
      %v1452 = vunpack.c.l.b16 %v1388
      %v1453 = vunpack.c.l.b16 %v1389
      %v1454 = vunpack.c.l.b16 %v1390
      %v1455 = vunpack.c.l.b16 %v1391
      %v1456 = vunpack.c.l.b16 %v1392
      %v1457 = vunpack.c.l.b16 %v1393
      %v1458 = vunpack.c.l.b16 %v1394
      %v1459 = vunpack.c.l.b16 %v1395
      %v1460 = vunpack.c.l.b16 %v1396
      %v1461 = vunpack.c.l.b16 %v1397
      %v1462 = vunpack.c.l.b16 %v1398
      %v1463 = vunpack.c.l.b16 %v1399
      %v1464 = vpack.c.b16 %v1449, %v1448
      %v1465 = vpack.c.b16 %v1451, %v1450
      %v1466 = vpack.c.b16 %v1453, %v1452
      %v1467 = vpack.c.b16 %v1455, %v1454
      %v1468 = vpack.c.b16 %v1457, %v1456
      %v1469 = vpack.c.b16 %v1459, %v1458
      %v1470 = vpack.c.b16 %v1461, %v1460
      %v1471 = vpack.c.b16 %v1463, %v1462
      %1480 = vmatpush.bf16.msra.mxu0 %v1471
      %1481 = vmatpush.bf16.msra.mxu0 %v1470
      %1482 = vmatpush.bf16.msra.mxu0 %v1469
      %1483 = vmatpush.bf16.msra.mxu0 %v1468
      %1484 = vmatpush.bf16.msra.mxu0 %v1467
      %1485 = vmatpush.bf16.msra.mxu0 %v1466
      %1486 = vmatpush.bf16.msra.mxu0 %v1465
      %1487 = vmatpush.bf16.msra.mxu0 %v1464
      %1488 = vmatmul.bf16.gmra.mxu0 %v1416
      %v1489 = vpop.f32.mrf.mxu0
      %v1490 = vadd.f32 0.0, %v1489
      %v1491 = vpop.f32.mrf.mxu0
      %v1492 = vadd.f32 0.0, %v1491
      %1493 = vmatmul.bf16.gmra.mxu0 %v1417
      %v1494 = vpop.f32.mrf.mxu0
      %v1495 = vadd.f32 0.0, %v1494
      %v1496 = vpop.f32.mrf.mxu0
      %v1497 = vadd.f32 0.0, %v1496
      %1498 = vmatmul.bf16.gmra.mxu0 %v1418
      %v1499 = vpop.f32.mrf.mxu0
      %v1500 = vadd.f32 0.0, %v1499
      %v1501 = vpop.f32.mrf.mxu0
      %v1502 = vadd.f32 0.0, %v1501
      %1503 = vmatmul.bf16.gmra.mxu0 %v1419
      %v1504 = vpop.f32.mrf.mxu0
      %v1505 = vadd.f32 0.0, %v1504
      %v1506 = vpop.f32.mrf.mxu0
      %v1507 = vadd.f32 0.0, %v1506
      %1508 = vmatmul.bf16.gmra.mxu0 %v1420
      %v1509 = vpop.f32.mrf.mxu0
      %v1510 = vadd.f32 0.0, %v1509
      %v1511 = vpop.f32.mrf.mxu0
      %v1512 = vadd.f32 0.0, %v1511
      %1513 = vmatmul.bf16.gmra.mxu0 %v1421
      %v1514 = vpop.f32.mrf.mxu0
      %v1515 = vadd.f32 0.0, %v1514
      %v1516 = vpop.f32.mrf.mxu0
      %v1517 = vadd.f32 0.0, %v1516
      %1518 = vmatmul.bf16.gmra.mxu0 %v1422
      %v1519 = vpop.f32.mrf.mxu0
      %v1520 = vadd.f32 0.0, %v1519
      %v1521 = vpop.f32.mrf.mxu0
      %v1522 = vadd.f32 0.0, %v1521
      %1523 = vmatmul.bf16.gmra.mxu0 %v1423
      %v1524 = vpop.f32.mrf.mxu0
      %v1525 = vadd.f32 0.0, %v1524
      %v1526 = vpop.f32.mrf.mxu0
      %v1527 = vadd.f32 0.0, %v1526
      %1528 = vdwg.mxu0
      %v1529 = vadd.f32 %v1151, %v1490
      %v1530 = vadd.f32 %v1152, %v1492
      %v1531 = vadd.f32 %v1153, %v1495
      %v1532 = vadd.f32 %v1154, %v1497
      %v1533 = vadd.f32 %v1155, %v1500
      %v1534 = vadd.f32 %v1156, %v1502
      %v1535 = vadd.f32 %v1157, %v1505
      %v1536 = vadd.f32 %v1158, %v1507
      %v1537 = vadd.f32 %v1159, %v1510
      %v1538 = vadd.f32 %v1160, %v1512
      %v1539 = vadd.f32 %v1161, %v1515
      %v1540 = vadd.f32 %v1162, %v1517
      %v1541 = vadd.f32 %v1163, %v1520
      %v1542 = vadd.f32 %v1164, %v1522
      %v1543 = vadd.f32 %v1165, %v1525
      %v1544 = vadd.f32 %v1166, %v1527
      %v1545 = vld [vmem:[%s972] sm:$0xe]
      %v1546 = vld [vmem:[%s972 + $0xc] sm:$0xe]
      %v1547 = vld [vmem:[%s972 + $0x18] sm:$0xe]
      %v1548 = vld [vmem:[%s972 + $0x24] sm:$0xe]
      %v1549 = vld [vmem:[%s972 + $0x30] sm:$0xe]
      %v1550 = vld [vmem:[%s972 + $0x3c] sm:$0xe]
      %v1551 = vld [vmem:[%s972 + $0x48] sm:$0xe]
      %v1552 = vld [vmem:[%s972 + $0x54] sm:$0xe]
      %v1577 = vrot.slane %v1545, 5
      %v1578 = vrot.slane %v1577, 4
      %v1579 = vrot.slane %v1168, 5
      %v1580 = vsel %vm750, %v1578, %v1579
      %v1581 = vrot.slane %v1579, 4
      %v1582 = vrot.slane %v1169, 5
      %v1583 = vsel %vm750, %v1581, %v1582
      %v1584 = vrot.slane %v1546, 5
      %v1585 = vrot.slane %v1584, 4
      %v1586 = vrot.slane %v1171, 5
      %v1587 = vsel %vm750, %v1585, %v1586
      %v1588 = vrot.slane %v1586, 4
      %v1589 = vrot.slane %v1172, 5
      %v1590 = vsel %vm750, %v1588, %v1589
      %v1591 = vrot.slane %v1547, 5
      %v1592 = vrot.slane %v1591, 4
      %v1593 = vrot.slane %v1174, 5
      %v1594 = vsel %vm750, %v1592, %v1593
      %v1595 = vrot.slane %v1593, 4
      %v1596 = vrot.slane %v1175, 5
      %v1597 = vsel %vm750, %v1595, %v1596
      %v1598 = vrot.slane %v1548, 5
      %v1599 = vrot.slane %v1598, 4
      %v1600 = vrot.slane %v1177, 5
      %v1601 = vsel %vm750, %v1599, %v1600
      %v1602 = vrot.slane %v1600, 4
      %v1603 = vrot.slane %v1178, 5
      %v1604 = vsel %vm750, %v1602, %v1603
      %v1605 = vrot.slane %v1549, 5
      %v1606 = vrot.slane %v1605, 4
      %v1607 = vrot.slane %v1180, 5
      %v1608 = vsel %vm750, %v1606, %v1607
      %v1609 = vrot.slane %v1607, 4
      %v1610 = vrot.slane %v1181, 5
      %v1611 = vsel %vm750, %v1609, %v1610
      %v1612 = vrot.slane %v1550, 5
      %v1613 = vrot.slane %v1612, 4
      %v1614 = vrot.slane %v1183, 5
      %v1615 = vsel %vm750, %v1613, %v1614
      %v1616 = vrot.slane %v1614, 4
      %v1617 = vrot.slane %v1184, 5
      %v1618 = vsel %vm750, %v1616, %v1617
      %v1619 = vrot.slane %v1551, 5
      %v1620 = vrot.slane %v1619, 4
      %v1621 = vrot.slane %v1186, 5
      %v1622 = vsel %vm750, %v1620, %v1621
      %v1623 = vrot.slane %v1621, 4
      %v1624 = vrot.slane %v1187, 5
      %v1625 = vsel %vm750, %v1623, %v1624
      %v1626 = vrot.slane %v1552, 5
      %v1627 = vrot.slane %v1626, 4
      %v1628 = vrot.slane %v1189, 5
      %v1629 = vsel %vm750, %v1627, %v1628
      %v1630 = vrot.slane %v1628, 4
      %v1631 = vrot.slane %v1190, 5
      %v1632 = vsel %vm750, %v1630, %v1631
      %s1633 = scalar_lea.vmem %s1, 320
      %v1634 = vld [vmem:[%s1633] sm:$0xf]
      %v1635 = vld [vmem:[%s1633 + $0x4] sm:$0xf]
      %v1636 = vld [vmem:[%s1633 + $0x8] sm:$0xf]
      %v1637 = vld [vmem:[%s1633 + $0xc] sm:$0xf]
      %v1638 = vld [vmem:[%s1633 + $0x10] sm:$0xf]
      %v1639 = vld [vmem:[%s1633 + $0x14] sm:$0xf]
      %v1640 = vld [vmem:[%s1633 + $0x18] sm:$0xf]
      %v1641 = vld [vmem:[%s1633 + $0x1c] sm:$0xf]
      %v1642 = vld [vmem:[%s1633 + $0x20] sm:$0xf]
      %v1643 = vld [vmem:[%s1633 + $0x24] sm:$0xf]
      %v1644 = vld [vmem:[%s1633 + $0x28] sm:$0xf]
      %v1645 = vld [vmem:[%s1633 + $0x2c] sm:$0xf]
      %v1646 = vld [vmem:[%s1633 + $0x30] sm:$0xf]
      %v1647 = vld [vmem:[%s1633 + $0x34] sm:$0xf]
      %v1648 = vld [vmem:[%s1633 + $0x38] sm:$0xf]
      %v1649 = vld [vmem:[%s1633 + $0x3c] sm:$0xf]
      %v1650 = vunpack.c.l.b16 %v1580
      %v1651 = vunpack.c.l.b16 %v1583
      %v1652 = vunpack.c.l.b16 %v1587
      %v1653 = vunpack.c.l.b16 %v1590
      %v1654 = vunpack.c.l.b16 %v1594
      %v1655 = vunpack.c.l.b16 %v1597
      %v1656 = vunpack.c.l.b16 %v1601
      %v1657 = vunpack.c.l.b16 %v1604
      %v1658 = vunpack.c.l.b16 %v1608
      %v1659 = vunpack.c.l.b16 %v1611
      %v1660 = vunpack.c.l.b16 %v1615
      %v1661 = vunpack.c.l.b16 %v1618
      %v1662 = vunpack.c.l.b16 %v1622
      %v1663 = vunpack.c.l.b16 %v1625
      %v1664 = vunpack.c.l.b16 %v1629
      %v1665 = vunpack.c.l.b16 %v1632
      %v1666 = vpack.c.b16 %v1651, %v1650
      %v1667 = vpack.c.b16 %v1653, %v1652
      %v1668 = vpack.c.b16 %v1655, %v1654
      %v1669 = vpack.c.b16 %v1657, %v1656
      %v1670 = vpack.c.b16 %v1659, %v1658
      %v1671 = vpack.c.b16 %v1661, %v1660
      %v1672 = vpack.c.b16 %v1663, %v1662
      %v1673 = vpack.c.b16 %v1665, %v1664
      %v1698 = vunpack.c.l.b16 %v1634
      %v1699 = vunpack.c.l.b16 %v1635
      %v1700 = vunpack.c.l.b16 %v1636
      %v1701 = vunpack.c.l.b16 %v1637
      %v1702 = vunpack.c.l.b16 %v1638
      %v1703 = vunpack.c.l.b16 %v1639
      %v1704 = vunpack.c.l.b16 %v1640
      %v1705 = vunpack.c.l.b16 %v1641
      %v1706 = vunpack.c.l.b16 %v1642
      %v1707 = vunpack.c.l.b16 %v1643
      %v1708 = vunpack.c.l.b16 %v1644
      %v1709 = vunpack.c.l.b16 %v1645
      %v1710 = vunpack.c.l.b16 %v1646
      %v1711 = vunpack.c.l.b16 %v1647
      %v1712 = vunpack.c.l.b16 %v1648
      %v1713 = vunpack.c.l.b16 %v1649
      %v1714 = vpack.c.b16 %v1699, %v1698
      %v1715 = vpack.c.b16 %v1701, %v1700
      %v1716 = vpack.c.b16 %v1703, %v1702
      %v1717 = vpack.c.b16 %v1705, %v1704
      %v1718 = vpack.c.b16 %v1707, %v1706
      %v1719 = vpack.c.b16 %v1709, %v1708
      %v1720 = vpack.c.b16 %v1711, %v1710
      %v1721 = vpack.c.b16 %v1713, %v1712
      %1730 = vmatpush.bf16.msra.mxu0 %v1721
      %1731 = vmatpush.bf16.msra.mxu0 %v1720
      %1732 = vmatpush.bf16.msra.mxu0 %v1719
      %1733 = vmatpush.bf16.msra.mxu0 %v1718
      %1734 = vmatpush.bf16.msra.mxu0 %v1717
      %1735 = vmatpush.bf16.msra.mxu0 %v1716
      %1736 = vmatpush.bf16.msra.mxu0 %v1715
      %1737 = vmatpush.bf16.msra.mxu0 %v1714
      %1738 = vmatmul.bf16.gmra.mxu0 %v1666
      %v1739 = vpop.f32.mrf.mxu0
      %v1740 = vadd.f32 0.0, %v1739
      %v1741 = vpop.f32.mrf.mxu0
      %v1742 = vadd.f32 0.0, %v1741
      %1743 = vmatmul.bf16.gmra.mxu0 %v1667
      %v1744 = vpop.f32.mrf.mxu0
      %v1745 = vadd.f32 0.0, %v1744
      %v1746 = vpop.f32.mrf.mxu0
      %v1747 = vadd.f32 0.0, %v1746
      %1748 = vmatmul.bf16.gmra.mxu0 %v1668
      %v1749 = vpop.f32.mrf.mxu0
      %v1750 = vadd.f32 0.0, %v1749
      %v1751 = vpop.f32.mrf.mxu0
      %v1752 = vadd.f32 0.0, %v1751
      %1753 = vmatmul.bf16.gmra.mxu0 %v1669
      %v1754 = vpop.f32.mrf.mxu0
      %v1755 = vadd.f32 0.0, %v1754
      %v1756 = vpop.f32.mrf.mxu0
      %v1757 = vadd.f32 0.0, %v1756
      %1758 = vmatmul.bf16.gmra.mxu0 %v1670
      %v1759 = vpop.f32.mrf.mxu0
      %v1760 = vadd.f32 0.0, %v1759
      %v1761 = vpop.f32.mrf.mxu0
      %v1762 = vadd.f32 0.0, %v1761
      %1763 = vmatmul.bf16.gmra.mxu0 %v1671
      %v1764 = vpop.f32.mrf.mxu0
      %v1765 = vadd.f32 0.0, %v1764
      %v1766 = vpop.f32.mrf.mxu0
      %v1767 = vadd.f32 0.0, %v1766
      %1768 = vmatmul.bf16.gmra.mxu0 %v1672
      %v1769 = vpop.f32.mrf.mxu0
      %v1770 = vadd.f32 0.0, %v1769
      %v1771 = vpop.f32.mrf.mxu0
      %v1772 = vadd.f32 0.0, %v1771
      %1773 = vmatmul.bf16.gmra.mxu0 %v1673
      %v1774 = vpop.f32.mrf.mxu0
      %v1775 = vadd.f32 0.0, %v1774
      %v1776 = vpop.f32.mrf.mxu0
      %v1777 = vadd.f32 0.0, %v1776
      %1778 = vdwg.mxu0
      %v1779 = vadd.f32 %v1529, %v1740
      %v1780 = vadd.f32 %v1530, %v1742
      %v1781 = vadd.f32 %v1531, %v1745
      %v1782 = vadd.f32 %v1532, %v1747
      %v1783 = vadd.f32 %v1533, %v1750
      %v1784 = vadd.f32 %v1534, %v1752
      %v1785 = vadd.f32 %v1535, %v1755
      %v1786 = vadd.f32 %v1536, %v1757
      %v1787 = vadd.f32 %v1537, %v1760
      %v1788 = vadd.f32 %v1538, %v1762
      %v1789 = vadd.f32 %v1539, %v1765
      %v1790 = vadd.f32 %v1540, %v1767
      %v1791 = vadd.f32 %v1541, %v1770
      %v1792 = vadd.f32 %v1542, %v1772
      %v1793 = vadd.f32 %v1543, %v1775
      %v1794 = vadd.f32 %v1544, %v1777
      %s1795 = sadd.s32 %s194, 2
      %s1796 = smul.u32 %s1795, 3
      %s1797 = smul.addr %s1796, 4
      %s1798 = scalar_lea.vmem %s183, %s1797
      %v1799 = vld [vmem:[%s1798] sm:$0xf]
      %v1800 = vld [vmem:[%s1798 + $0x4] sm:$0xf]
      %v1801 = vld [vmem:[%s1798 + $0xc] sm:$0xf]
      %v1802 = vld [vmem:[%s1798 + $0x10] sm:$0xf]
      %v1803 = vld [vmem:[%s1798 + $0x18] sm:$0xf]
      %v1804 = vld [vmem:[%s1798 + $0x1c] sm:$0xf]
      %v1805 = vld [vmem:[%s1798 + $0x24] sm:$0xf]
      %v1806 = vld [vmem:[%s1798 + $0x28] sm:$0xf]
      %v1807 = vld [vmem:[%s1798 + $0x30] sm:$0xf]
      %v1808 = vld [vmem:[%s1798 + $0x34] sm:$0xf]
      %v1809 = vld [vmem:[%s1798 + $0x3c] sm:$0xf]
      %v1810 = vld [vmem:[%s1798 + $0x40] sm:$0xf]
      %v1811 = vld [vmem:[%s1798 + $0x48] sm:$0xf]
      %v1812 = vld [vmem:[%s1798 + $0x4c] sm:$0xf]
      %v1813 = vld [vmem:[%s1798 + $0x54] sm:$0xf]
      %v1814 = vld [vmem:[%s1798 + $0x58] sm:$0xf]
      %s1815 = scalar_lea.vmem %s1, 384
      %v1816 = vld [vmem:[%s1815] sm:$0xf]
      %v1817 = vld [vmem:[%s1815 + $0x4] sm:$0xf]
      %v1818 = vld [vmem:[%s1815 + $0x8] sm:$0xf]
      %v1819 = vld [vmem:[%s1815 + $0xc] sm:$0xf]
      %v1820 = vld [vmem:[%s1815 + $0x10] sm:$0xf]
      %v1821 = vld [vmem:[%s1815 + $0x14] sm:$0xf]
      %v1822 = vld [vmem:[%s1815 + $0x18] sm:$0xf]
      %v1823 = vld [vmem:[%s1815 + $0x1c] sm:$0xf]
      %v1824 = vld [vmem:[%s1815 + $0x20] sm:$0xf]
      %v1825 = vld [vmem:[%s1815 + $0x24] sm:$0xf]
      %v1826 = vld [vmem:[%s1815 + $0x28] sm:$0xf]
      %v1827 = vld [vmem:[%s1815 + $0x2c] sm:$0xf]
      %v1828 = vld [vmem:[%s1815 + $0x30] sm:$0xf]
      %v1829 = vld [vmem:[%s1815 + $0x34] sm:$0xf]
      %v1830 = vld [vmem:[%s1815 + $0x38] sm:$0xf]
      %v1831 = vld [vmem:[%s1815 + $0x3c] sm:$0xf]
      %v1848 = vunpack.c.l.b16 %v1799
      %v1849 = vunpack.c.l.b16 %v1800
      %v1850 = vunpack.c.l.b16 %v1801
      %v1851 = vunpack.c.l.b16 %v1802
      %v1852 = vunpack.c.l.b16 %v1803
      %v1853 = vunpack.c.l.b16 %v1804
      %v1854 = vunpack.c.l.b16 %v1805
      %v1855 = vunpack.c.l.b16 %v1806
      %v1856 = vunpack.c.l.b16 %v1807
      %v1857 = vunpack.c.l.b16 %v1808
      %v1858 = vunpack.c.l.b16 %v1809
      %v1859 = vunpack.c.l.b16 %v1810
      %v1860 = vunpack.c.l.b16 %v1811
      %v1861 = vunpack.c.l.b16 %v1812
      %v1862 = vunpack.c.l.b16 %v1813
      %v1863 = vunpack.c.l.b16 %v1814
      %v1864 = vpack.c.b16 %v1849, %v1848
      %v1865 = vpack.c.b16 %v1851, %v1850
      %v1866 = vpack.c.b16 %v1853, %v1852
      %v1867 = vpack.c.b16 %v1855, %v1854
      %v1868 = vpack.c.b16 %v1857, %v1856
      %v1869 = vpack.c.b16 %v1859, %v1858
      %v1870 = vpack.c.b16 %v1861, %v1860
      %v1871 = vpack.c.b16 %v1863, %v1862
      %v1896 = vunpack.c.l.b16 %v1816
      %v1897 = vunpack.c.l.b16 %v1817
      %v1898 = vunpack.c.l.b16 %v1818
      %v1899 = vunpack.c.l.b16 %v1819
      %v1900 = vunpack.c.l.b16 %v1820
      %v1901 = vunpack.c.l.b16 %v1821
      %v1902 = vunpack.c.l.b16 %v1822
      %v1903 = vunpack.c.l.b16 %v1823
      %v1904 = vunpack.c.l.b16 %v1824
      %v1905 = vunpack.c.l.b16 %v1825
      %v1906 = vunpack.c.l.b16 %v1826
      %v1907 = vunpack.c.l.b16 %v1827
      %v1908 = vunpack.c.l.b16 %v1828
      %v1909 = vunpack.c.l.b16 %v1829
      %v1910 = vunpack.c.l.b16 %v1830
      %v1911 = vunpack.c.l.b16 %v1831
      %v1912 = vpack.c.b16 %v1897, %v1896
      %v1913 = vpack.c.b16 %v1899, %v1898
      %v1914 = vpack.c.b16 %v1901, %v1900
      %v1915 = vpack.c.b16 %v1903, %v1902
      %v1916 = vpack.c.b16 %v1905, %v1904
      %v1917 = vpack.c.b16 %v1907, %v1906
      %v1918 = vpack.c.b16 %v1909, %v1908
      %v1919 = vpack.c.b16 %v1911, %v1910
      %1928 = vmatpush.bf16.msra.mxu0 %v1919
      %1929 = vmatpush.bf16.msra.mxu0 %v1918
      %1930 = vmatpush.bf16.msra.mxu0 %v1917
      %1931 = vmatpush.bf16.msra.mxu0 %v1916
      %1932 = vmatpush.bf16.msra.mxu0 %v1915
      %1933 = vmatpush.bf16.msra.mxu0 %v1914
      %1934 = vmatpush.bf16.msra.mxu0 %v1913
      %1935 = vmatpush.bf16.msra.mxu0 %v1912
      %1936 = vmatmul.bf16.gmra.mxu0 %v1864
      %v1937 = vpop.f32.mrf.mxu0
      %v1938 = vadd.f32 0.0, %v1937
      %v1939 = vpop.f32.mrf.mxu0
      %v1940 = vadd.f32 0.0, %v1939
      %1941 = vmatmul.bf16.gmra.mxu0 %v1865
      %v1942 = vpop.f32.mrf.mxu0
      %v1943 = vadd.f32 0.0, %v1942
      %v1944 = vpop.f32.mrf.mxu0
      %v1945 = vadd.f32 0.0, %v1944
      %1946 = vmatmul.bf16.gmra.mxu0 %v1866
      %v1947 = vpop.f32.mrf.mxu0
      %v1948 = vadd.f32 0.0, %v1947
      %v1949 = vpop.f32.mrf.mxu0
      %v1950 = vadd.f32 0.0, %v1949
      %1951 = vmatmul.bf16.gmra.mxu0 %v1867
      %v1952 = vpop.f32.mrf.mxu0
      %v1953 = vadd.f32 0.0, %v1952
      %v1954 = vpop.f32.mrf.mxu0
      %v1955 = vadd.f32 0.0, %v1954
      %1956 = vmatmul.bf16.gmra.mxu0 %v1868
      %v1957 = vpop.f32.mrf.mxu0
      %v1958 = vadd.f32 0.0, %v1957
      %v1959 = vpop.f32.mrf.mxu0
      %v1960 = vadd.f32 0.0, %v1959
      %1961 = vmatmul.bf16.gmra.mxu0 %v1869
      %v1962 = vpop.f32.mrf.mxu0
      %v1963 = vadd.f32 0.0, %v1962
      %v1964 = vpop.f32.mrf.mxu0
      %v1965 = vadd.f32 0.0, %v1964
      %1966 = vmatmul.bf16.gmra.mxu0 %v1870
      %v1967 = vpop.f32.mrf.mxu0
      %v1968 = vadd.f32 0.0, %v1967
      %v1969 = vpop.f32.mrf.mxu0
      %v1970 = vadd.f32 0.0, %v1969
      %1971 = vmatmul.bf16.gmra.mxu0 %v1871
      %v1972 = vpop.f32.mrf.mxu0
      %v1973 = vadd.f32 0.0, %v1972
      %v1974 = vpop.f32.mrf.mxu0
      %v1975 = vadd.f32 0.0, %v1974
      %1976 = vdwg.mxu0
      %v1977 = vadd.f32 %v1779, %v1938
      %v1978 = vadd.f32 %v1780, %v1940
      %v1979 = vadd.f32 %v1781, %v1943
      %v1980 = vadd.f32 %v1782, %v1945
      %v1981 = vadd.f32 %v1783, %v1948
      %v1982 = vadd.f32 %v1784, %v1950
      %v1983 = vadd.f32 %v1785, %v1953
      %v1984 = vadd.f32 %v1786, %v1955
      %v1985 = vadd.f32 %v1787, %v1958
      %v1986 = vadd.f32 %v1788, %v1960
      %v1987 = vadd.f32 %v1789, %v1963
      %v1988 = vadd.f32 %v1790, %v1965
      %v1989 = vadd.f32 %v1791, %v1968
      %v1990 = vadd.f32 %v1792, %v1970
      %v1991 = vadd.f32 %v1793, %v1973
      %v1992 = vadd.f32 %v1794, %v1975
      %v1993 = vld [vmem:[%s1798] sm:$0xf]
      %v1994 = vld [vmem:[%s1798 + $0x4] sm:$0xf]
      %v1995 = vld [vmem:[%s1798 + $0x8] sm:$0x1]
      %v1996 = vld [vmem:[%s1798 + $0xc] sm:$0xf]
      %v1997 = vld [vmem:[%s1798 + $0x10] sm:$0xf]
      %v1998 = vld [vmem:[%s1798 + $0x14] sm:$0x1]
      %v1999 = vld [vmem:[%s1798 + $0x18] sm:$0xf]
      %v2000 = vld [vmem:[%s1798 + $0x1c] sm:$0xf]
      %v2001 = vld [vmem:[%s1798 + $0x20] sm:$0x1]
      %v2002 = vld [vmem:[%s1798 + $0x24] sm:$0xf]
      %v2003 = vld [vmem:[%s1798 + $0x28] sm:$0xf]
      %v2004 = vld [vmem:[%s1798 + $0x2c] sm:$0x1]
      %v2005 = vld [vmem:[%s1798 + $0x30] sm:$0xf]
      %v2006 = vld [vmem:[%s1798 + $0x34] sm:$0xf]
      %v2007 = vld [vmem:[%s1798 + $0x38] sm:$0x1]
      %v2008 = vld [vmem:[%s1798 + $0x3c] sm:$0xf]
      %v2009 = vld [vmem:[%s1798 + $0x40] sm:$0xf]
      %v2010 = vld [vmem:[%s1798 + $0x44] sm:$0x1]
      %v2011 = vld [vmem:[%s1798 + $0x48] sm:$0xf]
      %v2012 = vld [vmem:[%s1798 + $0x4c] sm:$0xf]
      %v2013 = vld [vmem:[%s1798 + $0x50] sm:$0x1]
      %v2014 = vld [vmem:[%s1798 + $0x54] sm:$0xf]
      %v2015 = vld [vmem:[%s1798 + $0x58] sm:$0xf]
      %v2016 = vld [vmem:[%s1798 + $0x5c] sm:$0x1]
      %v2018 = vshrl.u32 %v1993, 16
      %v2020 = vrot.slane %v2018, 4
      %v2021 = vshll.u32 %v1993, 16
      %v2023 = vrot.slane %v2021, 5
      %v2024 = vor.u32 %v2020, %v2023
      %v2025 = vrot.slane %v2024, 4
      %v2027 = vshll.u32 %v1994, 16
      %v2029 = vrot.slane %v2027, 5
      %v2030 = vsel %vm240, %v2025, %v2029
      %v2031 = vshrl.u32 %v1994, 16
      %v2033 = vrot.slane %v2031, 4
      %v2034 = vor.u32 %v2033, %v2029
      %v2035 = vrot.slane %v2034, 4
      %v2037 = vshll.u32 %v1995, 16
      %v2039 = vrot.slane %v2037, 5
      %v2040 = vsel %vm240, %v2035, %v2039
      %v2042 = vshrl.u32 %v1996, 16
      %v2044 = vrot.slane %v2042, 4
      %v2045 = vshll.u32 %v1996, 16
      %v2047 = vrot.slane %v2045, 5
      %v2048 = vor.u32 %v2044, %v2047
      %v2049 = vrot.slane %v2048, 4
      %v2051 = vshll.u32 %v1997, 16
      %v2053 = vrot.slane %v2051, 5
      %v2054 = vsel %vm240, %v2049, %v2053
      %v2055 = vshrl.u32 %v1997, 16
      %v2057 = vrot.slane %v2055, 4
      %v2058 = vor.u32 %v2057, %v2053
      %v2059 = vrot.slane %v2058, 4
      %v2061 = vshll.u32 %v1998, 16
      %v2063 = vrot.slane %v2061, 5
      %v2064 = vsel %vm240, %v2059, %v2063
      %v2066 = vshrl.u32 %v1999, 16
      %v2068 = vrot.slane %v2066, 4
      %v2069 = vshll.u32 %v1999, 16
      %v2071 = vrot.slane %v2069, 5
      %v2072 = vor.u32 %v2068, %v2071
      %v2073 = vrot.slane %v2072, 4
      %v2075 = vshll.u32 %v2000, 16
      %v2077 = vrot.slane %v2075, 5
      %v2078 = vsel %vm240, %v2073, %v2077
      %v2079 = vshrl.u32 %v2000, 16
      %v2081 = vrot.slane %v2079, 4
      %v2082 = vor.u32 %v2081, %v2077
      %v2083 = vrot.slane %v2082, 4
      %v2085 = vshll.u32 %v2001, 16
      %v2087 = vrot.slane %v2085, 5
      %v2088 = vsel %vm240, %v2083, %v2087
      %v2090 = vshrl.u32 %v2002, 16
      %v2092 = vrot.slane %v2090, 4
      %v2093 = vshll.u32 %v2002, 16
      %v2095 = vrot.slane %v2093, 5
      %v2096 = vor.u32 %v2092, %v2095
      %v2097 = vrot.slane %v2096, 4
      %v2099 = vshll.u32 %v2003, 16
      %v2101 = vrot.slane %v2099, 5
      %v2102 = vsel %vm240, %v2097, %v2101
      %v2103 = vshrl.u32 %v2003, 16
      %v2105 = vrot.slane %v2103, 4
      %v2106 = vor.u32 %v2105, %v2101
      %v2107 = vrot.slane %v2106, 4
      %v2109 = vshll.u32 %v2004, 16
      %v2111 = vrot.slane %v2109, 5
      %v2112 = vsel %vm240, %v2107, %v2111
      %v2114 = vshrl.u32 %v2005, 16
      %v2116 = vrot.slane %v2114, 4
      %v2117 = vshll.u32 %v2005, 16
      %v2119 = vrot.slane %v2117, 5
      %v2120 = vor.u32 %v2116, %v2119
      %v2121 = vrot.slane %v2120, 4
      %v2123 = vshll.u32 %v2006, 16
      %v2125 = vrot.slane %v2123, 5
      %v2126 = vsel %vm240, %v2121, %v2125
      %v2127 = vshrl.u32 %v2006, 16
      %v2129 = vrot.slane %v2127, 4
      %v2130 = vor.u32 %v2129, %v2125
      %v2131 = vrot.slane %v2130, 4
      %v2133 = vshll.u32 %v2007, 16
      %v2135 = vrot.slane %v2133, 5
      %v2136 = vsel %vm240, %v2131, %v2135
      %v2138 = vshrl.u32 %v2008, 16
      %v2140 = vrot.slane %v2138, 4
      %v2141 = vshll.u32 %v2008, 16
      %v2143 = vrot.slane %v2141, 5
      %v2144 = vor.u32 %v2140, %v2143
      %v2145 = vrot.slane %v2144, 4
      %v2147 = vshll.u32 %v2009, 16
      %v2149 = vrot.slane %v2147, 5
      %v2150 = vsel %vm240, %v2145, %v2149
      %v2151 = vshrl.u32 %v2009, 16
      %v2153 = vrot.slane %v2151, 4
      %v2154 = vor.u32 %v2153, %v2149
      %v2155 = vrot.slane %v2154, 4
      %v2157 = vshll.u32 %v2010, 16
      %v2159 = vrot.slane %v2157, 5
      %v2160 = vsel %vm240, %v2155, %v2159
      %v2162 = vshrl.u32 %v2011, 16
      %v2164 = vrot.slane %v2162, 4
      %v2165 = vshll.u32 %v2011, 16
      %v2167 = vrot.slane %v2165, 5
      %v2168 = vor.u32 %v2164, %v2167
      %v2169 = vrot.slane %v2168, 4
      %v2171 = vshll.u32 %v2012, 16
      %v2173 = vrot.slane %v2171, 5
      %v2174 = vsel %vm240, %v2169, %v2173
      %v2175 = vshrl.u32 %v2012, 16
      %v2177 = vrot.slane %v2175, 4
      %v2178 = vor.u32 %v2177, %v2173
      %v2179 = vrot.slane %v2178, 4
      %v2181 = vshll.u32 %v2013, 16
      %v2183 = vrot.slane %v2181, 5
      %v2184 = vsel %vm240, %v2179, %v2183
      %v2186 = vshrl.u32 %v2014, 16
      %v2188 = vrot.slane %v2186, 4
      %v2189 = vshll.u32 %v2014, 16
      %v2191 = vrot.slane %v2189, 5
      %v2192 = vor.u32 %v2188, %v2191
      %v2193 = vrot.slane %v2192, 4
      %v2195 = vshll.u32 %v2015, 16
      %v2197 = vrot.slane %v2195, 5
      %v2198 = vsel %vm240, %v2193, %v2197
      %v2199 = vshrl.u32 %v2015, 16
      %v2201 = vrot.slane %v2199, 4
      %v2202 = vor.u32 %v2201, %v2197
      %v2203 = vrot.slane %v2202, 4
      %v2205 = vshll.u32 %v2016, 16
      %v2207 = vrot.slane %v2205, 5
      %v2208 = vsel %vm240, %v2203, %v2207
      %s2209 = scalar_lea.vmem %s1, 448
      %v2210 = vld [vmem:[%s2209] sm:$0xf]
      %v2211 = vld [vmem:[%s2209 + $0x4] sm:$0xf]
      %v2212 = vld [vmem:[%s2209 + $0x8] sm:$0xf]
      %v2213 = vld [vmem:[%s2209 + $0xc] sm:$0xf]
      %v2214 = vld [vmem:[%s2209 + $0x10] sm:$0xf]
      %v2215 = vld [vmem:[%s2209 + $0x14] sm:$0xf]
      %v2216 = vld [vmem:[%s2209 + $0x18] sm:$0xf]
      %v2217 = vld [vmem:[%s2209 + $0x1c] sm:$0xf]
      %v2218 = vld [vmem:[%s2209 + $0x20] sm:$0xf]
      %v2219 = vld [vmem:[%s2209 + $0x24] sm:$0xf]
      %v2220 = vld [vmem:[%s2209 + $0x28] sm:$0xf]
      %v2221 = vld [vmem:[%s2209 + $0x2c] sm:$0xf]
      %v2222 = vld [vmem:[%s2209 + $0x30] sm:$0xf]
      %v2223 = vld [vmem:[%s2209 + $0x34] sm:$0xf]
      %v2224 = vld [vmem:[%s2209 + $0x38] sm:$0xf]
      %v2225 = vld [vmem:[%s2209 + $0x3c] sm:$0xf]
      %v2226 = vunpack.c.l.b16 %v2030
      %v2227 = vunpack.c.l.b16 %v2040
      %v2228 = vunpack.c.l.b16 %v2054
      %v2229 = vunpack.c.l.b16 %v2064
      %v2230 = vunpack.c.l.b16 %v2078
      %v2231 = vunpack.c.l.b16 %v2088
      %v2232 = vunpack.c.l.b16 %v2102
      %v2233 = vunpack.c.l.b16 %v2112
      %v2234 = vunpack.c.l.b16 %v2126
      %v2235 = vunpack.c.l.b16 %v2136
      %v2236 = vunpack.c.l.b16 %v2150
      %v2237 = vunpack.c.l.b16 %v2160
      %v2238 = vunpack.c.l.b16 %v2174
      %v2239 = vunpack.c.l.b16 %v2184
      %v2240 = vunpack.c.l.b16 %v2198
      %v2241 = vunpack.c.l.b16 %v2208
      %v2242 = vpack.c.b16 %v2227, %v2226
      %v2243 = vpack.c.b16 %v2229, %v2228
      %v2244 = vpack.c.b16 %v2231, %v2230
      %v2245 = vpack.c.b16 %v2233, %v2232
      %v2246 = vpack.c.b16 %v2235, %v2234
      %v2247 = vpack.c.b16 %v2237, %v2236
      %v2248 = vpack.c.b16 %v2239, %v2238
      %v2249 = vpack.c.b16 %v2241, %v2240
      %v2274 = vunpack.c.l.b16 %v2210
      %v2275 = vunpack.c.l.b16 %v2211
      %v2276 = vunpack.c.l.b16 %v2212
      %v2277 = vunpack.c.l.b16 %v2213
      %v2278 = vunpack.c.l.b16 %v2214
      %v2279 = vunpack.c.l.b16 %v2215
      %v2280 = vunpack.c.l.b16 %v2216
      %v2281 = vunpack.c.l.b16 %v2217
      %v2282 = vunpack.c.l.b16 %v2218
      %v2283 = vunpack.c.l.b16 %v2219
      %v2284 = vunpack.c.l.b16 %v2220
      %v2285 = vunpack.c.l.b16 %v2221
      %v2286 = vunpack.c.l.b16 %v2222
      %v2287 = vunpack.c.l.b16 %v2223
      %v2288 = vunpack.c.l.b16 %v2224
      %v2289 = vunpack.c.l.b16 %v2225
      %v2290 = vpack.c.b16 %v2275, %v2274
      %v2291 = vpack.c.b16 %v2277, %v2276
      %v2292 = vpack.c.b16 %v2279, %v2278
      %v2293 = vpack.c.b16 %v2281, %v2280
      %v2294 = vpack.c.b16 %v2283, %v2282
      %v2295 = vpack.c.b16 %v2285, %v2284
      %v2296 = vpack.c.b16 %v2287, %v2286
      %v2297 = vpack.c.b16 %v2289, %v2288
      %2306 = vmatpush.bf16.msra.mxu0 %v2297
      %2307 = vmatpush.bf16.msra.mxu0 %v2296
      %2308 = vmatpush.bf16.msra.mxu0 %v2295
      %2309 = vmatpush.bf16.msra.mxu0 %v2294
      %2310 = vmatpush.bf16.msra.mxu0 %v2293
      %2311 = vmatpush.bf16.msra.mxu0 %v2292
      %2312 = vmatpush.bf16.msra.mxu0 %v2291
      %2313 = vmatpush.bf16.msra.mxu0 %v2290
      %2314 = vmatmul.bf16.gmra.mxu0 %v2242
      %v2315 = vpop.f32.mrf.mxu0
      %v2316 = vadd.f32 0.0, %v2315
      %v2317 = vpop.f32.mrf.mxu0
      %v2318 = vadd.f32 0.0, %v2317
      %2319 = vmatmul.bf16.gmra.mxu0 %v2243
      %v2320 = vpop.f32.mrf.mxu0
      %v2321 = vadd.f32 0.0, %v2320
      %v2322 = vpop.f32.mrf.mxu0
      %v2323 = vadd.f32 0.0, %v2322
      %2324 = vmatmul.bf16.gmra.mxu0 %v2244
      %v2325 = vpop.f32.mrf.mxu0
      %v2326 = vadd.f32 0.0, %v2325
      %v2327 = vpop.f32.mrf.mxu0
      %v2328 = vadd.f32 0.0, %v2327
      %2329 = vmatmul.bf16.gmra.mxu0 %v2245
      %v2330 = vpop.f32.mrf.mxu0
      %v2331 = vadd.f32 0.0, %v2330
      %v2332 = vpop.f32.mrf.mxu0
      %v2333 = vadd.f32 0.0, %v2332
      %2334 = vmatmul.bf16.gmra.mxu0 %v2246
      %v2335 = vpop.f32.mrf.mxu0
      %v2336 = vadd.f32 0.0, %v2335
      %v2337 = vpop.f32.mrf.mxu0
      %v2338 = vadd.f32 0.0, %v2337
      %2339 = vmatmul.bf16.gmra.mxu0 %v2247
      %v2340 = vpop.f32.mrf.mxu0
      %v2341 = vadd.f32 0.0, %v2340
      %v2342 = vpop.f32.mrf.mxu0
      %v2343 = vadd.f32 0.0, %v2342
      %2344 = vmatmul.bf16.gmra.mxu0 %v2248
      %v2345 = vpop.f32.mrf.mxu0
      %v2346 = vadd.f32 0.0, %v2345
      %v2347 = vpop.f32.mrf.mxu0
      %v2348 = vadd.f32 0.0, %v2347
      %2349 = vmatmul.bf16.gmra.mxu0 %v2249
      %v2350 = vpop.f32.mrf.mxu0
      %v2351 = vadd.f32 0.0, %v2350
      %v2352 = vpop.f32.mrf.mxu0
      %v2353 = vadd.f32 0.0, %v2352
      %2354 = vdwg.mxu0
      %v2355 = vadd.f32 %v1977, %v2316
      %v2356 = vadd.f32 %v1978, %v2318
      %v2357 = vadd.f32 %v1979, %v2321
      %v2358 = vadd.f32 %v1980, %v2323
      %v2359 = vadd.f32 %v1981, %v2326
      %v2360 = vadd.f32 %v1982, %v2328
      %v2361 = vadd.f32 %v1983, %v2331
      %v2362 = vadd.f32 %v1984, %v2333
      %v2363 = vadd.f32 %v1985, %v2336
      %v2364 = vadd.f32 %v1986, %v2338
      %v2365 = vadd.f32 %v1987, %v2341
      %v2366 = vadd.f32 %v1988, %v2343
      %v2367 = vadd.f32 %v1989, %v2346
      %v2368 = vadd.f32 %v1990, %v2348
      %v2369 = vadd.f32 %v1991, %v2351
      %v2370 = vadd.f32 %v1992, %v2353
      %v2371 = vld [vmem:[%s1798] sm:$0xe]
      %v2372 = vld [vmem:[%s1798 + $0xc] sm:$0xe]
      %v2373 = vld [vmem:[%s1798 + $0x18] sm:$0xe]
      %v2374 = vld [vmem:[%s1798 + $0x24] sm:$0xe]
      %v2375 = vld [vmem:[%s1798 + $0x30] sm:$0xe]
      %v2376 = vld [vmem:[%s1798 + $0x3c] sm:$0xe]
      %v2377 = vld [vmem:[%s1798 + $0x48] sm:$0xe]
      %v2378 = vld [vmem:[%s1798 + $0x54] sm:$0xe]
      %v2403 = vrot.slane %v2371, 5
      %v2404 = vrot.slane %v2403, 4
      %v2405 = vrot.slane %v1994, 5
      %v2406 = vsel %vm750, %v2404, %v2405
      %v2407 = vrot.slane %v2405, 4
      %v2408 = vrot.slane %v1995, 5
      %v2409 = vsel %vm750, %v2407, %v2408
      %v2410 = vrot.slane %v2372, 5
      %v2411 = vrot.slane %v2410, 4
      %v2412 = vrot.slane %v1997, 5
      %v2413 = vsel %vm750, %v2411, %v2412
      %v2414 = vrot.slane %v2412, 4
      %v2415 = vrot.slane %v1998, 5
      %v2416 = vsel %vm750, %v2414, %v2415
      %v2417 = vrot.slane %v2373, 5
      %v2418 = vrot.slane %v2417, 4
      %v2419 = vrot.slane %v2000, 5
      %v2420 = vsel %vm750, %v2418, %v2419
      %v2421 = vrot.slane %v2419, 4
      %v2422 = vrot.slane %v2001, 5
      %v2423 = vsel %vm750, %v2421, %v2422
      %v2424 = vrot.slane %v2374, 5
      %v2425 = vrot.slane %v2424, 4
      %v2426 = vrot.slane %v2003, 5
      %v2427 = vsel %vm750, %v2425, %v2426
      %v2428 = vrot.slane %v2426, 4
      %v2429 = vrot.slane %v2004, 5
      %v2430 = vsel %vm750, %v2428, %v2429
      %v2431 = vrot.slane %v2375, 5
      %v2432 = vrot.slane %v2431, 4
      %v2433 = vrot.slane %v2006, 5
      %v2434 = vsel %vm750, %v2432, %v2433
      %v2435 = vrot.slane %v2433, 4
      %v2436 = vrot.slane %v2007, 5
      %v2437 = vsel %vm750, %v2435, %v2436
      %v2438 = vrot.slane %v2376, 5
      %v2439 = vrot.slane %v2438, 4
      %v2440 = vrot.slane %v2009, 5
      %v2441 = vsel %vm750, %v2439, %v2440
      %v2442 = vrot.slane %v2440, 4
      %v2443 = vrot.slane %v2010, 5
      %v2444 = vsel %vm750, %v2442, %v2443
      %v2445 = vrot.slane %v2377, 5
      %v2446 = vrot.slane %v2445, 4
      %v2447 = vrot.slane %v2012, 5
      %v2448 = vsel %vm750, %v2446, %v2447
      %v2449 = vrot.slane %v2447, 4
      %v2450 = vrot.slane %v2013, 5
      %v2451 = vsel %vm750, %v2449, %v2450
      %v2452 = vrot.slane %v2378, 5
      %v2453 = vrot.slane %v2452, 4
      %v2454 = vrot.slane %v2015, 5
      %v2455 = vsel %vm750, %v2453, %v2454
      %v2456 = vrot.slane %v2454, 4
      %v2457 = vrot.slane %v2016, 5
      %v2458 = vsel %vm750, %v2456, %v2457
      %s2459 = scalar_lea.vmem %s1, 512
      %v2460 = vld [vmem:[%s2459] sm:$0xf]
      %v2461 = vld [vmem:[%s2459 + $0x4] sm:$0xf]
      %v2462 = vld [vmem:[%s2459 + $0x8] sm:$0xf]
      %v2463 = vld [vmem:[%s2459 + $0xc] sm:$0xf]
      %v2464 = vld [vmem:[%s2459 + $0x10] sm:$0xf]
      %v2465 = vld [vmem:[%s2459 + $0x14] sm:$0xf]
      %v2466 = vld [vmem:[%s2459 + $0x18] sm:$0xf]
      %v2467 = vld [vmem:[%s2459 + $0x1c] sm:$0xf]
      %v2468 = vld [vmem:[%s2459 + $0x20] sm:$0xf]
      %v2469 = vld [vmem:[%s2459 + $0x24] sm:$0xf]
      %v2470 = vld [vmem:[%s2459 + $0x28] sm:$0xf]
      %v2471 = vld [vmem:[%s2459 + $0x2c] sm:$0xf]
      %v2472 = vld [vmem:[%s2459 + $0x30] sm:$0xf]
      %v2473 = vld [vmem:[%s2459 + $0x34] sm:$0xf]
      %v2474 = vld [vmem:[%s2459 + $0x38] sm:$0xf]
      %v2475 = vld [vmem:[%s2459 + $0x3c] sm:$0xf]
      %v2476 = vunpack.c.l.b16 %v2406
      %v2477 = vunpack.c.l.b16 %v2409
      %v2478 = vunpack.c.l.b16 %v2413
      %v2479 = vunpack.c.l.b16 %v2416
      %v2480 = vunpack.c.l.b16 %v2420
      %v2481 = vunpack.c.l.b16 %v2423
      %v2482 = vunpack.c.l.b16 %v2427
      %v2483 = vunpack.c.l.b16 %v2430
      %v2484 = vunpack.c.l.b16 %v2434
      %v2485 = vunpack.c.l.b16 %v2437
      %v2486 = vunpack.c.l.b16 %v2441
      %v2487 = vunpack.c.l.b16 %v2444
      %v2488 = vunpack.c.l.b16 %v2448
      %v2489 = vunpack.c.l.b16 %v2451
      %v2490 = vunpack.c.l.b16 %v2455
      %v2491 = vunpack.c.l.b16 %v2458
      %v2492 = vpack.c.b16 %v2477, %v2476
      %v2493 = vpack.c.b16 %v2479, %v2478
      %v2494 = vpack.c.b16 %v2481, %v2480
      %v2495 = vpack.c.b16 %v2483, %v2482
      %v2496 = vpack.c.b16 %v2485, %v2484
      %v2497 = vpack.c.b16 %v2487, %v2486
      %v2498 = vpack.c.b16 %v2489, %v2488
      %v2499 = vpack.c.b16 %v2491, %v2490
      %v2524 = vunpack.c.l.b16 %v2460
      %v2525 = vunpack.c.l.b16 %v2461
      %v2526 = vunpack.c.l.b16 %v2462
      %v2527 = vunpack.c.l.b16 %v2463
      %v2528 = vunpack.c.l.b16 %v2464
      %v2529 = vunpack.c.l.b16 %v2465
      %v2530 = vunpack.c.l.b16 %v2466
      %v2531 = vunpack.c.l.b16 %v2467
      %v2532 = vunpack.c.l.b16 %v2468
      %v2533 = vunpack.c.l.b16 %v2469
      %v2534 = vunpack.c.l.b16 %v2470
      %v2535 = vunpack.c.l.b16 %v2471
      %v2536 = vunpack.c.l.b16 %v2472
      %v2537 = vunpack.c.l.b16 %v2473
      %v2538 = vunpack.c.l.b16 %v2474
      %v2539 = vunpack.c.l.b16 %v2475
      %v2540 = vpack.c.b16 %v2525, %v2524
      %v2541 = vpack.c.b16 %v2527, %v2526
      %v2542 = vpack.c.b16 %v2529, %v2528
      %v2543 = vpack.c.b16 %v2531, %v2530
      %v2544 = vpack.c.b16 %v2533, %v2532
      %v2545 = vpack.c.b16 %v2535, %v2534
      %v2546 = vpack.c.b16 %v2537, %v2536
      %v2547 = vpack.c.b16 %v2539, %v2538
      %2556 = vmatpush.bf16.msra.mxu0 %v2547
      %2557 = vmatpush.bf16.msra.mxu0 %v2546
      %2558 = vmatpush.bf16.msra.mxu0 %v2545
      %2559 = vmatpush.bf16.msra.mxu0 %v2544
      %2560 = vmatpush.bf16.msra.mxu0 %v2543
      %2561 = vmatpush.bf16.msra.mxu0 %v2542
      %2562 = vmatpush.bf16.msra.mxu0 %v2541
      %2563 = vmatpush.bf16.msra.mxu0 %v2540
      %2564 = vmatmul.bf16.gmra.mxu0 %v2492
      %v2565 = vpop.f32.mrf.mxu0
      %v2566 = vadd.f32 0.0, %v2565
      %v2567 = vpop.f32.mrf.mxu0
      %v2568 = vadd.f32 0.0, %v2567
      %2569 = vmatmul.bf16.gmra.mxu0 %v2493
      %v2570 = vpop.f32.mrf.mxu0
      %v2571 = vadd.f32 0.0, %v2570
      %v2572 = vpop.f32.mrf.mxu0
      %v2573 = vadd.f32 0.0, %v2572
      %2574 = vmatmul.bf16.gmra.mxu0 %v2494
      %v2575 = vpop.f32.mrf.mxu0
      %v2576 = vadd.f32 0.0, %v2575
      %v2577 = vpop.f32.mrf.mxu0
      %v2578 = vadd.f32 0.0, %v2577
      %2579 = vmatmul.bf16.gmra.mxu0 %v2495
      %v2580 = vpop.f32.mrf.mxu0
      %v2581 = vadd.f32 0.0, %v2580
      %v2582 = vpop.f32.mrf.mxu0
      %v2583 = vadd.f32 0.0, %v2582
      %2584 = vmatmul.bf16.gmra.mxu0 %v2496
      %v2585 = vpop.f32.mrf.mxu0
      %v2586 = vadd.f32 0.0, %v2585
      %v2587 = vpop.f32.mrf.mxu0
      %v2588 = vadd.f32 0.0, %v2587
      %2589 = vmatmul.bf16.gmra.mxu0 %v2497
      %v2590 = vpop.f32.mrf.mxu0
      %v2591 = vadd.f32 0.0, %v2590
      %v2592 = vpop.f32.mrf.mxu0
      %v2593 = vadd.f32 0.0, %v2592
      %2594 = vmatmul.bf16.gmra.mxu0 %v2498
      %v2595 = vpop.f32.mrf.mxu0
      %v2596 = vadd.f32 0.0, %v2595
      %v2597 = vpop.f32.mrf.mxu0
      %v2598 = vadd.f32 0.0, %v2597
      %2599 = vmatmul.bf16.gmra.mxu0 %v2499
      %v2600 = vpop.f32.mrf.mxu0
      %v2601 = vadd.f32 0.0, %v2600
      %v2602 = vpop.f32.mrf.mxu0
      %v2603 = vadd.f32 0.0, %v2602
      %2604 = vdwg.mxu0
      %v2605 = vadd.f32 %v2355, %v2566
      %v2606 = vadd.f32 %v2356, %v2568
      %v2607 = vadd.f32 %v2357, %v2571
      %v2608 = vadd.f32 %v2358, %v2573
      %v2609 = vadd.f32 %v2359, %v2576
      %v2610 = vadd.f32 %v2360, %v2578
      %v2611 = vadd.f32 %v2361, %v2581
      %v2612 = vadd.f32 %v2362, %v2583
      %v2613 = vadd.f32 %v2363, %v2586
      %v2614 = vadd.f32 %v2364, %v2588
      %v2615 = vadd.f32 %v2365, %v2591
      %v2616 = vadd.f32 %v2366, %v2593
      %v2617 = vadd.f32 %v2367, %v2596
      %v2618 = vadd.f32 %v2368, %v2598
      %v2619 = vadd.f32 %v2369, %v2601
      %v2620 = vadd.f32 %v2370, %v2603
      %v2621 = vld [vmem:[%s2] sm:$0x1]
      %v2623 = vperm.slane %v2621, 0
      %v2625 = vadd.f32 %v2605, %v2623
      %v2626 = vadd.f32 %v2606, %v2623
      %v2627 = vadd.f32 %v2607, %v2623
      %v2628 = vadd.f32 %v2608, %v2623
      %v2629 = vadd.f32 %v2609, %v2623
      %v2630 = vadd.f32 %v2610, %v2623
      %v2631 = vadd.f32 %v2611, %v2623
      %v2632 = vadd.f32 %v2612, %v2623
      %v2633 = vadd.f32 %v2613, %v2623
      %v2634 = vadd.f32 %v2614, %v2623
      %v2635 = vadd.f32 %v2615, %v2623
      %v2636 = vadd.f32 %v2616, %v2623
      %v2637 = vadd.f32 %v2617, %v2623
      %v2638 = vadd.f32 %v2618, %v2623
      %v2639 = vadd.f32 %v2619, %v2623
      %v2640 = vadd.f32 %v2620, %v2623
      %v2641 = vmax.f32 %v2625, 0.0
      %v2642 = vmax.f32 %v2626, 0.0
      %v2643 = vmax.f32 %v2627, 0.0
      %v2644 = vmax.f32 %v2628, 0.0
      %v2645 = vmax.f32 %v2629, 0.0
      %v2646 = vmax.f32 %v2630, 0.0
      %v2647 = vmax.f32 %v2631, 0.0
      %v2648 = vmax.f32 %v2632, 0.0
      %v2649 = vmax.f32 %v2633, 0.0
      %v2650 = vmax.f32 %v2634, 0.0
      %v2651 = vmax.f32 %v2635, 0.0
      %v2652 = vmax.f32 %v2636, 0.0
      %v2653 = vmax.f32 %v2637, 0.0
      %v2654 = vmax.f32 %v2638, 0.0
      %v2655 = vmax.f32 %v2639, 0.0
      %v2656 = vmax.f32 %v2640, 0.0
      %v2657 = vpack.c.bf16 %v2641, %v2641
      %v2658 = vpack.c.bf16 %v2642, %v2642
      %v2659 = vpack.c.bf16 %v2643, %v2643
      %v2660 = vpack.c.bf16 %v2644, %v2644
      %v2661 = vpack.c.bf16 %v2645, %v2645
      %v2662 = vpack.c.bf16 %v2646, %v2646
      %v2663 = vpack.c.bf16 %v2647, %v2647
      %v2664 = vpack.c.bf16 %v2648, %v2648
      %v2665 = vpack.c.bf16 %v2649, %v2649
      %v2666 = vpack.c.bf16 %v2650, %v2650
      %v2667 = vpack.c.bf16 %v2651, %v2651
      %v2668 = vpack.c.bf16 %v2652, %v2652
      %v2669 = vpack.c.bf16 %v2653, %v2653
      %v2670 = vpack.c.bf16 %v2654, %v2654
      %v2671 = vpack.c.bf16 %v2655, %v2655
      %v2672 = vpack.c.bf16 %v2656, %v2656
      %2673 = vst [vmem:[%s192] sm:$0xf] %v2657
      %2674 = vst [vmem:[%s192 + $0x4] sm:$0xf] %v2658
      %2675 = vst [vmem:[%s192 + $0x8] sm:$0xf] %v2659
      %2676 = vst [vmem:[%s192 + $0xc] sm:$0xf] %v2660
      %2677 = vst [vmem:[%s192 + $0x10] sm:$0xf] %v2661
      %2678 = vst [vmem:[%s192 + $0x14] sm:$0xf] %v2662
      %2679 = vst [vmem:[%s192 + $0x18] sm:$0xf] %v2663
      %2680 = vst [vmem:[%s192 + $0x1c] sm:$0xf] %v2664
      %2681 = vst [vmem:[%s192 + $0x20] sm:$0xf] %v2665
      %2682 = vst [vmem:[%s192 + $0x24] sm:$0xf] %v2666
      %2683 = vst [vmem:[%s192 + $0x28] sm:$0xf] %v2667
      %2684 = vst [vmem:[%s192 + $0x2c] sm:$0xf] %v2668
      %2685 = vst [vmem:[%s192 + $0x30] sm:$0xf] %v2669
      %2686 = vst [vmem:[%s192 + $0x34] sm:$0xf] %v2670
      %2687 = vst [vmem:[%s192 + $0x38] sm:$0xf] %v2671
      %2688 = vst [vmem:[%s192 + $0x3c] sm:$0xf] %v2672
      %s2689 = smul.u32 16, %s19
      %p2690 = scmp.lt.s32.totalorder %s18, 1
      %s2691 = scalar_select %p2690, %s18, 1
      %p2692 = scmp.lt.s32.totalorder %s2689, 31
      %s2693 = scalar_select %p2692, %s2689, 31
      %s2694 = smul.addr %s2691, 32
      %s2695 = sadd.s32 %s2693, %s2694
      %s2696 = smul.addr %s2695, 4
      %s2697 = scalar_lea.vmem %s3, %s2696
      // Predicated region
      $region33: #{bottleneck_forward.5} parent=31 // pred_check
        %p2698 = pneg %p114
      $region34: #{bottleneck_forward.5} parent=31 // pred_check_branch
        %2700 = sbr.rel (%p2698) target = $region36
      $region35: #{bottleneck_forward.5} parent=31 // pred_region
        %s2701 = smul.u32 16, %s19
      $region36: #{bottleneck_forward.5} parent=31 // pred_fallthru
        _
    $region32: #{bottleneck_forward.5} parent=5 // pred_fallthru
      _
    %p2702 = scmp.le.s32.totalorder 2, %s9
    // Predicated region
    $region37: #{bottleneck_forward.5} parent=5 // pred_check
      %p2703 = pneg %p2702
    $region38: #{bottleneck_forward.5} parent=5 // pred_check_branch
      %2705 = sbr.rel (%p2703) target = $region40
    $region39: #{bottleneck_forward.5} parent=5 // pred_region
      %s2706 = ssub.s32 %s9, 2
      // Predicated region
      $region41: #{bottleneck_forward.5} parent=39 // pred_check
        %p2707 = pneg %p120
      $region42: #{bottleneck_forward.5} parent=39 // pred_check_branch
        %2709 = sbr.rel (%p2707) target = $region44
      $region43: #{bottleneck_forward.5} parent=39 // pred_region
        %s2710 = smul.u32 16, %s21
        %p2711 = scmp.lt.s32.totalorder %s20, 1
        %s2712 = scalar_select %p2711, %s20, 1
        %p2713 = scmp.lt.s32.totalorder %s2710, 31
        %s2714 = scalar_select %p2713, %s2710, 31
        %s2715 = smul.addr %s2712, 32
        %s2716 = sadd.s32 %s2714, %s2715
        %s2717 = smul.addr %s2716, 4
        %s2718 = scalar_lea.vmem %s3, %s2717
      $region44: #{bottleneck_forward.5} parent=39 // pred_fallthru
        _
    $region40: #{bottleneck_forward.5} parent=5 // pred_fallthru
      _
  $region6: #{bottleneck_forward.5} parent=0 // loop_footer
    %s13 = sadd.s32 1, %s9
  $region7: #{bottleneck_forward.5} parent=0 // loop_footer_branch
    %8 = sbr.rel target = $region3
  $region8: #{bottleneck_forward.5} parent=0 // loop_exit
    _

</llo_original>
